<compile_context>
chip_gen: v7x
topology: tpu7x:2x2x1
jax: 0.10.0
libtpu: 0.0.40
codegen_flags: <defaults>
</compile_context>

<pallas_src>
import math
import numpy as np
import jax
import jax.numpy as jnp
from jax import lax
from jax.experimental import pallas as pl
from jax.experimental.pallas import tpu as pltpu

# Small, TPU-friendly demo sizes (module defaults are d_model=500, d_hid=2000).
H = 4                      # attention heads
D_MODEL = 128              # lane-dense feature dim (multiple of 128)
D_HID = 256                # FFN hidden dim
DK = D_MODEL // H
N_NODES = 16               # nodes per graph (multiple of 8 sublanes)
N_GRAPHS = 4               # graphs per pallas_call (grid batch)
NUM_LAYERS = 2             # GraphEncoder layers in the demo (module default 6)
LN_EPS = 1e-5
_GELU_C = math.sqrt(2.0 / math.pi)
_PW = max(D_MODEL, D_HID)  # packed small-parameter row width


def _gelu(x):
    return 0.5 * x * (1.0 + jnp.tanh(_GELU_C * (x + 0.044715 * x * x * x)))


def _layernorm(x, gamma, beta):
    mean = jnp.mean(x, axis=-1, keepdims=True)
    var = jnp.mean((x - mean) ** 2, axis=-1, keepdims=True)
    return (x - mean) * lax.rsqrt(var + LN_EPS) * gamma + beta


def encoder_layer_kernel(x_ref, adj_ref, wqkv_ref, wo_ref, w1_ref, w2_ref,
                         p_ref, out_ref):
    # x: [N, D]   adj: [N, N] with adj[dst, src] = 1. iff edge src -> dst
    x = x_ref[...]
    adj = adj_ref[...]

    # Fused per-head Q/K/V projection.  wqkv is [3, H, D, DK] (pre-split per
    # head in the wrapper) so every head's q/k/v lands in its own lane-aligned
    # [N, DK] tile -- no cross-lane column slicing inside the kernel.
    wqkv = wqkv_ref[...]
    xh = jnp.broadcast_to(x[None, :, :], (H, N_NODES, D_MODEL))
    q = jnp.einsum('hnd,hdk->hnk', xh, wqkv[0],
                   preferred_element_type=jnp.float32)
    k = jnp.einsum('hnd,hdk->hnk', xh, wqkv[1],
                   preferred_element_type=jnp.float32)
    v = jnp.einsum('hnd,hdk->hnk', xh, wqkv[2],
                   preferred_element_type=jnp.float32)

    # Edge-masked attention scores for all heads at once: s[h, dst, src].
    scale = 1.0 / math.sqrt(DK)
    s = jnp.einsum('hqd,hkd->hqk', q, k,
                   preferred_element_type=jnp.float32) * scale

    # Additive mask (0 on edges, -1e30 off edges) replaces per-head selects.
    neg = (adj - 1.0) * 1e30
    s = s + neg[None]
    m = jnp.max(s, axis=2, keepdims=True)
    p = jnp.exp(s - m) * adj[None]
    denom = jnp.sum(p, axis=2, keepdims=True)
    att = p * pl.reciprocal(jnp.where(denom > 0.0, denom, 1.0), approx=True)

    o = jnp.einsum('hqk,hkd->hqd', att, v,
                   preferred_element_type=jnp.float32)          # [H, N, DK]
    # Nodes with no in-edges keep their own WV(x) (DGL send_and_recv).
    has_in = (jnp.sum(adj, axis=1, keepdims=True) > 0.0)[None]  # [1, N, 1]
    o = jnp.where(has_in, o, v)

    # Output projection: sum_h o_h @ WO_h  ==  concat(heads) @ WO.T
    attn_out = jnp.sum(
        jnp.einsum('hnd,hde->hne', o, wo_ref[...],
                   preferred_element_type=jnp.float32), axis=0)  # [N, D]

    # Packed small parameters (one DMA instead of six).
    pv = p_ref[...]
    ln1_g = pv[0:1, :D_MODEL]
    ln1_b = pv[1:2, :D_MODEL]
    ln2_g = pv[2:3, :D_MODEL]
    ln2_b = pv[3:4, :D_MODEL]
    b2 = pv[4:5, :D_MODEL]
    b1 = pv[5:6, :D_HID]

    # residual + LayerNorm 1
    y1 = _layernorm(attn_out + x, ln1_g, ln1_b)

    # FFN (tanh-approx gelu), residual + LayerNorm 2
    h1 = _gelu(jnp.dot(y1, w1_ref[...],
                       preferred_element_type=jnp.float32) + b1)
    ff = jnp.dot(h1, w2_ref[...], preferred_element_type=jnp.float32) + b2
    out_ref[...] = _layernorm(ff + y1, ln2_g, ln2_b)


def _pack_layer_params(params):
    """Host-side repack into kernel-friendly, lane/sublane-aligned tensors."""
    d, dh = D_MODEL, D_HID
    # Per-head projection weights [3, H, D, DK]:  y = x @ W.T, head h takes
    # output columns [h*DK, (h+1)*DK) of W.T.
    wqkv = jnp.stack([
        params["wq"].T.reshape(d, H, DK).transpose(1, 0, 2),
        params["wk"].T.reshape(d, H, DK).transpose(1, 0, 2),
        params["wv"].T.reshape(d, H, DK).transpose(1, 0, 2),
    ]).astype(jnp.float32)
    wo = params["wo"].T.reshape(H, DK, d).astype(jnp.float32)     # [H, DK, D]
    w1 = params["w1"].T.astype(jnp.float32)                       # [D, D_HID]
    w2 = params["w2"].T.astype(jnp.float32)                       # [D_HID, D]
    pvec = jnp.zeros((8, _PW), jnp.float32)
    pvec = pvec.at[0, :d].set(params["ln1_g"])
    pvec = pvec.at[1, :d].set(params["ln1_b"])
    pvec = pvec.at[2, :d].set(params["ln2_g"])
    pvec = pvec.at[3, :d].set(params["ln2_b"])
    pvec = pvec.at[4, :d].set(params["b2"])
    pvec = pvec.at[5, :dh].set(params["b1"])
    return wqkv, wo, w1, w2, pvec


def encoder_layer(x, adj, params):
    """One Encoder_Layer over a batch of graphs. x: [B,N,D], adj: [B,N,N]."""
    b, n, d = x.shape
    wqkv, wo, w1, w2, pvec = _pack_layer_params(params)
    return pl.pallas_call(
        encoder_layer_kernel,
        out_shape=jax.ShapeDtypeStruct((b, n, d), jnp.float32),
        grid=(b,),
        in_specs=[
            pl.BlockSpec((None, n, d), lambda g: (g, 0, 0)),        # x
            pl.BlockSpec((None, n, n), lambda g: (g, 0, 0)),        # adj
            pl.BlockSpec((3, H, d, DK), lambda g: (0, 0, 0, 0)),    # wqkv heads
            pl.BlockSpec((H, DK, d), lambda g: (0, 0, 0)),          # wo heads
            pl.BlockSpec((d, D_HID), lambda g: (0, 0)),             # w1
            pl.BlockSpec((D_HID, d), lambda g: (0, 0)),             # w2
            pl.BlockSpec((8, _PW), lambda g: (0, 0)),               # packed biases/LN
        ],
        out_specs=pl.BlockSpec((None, n, d), lambda g: (g, 0, 0)),
        compiler_params=pltpu.CompilerParams(
            dimension_semantics=("parallel",)),   # shard graphs across TCs
    )(x.astype(jnp.float32), adj.astype(jnp.float32), wqkv, wo, w1, w2, pvec)


def graph_encoder(x, adj, layer_params):
    """GraphEncoder forward: stack of Encoder_Layers."""
    for p in layer_params:
        x = encoder_layer(x, adj, p)
    return x


def encoder_layer_reference(x, adj, params):
    """Pure-JAX reference mirroring the PyTorch/DGL Encoder_Layer forward."""
    b, n, d = x.shape
    q = (x @ params["wq"].T).reshape(b, n, H, DK)
    k = (x @ params["wk"].T).reshape(b, n, H, DK)
    v = (x @ params["wv"].T).reshape(b, n, H, DK)
    s = jnp.einsum("bshd,bthd->btsh", k, q) / math.sqrt(DK)  # [b, dst, src, h]
    s = jnp.where((adj > 0)[..., None], s, -1e30)
    m = jnp.max(s, axis=2, keepdims=True)
    p = jnp.exp(s - m) * adj[..., None]
    denom = jnp.sum(p, axis=2, keepdims=True)
    att = p / jnp.where(denom > 0, denom, 1.0)
    o = jnp.einsum("btsh,bshd->bthd", att, v)
    has_in = (adj.sum(axis=2) > 0)[..., None, None]
    o = jnp.where(has_in, o, v)            # no-in-edge nodes keep WV(x)
    attn_out = o.reshape(b, n, d) @ params["wo"].T

    def ln(z, g, bb):
        mu = z.mean(-1, keepdims=True)
        var = ((z - mu) ** 2).mean(-1, keepdims=True)
        return (z - mu) / jnp.sqrt(var + LN_EPS) * g + bb

    y1 = ln(attn_out + x, params["ln1_g"], params["ln1_b"])
    h1 = _gelu(y1 @ params["w1"].T + params["b1"])
    ff = h1 @ params["w2"].T + params["b2"]
    return ln(ff + y1, params["ln2_g"], params["ln2_b"])


if __name__ == "__main__":
    key = jax.random.PRNGKey(0)
    kx, ka, kp = jax.random.split(key, 3)

    def make_params(k):
        ks = jax.random.split(k, 8)
        w = lambda kk, shape: jax.random.normal(kk, shape, jnp.float32) * 0.05
        return {
            "wq": w(ks[0], (D_MODEL, D_MODEL)),
            "wk": w(ks[1], (D_MODEL, D_MODEL)),
            "wv": w(ks[2], (D_MODEL, D_MODEL)),
            "wo": w(ks[3], (D_MODEL, D_MODEL)),
            "w1": w(ks[4], (D_HID, D_MODEL)),
            "b1": w(ks[5], (D_HID,)),
            "w2": w(ks[6], (D_MODEL, D_HID)),
            "b2": w(ks[7], (D_MODEL,)),
            "ln1_g": jnp.ones((D_MODEL,), jnp.float32),
            "ln1_b": jnp.zeros((D_MODEL,), jnp.float32),
            "ln2_g": jnp.ones((D_MODEL,), jnp.float32),
            "ln2_b": jnp.zeros((D_MODEL,), jnp.float32),
        }

    layer_params = [make_params(k) for k in jax.random.split(kp, NUM_LAYERS)]

    x = jax.random.normal(kx, (N_GRAPHS, N_NODES, D_MODEL), jnp.float32)
    # deterministic random digraphs (dst, src); some nodes may have no in-edges
    adj = (jax.random.uniform(ka, (N_GRAPHS, N_NODES, N_NODES)) < 0.3
           ).astype(jnp.float32)

    out = jax.block_until_ready(graph_encoder(x, adj, layer_params))

    ref = x
    for p in layer_params:
        ref = encoder_layer_reference(ref, adj, p)

    np.testing.assert_allclose(np.asarray(out), np.asarray(ref),
                               rtol=2e-3, atol=2e-3)
    assert out.shape == (N_GRAPHS, N_NODES, D_MODEL)
    print("KERNEL_OK")
</pallas_src>

<mosaic_0001>
module attributes {stable_mosaic.version = 11 : i64} {
  func.func @encoder_layer_kernel(%arg0: i32, %arg1: memref<1x16x128xf32, #tpu.memory_space<vmem>>, %arg2: memref<1x16x16xf32, #tpu.memory_space<vmem>>, %arg3: memref<3x4x128x32xf32, #tpu.memory_space<vmem>>, %arg4: memref<4x32x128xf32, #tpu.memory_space<vmem>>, %arg5: memref<128x256xf32, #tpu.memory_space<vmem>>, %arg6: memref<256x128xf32, #tpu.memory_space<vmem>>, %arg7: memref<8x256xf32, #tpu.memory_space<vmem>>, %arg8: memref<1x16x128xf32, #tpu.memory_space<vmem>>) attributes {dimension_semantics = [#tpu.dimension_semantics<parallel>], iteration_bounds = array<i64: 4>, scalar_prefetch = 0 : i64, scratch_operands = 0 : i64, tpu.core_type = #tpu.core_type<tc>, window_params = [{transform_indices = @transform_0, window_bounds = array<i64: 1, 16, 128>}, {transform_indices = @transform_1, window_bounds = array<i64: 1, 16, 16>}, {pipeline_mode = #tpu.pipeline_mode<synchronous>, transform_indices = @transform_2, window_bounds = array<i64: 3, 4, 128, 32>}, {pipeline_mode = #tpu.pipeline_mode<synchronous>, transform_indices = @transform_3, window_bounds = array<i64: 4, 32, 128>}, {pipeline_mode = #tpu.pipeline_mode<synchronous>, transform_indices = @transform_4, window_bounds = array<i64: 128, 256>}, {pipeline_mode = #tpu.pipeline_mode<synchronous>, transform_indices = @transform_5, window_bounds = array<i64: 256, 128>}, {pipeline_mode = #tpu.pipeline_mode<synchronous>, transform_indices = @transform_6, window_bounds = array<i64: 8, 256>}, {transform_indices = @transform_7, window_bounds = array<i64: 1, 16, 128>}]} {
    %c0 = arith.constant 0 : index
    %c0_0 = arith.constant 0 : index
    %c0_1 = arith.constant 0 : index
    %0 = vector.load %arg1[%c0, %c0_0, %c0_1] : memref<1x16x128xf32, #tpu.memory_space<vmem>>, vector<1x16x128xf32>
    %1 = vector.shape_cast %0 : vector<1x16x128xf32> to vector<16x128xf32>
    %c0_2 = arith.constant 0 : index
    %c0_3 = arith.constant 0 : index
    %c0_4 = arith.constant 0 : index
    %2 = vector.load %arg2[%c0_2, %c0_3, %c0_4] : memref<1x16x16xf32, #tpu.memory_space<vmem>>, vector<1x16x16xf32>
    %3 = vector.shape_cast %2 : vector<1x16x16xf32> to vector<16x16xf32>
    %c0_5 = arith.constant 0 : index
    %c0_6 = arith.constant 0 : index
    %c0_7 = arith.constant 0 : index
    %c0_8 = arith.constant 0 : index
    %4 = vector.load %arg3[%c0_5, %c0_6, %c0_7, %c0_8] : memref<3x4x128x32xf32, #tpu.memory_space<vmem>>, vector<3x4x128x32xf32>
    %5 = vector.shape_cast %1 : vector<16x128xf32> to vector<1x16x128xf32>
    %6 = vector.shape_cast %5 : vector<1x16x128xf32> to vector<1x16x128xf32>
    %7 = vector.broadcast %6 : vector<1x16x128xf32> to vector<4x16x128xf32>
    %8 = vector.extract_strided_slice %4 {offsets = [0, 0, 0, 0], sizes = [1, 4, 128, 32], strides = [1, 1, 1, 1]} : vector<3x4x128x32xf32> to vector<1x4x128x32xf32>
    %9 = vector.shape_cast %8 : vector<1x4x128x32xf32> to vector<4x128x32xf32>
    "tpu.trace_start"() <{level = 10 : i32, message = "hnd,hdk->hnk"}> : () -> ()
    %cst = arith.constant dense<0.000000e+00> : vector<4x16x32xf32>
    %10 = tpu.matmul %7, %9, %cst {dimension_numbers = #tpu.dot_dimension_numbers<[2], [1], [1], [2], [0, 0, 0, 1, 1, 2], [0], [0]>} : vector<4x16x128xf32>, vector<4x128x32xf32>, vector<4x16x32xf32> -> vector<4x16x32xf32>
    "tpu.trace_stop"() : () -> ()
    %11 = vector.extract_strided_slice %4 {offsets = [1, 0, 0, 0], sizes = [1, 4, 128, 32], strides = [1, 1, 1, 1]} : vector<3x4x128x32xf32> to vector<1x4x128x32xf32>
    %12 = vector.shape_cast %11 : vector<1x4x128x32xf32> to vector<4x128x32xf32>
    "tpu.trace_start"() <{level = 10 : i32, message = "hnd,hdk->hnk"}> : () -> ()
    %cst_9 = arith.constant dense<0.000000e+00> : vector<4x16x32xf32>
    %13 = tpu.matmul %7, %12, %cst_9 {dimension_numbers = #tpu.dot_dimension_numbers<[2], [1], [1], [2], [0, 0, 0, 1, 1, 2], [0], [0]>} : vector<4x16x128xf32>, vector<4x128x32xf32>, vector<4x16x32xf32> -> vector<4x16x32xf32>
    "tpu.trace_stop"() : () -> ()
    %14 = vector.extract_strided_slice %4 {offsets = [2, 0, 0, 0], sizes = [1, 4, 128, 32], strides = [1, 1, 1, 1]} : vector<3x4x128x32xf32> to vector<1x4x128x32xf32>
    %15 = vector.shape_cast %14 : vector<1x4x128x32xf32> to vector<4x128x32xf32>
    "tpu.trace_start"() <{level = 10 : i32, message = "hnd,hdk->hnk"}> : () -> ()
    %cst_10 = arith.constant dense<0.000000e+00> : vector<4x16x32xf32>
    %16 = tpu.matmul %7, %15, %cst_10 {dimension_numbers = #tpu.dot_dimension_numbers<[2], [1], [1], [2], [0, 0, 0, 1, 1, 2], [0], [0]>} : vector<4x16x128xf32>, vector<4x128x32xf32>, vector<4x16x32xf32> -> vector<4x16x32xf32>
    "tpu.trace_stop"() : () -> ()
    "tpu.trace_start"() <{level = 10 : i32, message = "hqd,hkd->hqk"}> : () -> ()
    %cst_11 = arith.constant dense<0.000000e+00> : vector<4x16x16xf32>
    %17 = tpu.matmul %10, %13, %cst_11 {dimension_numbers = #tpu.dot_dimension_numbers<[2], [2], [1], [1], [0, 0, 0, 1, 1, 1], [0], [0]>} : vector<4x16x32xf32>, vector<4x16x32xf32>, vector<4x16x16xf32> -> vector<4x16x16xf32>
    "tpu.trace_stop"() : () -> ()
    %cst_12 = arith.constant 0.176776692 : f32
    %18 = vector.broadcast %cst_12 : f32 to vector<4x16x16xf32>
    %19 = arith.mulf %17, %18 : vector<4x16x16xf32>
    %cst_13 = arith.constant 1.000000e+00 : f32
    %20 = vector.broadcast %cst_13 : f32 to vector<16x16xf32>
    %21 = arith.subf %3, %20 : vector<16x16xf32>
    %cst_14 = arith.constant 1.000000e+30 : f32
    %22 = vector.broadcast %cst_14 : f32 to vector<16x16xf32>
    %23 = arith.mulf %21, %22 : vector<16x16xf32>
    %24 = vector.shape_cast %23 : vector<16x16xf32> to vector<1x16x16xf32>
    %25 = vector.broadcast %24 : vector<1x16x16xf32> to vector<4x16x16xf32>
    %26 = arith.addf %19, %25 : vector<4x16x16xf32>
    %cst_15 = arith.constant dense<0xFF800000> : vector<4x16xf32>
    %27 = vector.multi_reduction <maximumf>, %26, %cst_15 [2] : vector<4x16x16xf32> to vector<4x16xf32>
    %28 = vector.shape_cast %27 : vector<4x16xf32> to vector<4x16x1xf32>
    %29 = vector.broadcast %28 : vector<4x16x1xf32> to vector<4x16x16xf32>
    %30 = arith.subf %26, %29 : vector<4x16x16xf32>
    %31 = math.exp %30 : vector<4x16x16xf32>
    %32 = vector.shape_cast %3 : vector<16x16xf32> to vector<1x16x16xf32>
    %33 = vector.broadcast %32 : vector<1x16x16xf32> to vector<4x16x16xf32>
    %34 = arith.mulf %31, %33 : vector<4x16x16xf32>
    %cst_16 = arith.constant dense<0.000000e+00> : vector<4x16xf32>
    %35 = vector.multi_reduction <add>, %34, %cst_16 [2] : vector<4x16x16xf32> to vector<4x16xf32>
    %36 = vector.shape_cast %35 : vector<4x16xf32> to vector<4x16x1xf32>
    %cst_17 = arith.constant 0.000000e+00 : f32
    %37 = vector.broadcast %cst_17 : f32 to vector<4x16x1xf32>
    %38 = arith.cmpf ogt, %36, %37 : vector<4x16x1xf32>
    %cst_18 = arith.constant 1.000000e+00 : f32
    %39 = vector.broadcast %cst_18 : f32 to vector<4x16x1xf32>
    %40 = arith.select %38, %36, %39 : vector<4x16x1xi1>, vector<4x16x1xf32>
    %41 = tpu.reciprocal %40 {approx = true} : vector<4x16x1xf32> -> vector<4x16x1xf32>
    %42 = vector.broadcast %41 : vector<4x16x1xf32> to vector<4x16x16xf32>
    %43 = arith.mulf %34, %42 : vector<4x16x16xf32>
    "tpu.trace_start"() <{level = 10 : i32, message = "hqk,hkd->hqd"}> : () -> ()
    %cst_19 = arith.constant dense<0.000000e+00> : vector<4x16x32xf32>
    %44 = tpu.matmul %43, %16, %cst_19 {dimension_numbers = #tpu.dot_dimension_numbers<[2], [1], [1], [2], [0, 0, 0, 1, 1, 2], [0], [0]>} : vector<4x16x16xf32>, vector<4x16x32xf32>, vector<4x16x32xf32> -> vector<4x16x32xf32>
    "tpu.trace_stop"() : () -> ()
    %cst_20 = arith.constant dense<0.000000e+00> : vector<16xf32>
    %45 = vector.multi_reduction <add>, %3, %cst_20 [1] : vector<16x16xf32> to vector<16xf32>
    %46 = vector.shape_cast %45 : vector<16xf32> to vector<16x1xf32>
    %cst_21 = arith.constant 0.000000e+00 : f32
    %47 = vector.broadcast %cst_21 : f32 to vector<16x1xf32>
    %48 = arith.cmpf ogt, %46, %47 : vector<16x1xf32>
    %49 = vector.shape_cast %48 : vector<16x1xi1> to vector<1x16x1xi1>
    %50 = vector.shape_cast %49 : vector<1x16x1xi1> to vector<1x16x1xi1>
    %51 = vector.broadcast %50 : vector<1x16x1xi1> to vector<4x16x32xi1>
    %52 = arith.select %51, %44, %16 : vector<4x16x32xi1>, vector<4x16x32xf32>
    %c0_22 = arith.constant 0 : index
    %c0_23 = arith.constant 0 : index
    %c0_24 = arith.constant 0 : index
    %53 = vector.load %arg4[%c0_22, %c0_23, %c0_24] : memref<4x32x128xf32, #tpu.memory_space<vmem>>, vector<4x32x128xf32>
    "tpu.trace_start"() <{level = 10 : i32, message = "hnd,hde->hne"}> : () -> ()
    %cst_25 = arith.constant dense<0.000000e+00> : vector<4x16x128xf32>
    %54 = tpu.matmul %52, %53, %cst_25 {dimension_numbers = #tpu.dot_dimension_numbers<[2], [1], [1], [2], [0, 0, 0, 1, 1, 2], [0], [0]>} : vector<4x16x32xf32>, vector<4x32x128xf32>, vector<4x16x128xf32> -> vector<4x16x128xf32>
    "tpu.trace_stop"() : () -> ()
    %cst_26 = arith.constant dense<0.000000e+00> : vector<16x128xf32>
    %55 = vector.multi_reduction <add>, %54, %cst_26 [0] : vector<4x16x128xf32> to vector<16x128xf32>
    %c0_27 = arith.constant 0 : index
    %c0_28 = arith.constant 0 : index
    %56 = vector.load %arg7[%c0_27, %c0_28] : memref<8x256xf32, #tpu.memory_space<vmem>>, vector<8x256xf32>
    %57 = vector.extract_strided_slice %56 {offsets = [0, 0], sizes = [1, 128], strides = [1, 1]} : vector<8x256xf32> to vector<1x128xf32>
    %58 = vector.extract_strided_slice %56 {offsets = [1, 0], sizes = [1, 128], strides = [1, 1]} : vector<8x256xf32> to vector<1x128xf32>
    %59 = vector.extract_strided_slice %56 {offsets = [2, 0], sizes = [1, 128], strides = [1, 1]} : vector<8x256xf32> to vector<1x128xf32>
    %60 = vector.extract_strided_slice %56 {offsets = [3, 0], sizes = [1, 128], strides = [1, 1]} : vector<8x256xf32> to vector<1x128xf32>
    %61 = vector.extract_strided_slice %56 {offsets = [4, 0], sizes = [1, 128], strides = [1, 1]} : vector<8x256xf32> to vector<1x128xf32>
    %62 = vector.extract_strided_slice %56 {offsets = [5, 0], sizes = [1, 256], strides = [1, 1]} : vector<8x256xf32> to vector<1x256xf32>
    %63 = arith.addf %55, %1 : vector<16x128xf32>
    %cst_29 = arith.constant dense<0.000000e+00> : vector<16xf32>
    %64 = vector.multi_reduction <add>, %63, %cst_29 [1] : vector<16x128xf32> to vector<16xf32>
    %65 = vector.shape_cast %64 : vector<16xf32> to vector<16x1xf32>
    %cst_30 = arith.constant 1.280000e+02 : f32
    %66 = vector.broadcast %cst_30 : f32 to vector<16x1xf32>
    %67 = arith.divf %65, %66 : vector<16x1xf32>
    %68 = vector.broadcast %67 : vector<16x1xf32> to vector<16x128xf32>
    %69 = arith.subf %63, %68 : vector<16x128xf32>
    %70 = arith.mulf %69, %69 : vector<16x128xf32>
    %cst_31 = arith.constant dense<0.000000e+00> : vector<16xf32>
    %71 = vector.multi_reduction <add>, %70, %cst_31 [1] : vector<16x128xf32> to vector<16xf32>
    %72 = vector.shape_cast %71 : vector<16xf32> to vector<16x1xf32>
    %cst_32 = arith.constant 1.280000e+02 : f32
    %73 = vector.broadcast %cst_32 : f32 to vector<16x1xf32>
    %74 = arith.divf %72, %73 : vector<16x1xf32>
    %75 = vector.broadcast %67 : vector<16x1xf32> to vector<16x128xf32>
    %76 = arith.subf %63, %75 : vector<16x128xf32>
    %cst_33 = arith.constant 9.99999974E-6 : f32
    %77 = vector.broadcast %cst_33 : f32 to vector<16x1xf32>
    %78 = arith.addf %74, %77 : vector<16x1xf32>
    %79 = math.rsqrt %78 : vector<16x1xf32>
    %80 = vector.broadcast %79 : vector<16x1xf32> to vector<16x128xf32>
    %81 = arith.mulf %76, %80 : vector<16x128xf32>
    %82 = vector.broadcast %57 : vector<1x128xf32> to vector<16x128xf32>
    %83 = arith.mulf %81, %82 : vector<16x128xf32>
    %84 = vector.broadcast %58 : vector<1x128xf32> to vector<16x128xf32>
    %85 = arith.addf %83, %84 : vector<16x128xf32>
    %c0_34 = arith.constant 0 : index
    %c0_35 = arith.constant 0 : index
    %86 = vector.load %arg5[%c0_34, %c0_35] : memref<128x256xf32, #tpu.memory_space<vmem>>, vector<128x256xf32>
    %cst_36 = arith.constant dense<0.000000e+00> : vector<16x256xf32>
    %87 = tpu.matmul %85, %86, %cst_36 {dimension_numbers = #tpu.dot_dimension_numbers<[1], [0], [0], [1], [0, 0, 1, 1], [], []>} : vector<16x128xf32>, vector<128x256xf32>, vector<16x256xf32> -> vector<16x256xf32>
    %88 = vector.broadcast %62 : vector<1x256xf32> to vector<16x256xf32>
    %89 = arith.addf %87, %88 : vector<16x256xf32>
    %cst_37 = arith.constant 5.000000e-01 : f32
    %90 = vector.broadcast %cst_37 : f32 to vector<16x256xf32>
    %91 = arith.mulf %90, %89 : vector<16x256xf32>
    %cst_38 = arith.constant 4.471500e-02 : f32
    %92 = vector.broadcast %cst_38 : f32 to vector<16x256xf32>
    %93 = arith.mulf %92, %89 : vector<16x256xf32>
    %94 = arith.mulf %93, %89 : vector<16x256xf32>
    %95 = arith.mulf %94, %89 : vector<16x256xf32>
    %96 = arith.addf %89, %95 : vector<16x256xf32>
    %cst_39 = arith.constant 0.797884583 : f32
    %97 = vector.broadcast %cst_39 : f32 to vector<16x256xf32>
    %98 = arith.mulf %97, %96 : vector<16x256xf32>
    %99 = math.tanh %98 : vector<16x256xf32>
    %cst_40 = arith.constant 1.000000e+00 : f32
    %100 = vector.broadcast %cst_40 : f32 to vector<16x256xf32>
    %101 = arith.addf %100, %99 : vector<16x256xf32>
    %102 = arith.mulf %91, %101 : vector<16x256xf32>
    %c0_41 = arith.constant 0 : index
    %c0_42 = arith.constant 0 : index
    %103 = vector.load %arg6[%c0_41, %c0_42] : memref<256x128xf32, #tpu.memory_space<vmem>>, vector<256x128xf32>
    %cst_43 = arith.constant dense<0.000000e+00> : vector<16x128xf32>
    %104 = tpu.matmul %102, %103, %cst_43 {dimension_numbers = #tpu.dot_dimension_numbers<[1], [0], [0], [1], [0, 0, 1, 1], [], []>} : vector<16x256xf32>, vector<256x128xf32>, vector<16x128xf32> -> vector<16x128xf32>
    %105 = vector.broadcast %61 : vector<1x128xf32> to vector<16x128xf32>
    %106 = arith.addf %104, %105 : vector<16x128xf32>
    %107 = arith.addf %106, %85 : vector<16x128xf32>
    %cst_44 = arith.constant dense<0.000000e+00> : vector<16xf32>
    %108 = vector.multi_reduction <add>, %107, %cst_44 [1] : vector<16x128xf32> to vector<16xf32>
    %109 = vector.shape_cast %108 : vector<16xf32> to vector<16x1xf32>
    %cst_45 = arith.constant 1.280000e+02 : f32
    %110 = vector.broadcast %cst_45 : f32 to vector<16x1xf32>
    %111 = arith.divf %109, %110 : vector<16x1xf32>
    %112 = vector.broadcast %111 : vector<16x1xf32> to vector<16x128xf32>
    %113 = arith.subf %107, %112 : vector<16x128xf32>
    %114 = arith.mulf %113, %113 : vector<16x128xf32>
    %cst_46 = arith.constant dense<0.000000e+00> : vector<16xf32>
    %115 = vector.multi_reduction <add>, %114, %cst_46 [1] : vector<16x128xf32> to vector<16xf32>
    %116 = vector.shape_cast %115 : vector<16xf32> to vector<16x1xf32>
    %cst_47 = arith.constant 1.280000e+02 : f32
    %117 = vector.broadcast %cst_47 : f32 to vector<16x1xf32>
    %118 = arith.divf %116, %117 : vector<16x1xf32>
    %119 = vector.broadcast %111 : vector<16x1xf32> to vector<16x128xf32>
    %120 = arith.subf %107, %119 : vector<16x128xf32>
    %cst_48 = arith.constant 9.99999974E-6 : f32
    %121 = vector.broadcast %cst_48 : f32 to vector<16x1xf32>
    %122 = arith.addf %118, %121 : vector<16x1xf32>
    %123 = math.rsqrt %122 : vector<16x1xf32>
    %124 = vector.broadcast %123 : vector<16x1xf32> to vector<16x128xf32>
    %125 = arith.mulf %120, %124 : vector<16x128xf32>
    %126 = vector.broadcast %59 : vector<1x128xf32> to vector<16x128xf32>
    %127 = arith.mulf %125, %126 : vector<16x128xf32>
    %128 = vector.broadcast %60 : vector<1x128xf32> to vector<16x128xf32>
    %129 = arith.addf %127, %128 : vector<16x128xf32>
    %c0_49 = arith.constant 0 : index
    %c0_50 = arith.constant 0 : index
    %c0_51 = arith.constant 0 : index
    %130 = vector.load %arg8[%c0_49, %c0_50, %c0_51] : memref<1x16x128xf32, #tpu.memory_space<vmem>>, vector<1x16x128xf32>
    %131 = vector.shape_cast %130 : vector<1x16x128xf32> to vector<16x128xf32>
    %132 = vector.shape_cast %129 : vector<16x128xf32> to vector<1x16x128xf32>
    tpu.vector_store %arg8[%c0_49, %c0_50, %c0_51], %132 {strides = array<i32>} : memref<1x16x128xf32, #tpu.memory_space<vmem>>, vector<1x16x128xf32>,
    return
  }
  func.func @transform_0(%arg0: i32) -> (i32, i32, i32) {
    %c0_i32 = arith.constant 0 : i32
    %c0_i32_0 = arith.constant 0 : i32
    %c0_i32_1 = arith.constant 0 : i32
    return %arg0, %c0_i32, %c0_i32_0 : i32, i32, i32
  }
  func.func @transform_1(%arg0: i32) -> (i32, i32, i32) {
    %c0_i32 = arith.constant 0 : i32
    %c0_i32_0 = arith.constant 0 : i32
    %c0_i32_1 = arith.constant 0 : i32
    return %arg0, %c0_i32, %c0_i32_0 : i32, i32, i32
  }
  func.func @transform_2(%arg0: i32) -> (i32, i32, i32, i32) {
    %c0_i32 = arith.constant 0 : i32
    %c0_i32_0 = arith.constant 0 : i32
    %c0_i32_1 = arith.constant 0 : i32
    %c0_i32_2 = arith.constant 0 : i32
    %c0_i32_3 = arith.constant 0 : i32
    return %c0_i32, %c0_i32_0, %c0_i32_1, %c0_i32_2 : i32, i32, i32, i32
  }
  func.func @transform_3(%arg0: i32) -> (i32, i32, i32) {
    %c0_i32 = arith.constant 0 : i32
    %c0_i32_0 = arith.constant 0 : i32
    %c0_i32_1 = arith.constant 0 : i32
    %c0_i32_2 = arith.constant 0 : i32
    return %c0_i32, %c0_i32_0, %c0_i32_1 : i32, i32, i32
  }
  func.func @transform_4(%arg0: i32) -> (i32, i32) {
    %c0_i32 = arith.constant 0 : i32
    %c0_i32_0 = arith.constant 0 : i32
    %c0_i32_1 = arith.constant 0 : i32
    return %c0_i32, %c0_i32_0 : i32, i32
  }
  func.func @transform_5(%arg0: i32) -> (i32, i32) {
    %c0_i32 = arith.constant 0 : i32
    %c0_i32_0 = arith.constant 0 : i32
    %c0_i32_1 = arith.constant 0 : i32
    return %c0_i32, %c0_i32_0 : i32, i32
  }
  func.func @transform_6(%arg0: i32) -> (i32, i32) {
    %c0_i32 = arith.constant 0 : i32
    %c0_i32_0 = arith.constant 0 : i32
    %c0_i32_1 = arith.constant 0 : i32
    return %c0_i32, %c0_i32_0 : i32, i32
  }
  func.func @transform_7(%arg0: i32) -> (i32, i32, i32) {
    %c0_i32 = arith.constant 0 : i32
    %c0_i32_0 = arith.constant 0 : i32
    %c0_i32_1 = arith.constant 0 : i32
    return %arg0, %c0_i32, %c0_i32_0 : i32, i32, i32
  }
}

</mosaic_0001>

<llo_original>
// kernel: tpu_custom_call.1
$region0: #{tpu_custom_call.1}
  #allocation0 [shape = 'u32[]', space=smem, size = 0x4, offset = 0x4, fixed_abs, tag = 'smem constant byte address 0x4 - core index']
  #allocation1 [shape = 'u32[144,128]{1,0:T(1,128)}', space=vmem, size = 0x12000, scoped, tag = 'internal scratch']
  %s0 = inlined_call_operand.vmem [shape: f32[4,16,128], index: 0, kind: input, shape index: {}]
  %s1 = inlined_call_operand.vmem [shape: f32[4,16,16], index: 1, kind: input, shape index: {}]
  %s2 = inlined_call_operand.vmem [shape: f32[3,4,128,32], index: 2, kind: input, shape index: {}]
  %s3 = inlined_call_operand.vmem [shape: f32[4,32,128], index: 3, kind: input, shape index: {}]
  %s4 = inlined_call_operand.vmem [shape: f32[128,256], index: 4, kind: input, shape index: {}]
  %s5 = inlined_call_operand.vmem [shape: f32[256,128], index: 5, kind: input, shape index: {}]
  %s6 = inlined_call_operand.vmem [shape: f32[8,256], index: 6, kind: input, shape index: {}]
  %s7 = inlined_call_operand.hbm [shape: f32[4,16,128], index: 7, kind: output, shape index: {}]
  %s8 = sld [smem:[#allocation0]]
  $region61: #{tpu_custom_call.1} parent=0
    _
  %s10 = ssub.s32 1, %s8
  %s11 = scalar_select 0, %s10, %s8
  $region1: #{tpu_custom_call.1} parent=0
    #allocation2 [shape = 'u8[16384]{0}', space=vmem, size = 0x4000, scoped, tag = 'output window, operand 0']
    #allocation3 [shape = 's32[2]{0}', space=sflag, size = 0x8, scoped, tag = 'scoped memory for tpu_custom_call.1']
    %12 = vsyncpa [#allocation3], 0
    %s13 = scalar_lea.sflag [#allocation3], 1
    %14 = vsyncpa %s13, 0
    loop: start=0, step=1, limit=6
    $region2: #{tpu_custom_call.1} parent=1 // loop_pre_header
      _
    $region3: #{tpu_custom_call.1} parent=1 // loop_header
      %s16 = sphi 0, %s20
      %p17 = scmp.ge.s32.totalorder %s16, 6
      %s26 = sphi 0, %s28
      %s29 = sphi 0, %s26
      %s30 = sphi 0, %s29
      %s46 = sphi 0, %s30
      %s52 = sphi 0, %s54
      %s55 = sphi 0, %s52
      %s56 = sphi 0, %s55
      %s72 = sphi 0, %s56
      %s76 = sphi 0, %s76
      %s78 = sphi 0, %s76
      %s79 = sphi 0, %s78
      %s93 = sphi 0, %s79
      %s97 = sphi 0, %s97
      %s99 = sphi 0, %s97
      %s100 = sphi 0, %s99
      %s114 = sphi 0, %s100
      %s118 = sphi 0, %s118
      %s120 = sphi 0, %s118
      %s121 = sphi 0, %s120
      %s135 = sphi 0, %s121
      %s139 = sphi 0, %s139
      %s141 = sphi 0, %s139
      %s142 = sphi 0, %s141
      %s156 = sphi 0, %s142
      %s160 = sphi 0, %s160
      %s162 = sphi 0, %s160
      %s163 = sphi 0, %s162
      %s177 = sphi 0, %s163
      %s183 = sphi 0, %s185
      %s186 = sphi 0, %s183
      %s187 = sphi 0, %s186
      %s203 = sphi 0, %s187
    $region4: #{tpu_custom_call.1} parent=1 // loop_header_branch
      %19 = sbr.rel (%p17) target = $region8
    $region5: #{tpu_custom_call.1} parent=1 // loop_body
      %s21 = ssub.s32 %s16, 1
      %s22 = ssub.s32 %s16, 2
      %s23 = sadd.s32 %s16, 1
      %s24 = ssub.s32 %s16, %s23
      %p25 = scmp.eq.s32.totalorder %s24, 0
      %s27 = sadd.s32 %s26, 1
      %s28 = scalar_select %p25, %s26, %s27
      %p31 = pneg %p25
      %p32 = scmp.eq.s32.totalorder %s16, 3
      %p33 = por %p31, %p32
      %p34 = scmp.ne.s32.totalorder %s26, %s29
      %p35 = scmp.eq.s32.totalorder %s16, 0
      %p36 = por %p34, %p35
      %p37 = scmp.ne.s32.totalorder %s26, %s29
      %p38 = scmp.eq.s32.totalorder %s21, 3
      %p39 = por %p37, %p38
      %p40 = scmp.ne.s32.totalorder %s29, %s30
      %p41 = scmp.eq.s32.totalorder %s21, 0
      %p42 = por %p40, %p41
      %p43 = scmp.ne.s32.totalorder %s29, %s30
      %p44 = scmp.eq.s32.totalorder %s22, 3
      %p45 = por %p43, %p44
      %p47 = scmp.ne.s32.totalorder %s30, %s46
      %p48 = scmp.eq.s32.totalorder %s22, 0
      %p49 = por %p47, %p48
      %s50 = ssub.s32 %s16, %s23
      %p51 = scmp.eq.s32.totalorder %s50, 0
      %s53 = sadd.s32 %s52, 1
      %s54 = scalar_select %p51, %s52, %s53
      %p57 = pneg %p51
      %p58 = scmp.eq.s32.totalorder %s16, 3
      %p59 = por %p57, %p58
      %p60 = scmp.ne.s32.totalorder %s52, %s55
      %p61 = scmp.eq.s32.totalorder %s16, 0
      %p62 = por %p60, %p61
      %p63 = scmp.ne.s32.totalorder %s52, %s55
      %p64 = scmp.eq.s32.totalorder %s21, 3
      %p65 = por %p63, %p64
      %p66 = scmp.ne.s32.totalorder %s55, %s56
      %p67 = scmp.eq.s32.totalorder %s21, 0
      %p68 = por %p66, %p67
      %p69 = scmp.ne.s32.totalorder %s55, %s56
      %p70 = scmp.eq.s32.totalorder %s22, 3
      %p71 = por %p69, %p70
      %p73 = scmp.ne.s32.totalorder %s56, %s72
      %p74 = scmp.eq.s32.totalorder %s22, 0
      %p75 = por %p73, %p74
      %s77 = sadd.s32 %s76, 1
      %p80 = scmp.eq.s32.totalorder %s16, 3
      %p81 = scmp.ne.s32.totalorder %s76, %s78
      %p82 = scmp.eq.s32.totalorder %s16, 0
      %p83 = por %p81, %p82
      %p84 = scmp.ne.s32.totalorder %s76, %s78
      %p85 = scmp.eq.s32.totalorder %s21, 3
      %p86 = por %p84, %p85
      %p87 = scmp.ne.s32.totalorder %s78, %s79
      %p88 = scmp.eq.s32.totalorder %s21, 0
      %p89 = por %p87, %p88
      %p90 = scmp.ne.s32.totalorder %s78, %s79
      %p91 = scmp.eq.s32.totalorder %s22, 3
      %p92 = por %p90, %p91
      %p94 = scmp.ne.s32.totalorder %s79, %s93
      %p95 = scmp.eq.s32.totalorder %s22, 0
      %p96 = por %p94, %p95
      %s98 = sadd.s32 %s97, 1
      %p101 = scmp.eq.s32.totalorder %s16, 3
      %p102 = scmp.ne.s32.totalorder %s97, %s99
      %p103 = scmp.eq.s32.totalorder %s16, 0
      %p104 = por %p102, %p103
      %p105 = scmp.ne.s32.totalorder %s97, %s99
      %p106 = scmp.eq.s32.totalorder %s21, 3
      %p107 = por %p105, %p106
      %p108 = scmp.ne.s32.totalorder %s99, %s100
      %p109 = scmp.eq.s32.totalorder %s21, 0
      %p110 = por %p108, %p109
      %p111 = scmp.ne.s32.totalorder %s99, %s100
      %p112 = scmp.eq.s32.totalorder %s22, 3
      %p113 = por %p111, %p112
      %p115 = scmp.ne.s32.totalorder %s100, %s114
      %p116 = scmp.eq.s32.totalorder %s22, 0
      %p117 = por %p115, %p116
      %s119 = sadd.s32 %s118, 1
      %p122 = scmp.eq.s32.totalorder %s16, 3
      %p123 = scmp.ne.s32.totalorder %s118, %s120
      %p124 = scmp.eq.s32.totalorder %s16, 0
      %p125 = por %p123, %p124
      %p126 = scmp.ne.s32.totalorder %s118, %s120
      %p127 = scmp.eq.s32.totalorder %s21, 3
      %p128 = por %p126, %p127
      %p129 = scmp.ne.s32.totalorder %s120, %s121
      %p130 = scmp.eq.s32.totalorder %s21, 0
      %p131 = por %p129, %p130
      %p132 = scmp.ne.s32.totalorder %s120, %s121
      %p133 = scmp.eq.s32.totalorder %s22, 3
      %p134 = por %p132, %p133
      %p136 = scmp.ne.s32.totalorder %s121, %s135
      %p137 = scmp.eq.s32.totalorder %s22, 0
      %p138 = por %p136, %p137
      %s140 = sadd.s32 %s139, 1
      %p143 = scmp.eq.s32.totalorder %s16, 3
      %p144 = scmp.ne.s32.totalorder %s139, %s141
      %p145 = scmp.eq.s32.totalorder %s16, 0
      %p146 = por %p144, %p145
      %p147 = scmp.ne.s32.totalorder %s139, %s141
      %p148 = scmp.eq.s32.totalorder %s21, 3
      %p149 = por %p147, %p148
      %p150 = scmp.ne.s32.totalorder %s141, %s142
      %p151 = scmp.eq.s32.totalorder %s21, 0
      %p152 = por %p150, %p151
      %p153 = scmp.ne.s32.totalorder %s141, %s142
      %p154 = scmp.eq.s32.totalorder %s22, 3
      %p155 = por %p153, %p154
      %p157 = scmp.ne.s32.totalorder %s142, %s156
      %p158 = scmp.eq.s32.totalorder %s22, 0
      %p159 = por %p157, %p158
      %s161 = sadd.s32 %s160, 1
      %p164 = scmp.eq.s32.totalorder %s16, 3
      %p165 = scmp.ne.s32.totalorder %s160, %s162
      %p166 = scmp.eq.s32.totalorder %s16, 0
      %p167 = por %p165, %p166
      %p168 = scmp.ne.s32.totalorder %s160, %s162
      %p169 = scmp.eq.s32.totalorder %s21, 3
      %p170 = por %p168, %p169
      %p171 = scmp.ne.s32.totalorder %s162, %s163
      %p172 = scmp.eq.s32.totalorder %s21, 0
      %p173 = por %p171, %p172
      %p174 = scmp.ne.s32.totalorder %s162, %s163
      %p175 = scmp.eq.s32.totalorder %s22, 3
      %p176 = por %p174, %p175
      %p178 = scmp.ne.s32.totalorder %s163, %s177
      %p179 = scmp.eq.s32.totalorder %s22, 0
      %p180 = por %p178, %p179
      %s181 = ssub.s32 %s16, %s23
      %p182 = scmp.eq.s32.totalorder %s181, 0
      %s184 = sadd.s32 %s183, 1
      %s185 = scalar_select %p182, %s183, %s184
      %p188 = pneg %p182
      %p189 = scmp.eq.s32.totalorder %s16, 3
      %p190 = por %p188, %p189
      %p191 = scmp.ne.s32.totalorder %s183, %s186
      %p192 = scmp.eq.s32.totalorder %s16, 0
      %p193 = por %p191, %p192
      %p194 = scmp.ne.s32.totalorder %s183, %s186
      %p195 = scmp.eq.s32.totalorder %s21, 3
      %p196 = por %p194, %p195
      %p197 = scmp.ne.s32.totalorder %s186, %s187
      %p198 = scmp.eq.s32.totalorder %s21, 0
      %p199 = por %p197, %p198
      %p200 = scmp.ne.s32.totalorder %s186, %s187
      %p201 = scmp.eq.s32.totalorder %s22, 3
      %p202 = por %p200, %p201
      %p204 = scmp.ne.s32.totalorder %s187, %s203
      %p205 = scmp.eq.s32.totalorder %s22, 0
      %p206 = por %p204, %p205
      %p207 = scmp.le.s32.totalorder 1, %s16
      %p208 = scmp.lt.s32.totalorder %s16, 5
      %p209 = pnand %p207, %p208
      %p210 = pneg %p209
      // Predicated region
      $region9: #{tpu_custom_call.1} parent=5 // pred_check
        _
      $region10: #{tpu_custom_call.1} parent=5 // pred_check_branch
        %212 = sbr.rel (%p209) target = $region12
      $region11: #{tpu_custom_call.1} parent=5 // pred_region
        %s213 = ssub.s32 %s16, 1
        // Predicated region
        $region13: #{tpu_custom_call.1} parent=11 // pred_check
          %p214 = pneg %p89
        $region14: #{tpu_custom_call.1} parent=11 // pred_check_branch
          %216 = sbr.rel (%p214) target = $region16
        $region15: #{tpu_custom_call.1} parent=11 // pred_region
          _
        $region16: #{tpu_custom_call.1} parent=11 // pred_fallthru
          _
        // Predicated region
        $region17: #{tpu_custom_call.1} parent=11 // pred_check
          %p217 = pneg %p110
        $region18: #{tpu_custom_call.1} parent=11 // pred_check_branch
          %219 = sbr.rel (%p217) target = $region20
        $region19: #{tpu_custom_call.1} parent=11 // pred_region
          _
        $region20: #{tpu_custom_call.1} parent=11 // pred_fallthru
          _
        // Predicated region
        $region21: #{tpu_custom_call.1} parent=11 // pred_check
          %p220 = pneg %p131
        $region22: #{tpu_custom_call.1} parent=11 // pred_check_branch
          %222 = sbr.rel (%p220) target = $region24
        $region23: #{tpu_custom_call.1} parent=11 // pred_region
          _
        $region24: #{tpu_custom_call.1} parent=11 // pred_fallthru
          _
        // Predicated region
        $region25: #{tpu_custom_call.1} parent=11 // pred_check
          %p223 = pneg %p152
        $region26: #{tpu_custom_call.1} parent=11 // pred_check_branch
          %225 = sbr.rel (%p223) target = $region28
        $region27: #{tpu_custom_call.1} parent=11 // pred_region
          _
        $region28: #{tpu_custom_call.1} parent=11 // pred_fallthru
          _
        // Predicated region
        $region29: #{tpu_custom_call.1} parent=11 // pred_check
          %p226 = pneg %p173
        $region30: #{tpu_custom_call.1} parent=11 // pred_check_branch
          %228 = sbr.rel (%p226) target = $region32
        $region31: #{tpu_custom_call.1} parent=11 // pred_region
          _
        $region32: #{tpu_custom_call.1} parent=11 // pred_fallthru
          _
      $region12: #{tpu_custom_call.1} parent=5 // pred_fallthru
        _
      %p229 = scmp.lt.s32.totalorder %s16, 4
      // Predicated region
      $region33: #{tpu_custom_call.1} parent=5 // pred_check
        %p230 = pneg %p229
      $region34: #{tpu_custom_call.1} parent=5 // pred_check_branch
        %232 = sbr.rel (%p230) target = $region36
      $region35: #{tpu_custom_call.1} parent=5 // pred_region
        // Predicated region
        $region37: #{tpu_custom_call.1} parent=35 // pred_check
          %p233 = pneg %p36
        $region38: #{tpu_custom_call.1} parent=35 // pred_check_branch
          %235 = sbr.rel (%p233) target = $region40
        $region39: #{tpu_custom_call.1} parent=35 // pred_region
          %p236 = scmp.lt.s32.totalorder %s16, 3
          %s237 = scalar_select %p236, %s16, 3
          %s238 = smul.addr %s237, 2
          %s239 = smul.addr %s238, 8
          %s240 = scalar_lea.vmem %s0, %s239
        $region40: #{tpu_custom_call.1} parent=35 // pred_fallthru
          _
        // Predicated region
        $region41: #{tpu_custom_call.1} parent=35 // pred_check
          %p241 = pneg %p62
        $region42: #{tpu_custom_call.1} parent=35 // pred_check_branch
          %243 = sbr.rel (%p241) target = $region44
        $region43: #{tpu_custom_call.1} parent=35 // pred_region
          %p244 = scmp.lt.s32.totalorder %s16, 3
          %s245 = scalar_select %p244, %s16, 3
          %s246 = smul.addr %s245, 2
          %s247 = smul.addr %s246, 8
          %s248 = scalar_lea.vmem %s1, %s247
        $region44: #{tpu_custom_call.1} parent=35 // pred_fallthru
          _
      $region36: #{tpu_custom_call.1} parent=5 // pred_fallthru
        _
      %p249 = scmp.le.s32.totalorder 1, %s16
      %p250 = scmp.lt.s32.totalorder %s16, 5
      %p251 = pnand %p249, %p250
      %p252 = pneg %p251
      // Predicated region
      $region45: #{tpu_custom_call.1} parent=5 // pred_check
        _
      $region46: #{tpu_custom_call.1} parent=5 // pred_check_branch
        %254 = sbr.rel (%p251) target = $region48
      $region47: #{tpu_custom_call.1} parent=5 // pred_region
        %s255 = ssub.s32 %s16, 1
        %p256 = scmp.lt.s32.totalorder %s21, 3
        %s257 = scalar_select %p256, %s21, 3
        %s258 = smul.addr %s257, 2
        %s259 = smul.addr %s258, 8
        %s260 = scalar_lea.vmem %s0, %s259
        %p261 = pneg %p42
        %p262 = pneg %p39
        %p263 = scmp.lt.s32.totalorder %s21, 3
        %s264 = scalar_select %p263, %s21, 3
        %s265 = smul.addr %s264, 2
        %s266 = smul.addr %s265, 8
        %s267 = scalar_lea.vmem %s1, %s266
        %p268 = pneg %p68
        %p269 = pneg %p65
        %p270 = pneg %p89
        %p271 = pneg %p86
        %p272 = pneg %p110
        %p273 = pneg %p107
        %p274 = pneg %p131
        %p275 = pneg %p128
        %p276 = pneg %p152
        %p277 = pneg %p149
        %p278 = pneg %p173
        %p279 = pneg %p170
        %p280 = pneg %p199
        %p281 = pneg %p196
        %s282 = sand.u32 %s186, 1
        %s283 = scalar_lea.sflag [#allocation3], %s282
        %s284 = sand.u32 %s186, 1
        %s285 = smul.addr %s284, 16
        %s286 = scalar_lea.vmem [#allocation2], %s285
        %p287 = scmp.lt.s32.totalorder %s21, 3
        %s288 = scalar_select %p287, %s21, 3
        %s289 = smul.addr %s288, 2
        %s290 = smul.addr %s289, 8
        %s291 = scalar_lea.vmem %s0, %s290
        %p292 = scmp.lt.s32.totalorder %s21, 3
        %s293 = scalar_select %p292, %s21, 3
        %s294 = smul.addr %s293, 2
        %s295 = smul.addr %s294, 8
        %s296 = scalar_lea.vmem %s1, %s295
        %v297 = vld [vmem:[%s291] sm:$0xff]
        %v298 = vld [vmem:[%s291 + $0x8] sm:$0xff]
        %v299 = vld [vmem:[%s296] sm:$0xff]
        %v300 = vld [vmem:[%s296 + $0x8] sm:$0xff]
        %v301 = vld [vmem:[%s2] sm:$0xff]
        %v302 = vld [vmem:[%s2 + $0x8] sm:$0xff]
        %v303 = vld [vmem:[%s2 + $0x10] sm:$0xff]
        %v304 = vld [vmem:[%s2 + $0x18] sm:$0xff]
        %v305 = vld [vmem:[%s2 + $0x20] sm:$0xff]
        %v306 = vld [vmem:[%s2 + $0x28] sm:$0xff]
        %v307 = vld [vmem:[%s2 + $0x30] sm:$0xff]
        %v308 = vld [vmem:[%s2 + $0x38] sm:$0xff]
        %v309 = vld [vmem:[%s2 + $0x40] sm:$0xff]
        %v310 = vld [vmem:[%s2 + $0x48] sm:$0xff]
        %v311 = vld [vmem:[%s2 + $0x50] sm:$0xff]
        %v312 = vld [vmem:[%s2 + $0x58] sm:$0xff]
        %v313 = vld [vmem:[%s2 + $0x60] sm:$0xff]
        %v314 = vld [vmem:[%s2 + $0x68] sm:$0xff]
        %v315 = vld [vmem:[%s2 + $0x70] sm:$0xff]
        %v316 = vld [vmem:[%s2 + $0x78] sm:$0xff]
        %v317 = vld [vmem:[%s2 + $0x80] sm:$0xff]
        %v318 = vld [vmem:[%s2 + $0x88] sm:$0xff]
        %v319 = vld [vmem:[%s2 + $0x90] sm:$0xff]
        %v320 = vld [vmem:[%s2 + $0x98] sm:$0xff]
        %v321 = vld [vmem:[%s2 + $0xa0] sm:$0xff]
        %v322 = vld [vmem:[%s2 + $0xa8] sm:$0xff]
        %v323 = vld [vmem:[%s2 + $0xb0] sm:$0xff]
        %v324 = vld [vmem:[%s2 + $0xb8] sm:$0xff]
        %v325 = vld [vmem:[%s2 + $0xc0] sm:$0xff]
        %v326 = vld [vmem:[%s2 + $0xc8] sm:$0xff]
        %v327 = vld [vmem:[%s2 + $0xd0] sm:$0xff]
        %v328 = vld [vmem:[%s2 + $0xd8] sm:$0xff]
        %v329 = vld [vmem:[%s2 + $0xe0] sm:$0xff]
        %v330 = vld [vmem:[%s2 + $0xe8] sm:$0xff]
        %v331 = vld [vmem:[%s2 + $0xf0] sm:$0xff]
        %v332 = vld [vmem:[%s2 + $0xf8] sm:$0xff]
        %v333 = vld [vmem:[%s2 + $0x100] sm:$0xff]
        %v334 = vld [vmem:[%s2 + $0x108] sm:$0xff]
        %v335 = vld [vmem:[%s2 + $0x110] sm:$0xff]
        %v336 = vld [vmem:[%s2 + $0x118] sm:$0xff]
        %v337 = vld [vmem:[%s2 + $0x120] sm:$0xff]
        %v338 = vld [vmem:[%s2 + $0x128] sm:$0xff]
        %v339 = vld [vmem:[%s2 + $0x130] sm:$0xff]
        %v340 = vld [vmem:[%s2 + $0x138] sm:$0xff]
        %v341 = vld [vmem:[%s2 + $0x140] sm:$0xff]
        %v342 = vld [vmem:[%s2 + $0x148] sm:$0xff]
        %v343 = vld [vmem:[%s2 + $0x150] sm:$0xff]
        %v344 = vld [vmem:[%s2 + $0x158] sm:$0xff]
        %v345 = vld [vmem:[%s2 + $0x160] sm:$0xff]
        %v346 = vld [vmem:[%s2 + $0x168] sm:$0xff]
        %v347 = vld [vmem:[%s2 + $0x170] sm:$0xff]
        %v348 = vld [vmem:[%s2 + $0x178] sm:$0xff]
        %v349 = vld [vmem:[%s2 + $0x180] sm:$0xff]
        %v350 = vld [vmem:[%s2 + $0x188] sm:$0xff]
        %v351 = vld [vmem:[%s2 + $0x190] sm:$0xff]
        %v352 = vld [vmem:[%s2 + $0x198] sm:$0xff]
        %v353 = vld [vmem:[%s2 + $0x1a0] sm:$0xff]
        %v354 = vld [vmem:[%s2 + $0x1a8] sm:$0xff]
        %v355 = vld [vmem:[%s2 + $0x1b0] sm:$0xff]
        %v356 = vld [vmem:[%s2 + $0x1b8] sm:$0xff]
        %v357 = vld [vmem:[%s2 + $0x1c0] sm:$0xff]
        %v358 = vld [vmem:[%s2 + $0x1c8] sm:$0xff]
        %v359 = vld [vmem:[%s2 + $0x1d0] sm:$0xff]
        %v360 = vld [vmem:[%s2 + $0x1d8] sm:$0xff]
        %v361 = vld [vmem:[%s2 + $0x1e0] sm:$0xff]
        %v362 = vld [vmem:[%s2 + $0x1e8] sm:$0xff]
        %v363 = vld [vmem:[%s2 + $0x1f0] sm:$0xff]
        %v364 = vld [vmem:[%s2 + $0x1f8] sm:$0xff]
        %v365 = vld [vmem:[%s2 + $0x200] sm:$0xff]
        %v366 = vld [vmem:[%s2 + $0x208] sm:$0xff]
        %v367 = vld [vmem:[%s2 + $0x210] sm:$0xff]
        %v368 = vld [vmem:[%s2 + $0x218] sm:$0xff]
        %v369 = vld [vmem:[%s2 + $0x220] sm:$0xff]
        %v370 = vld [vmem:[%s2 + $0x228] sm:$0xff]
        %v371 = vld [vmem:[%s2 + $0x230] sm:$0xff]
        %v372 = vld [vmem:[%s2 + $0x238] sm:$0xff]
        %v373 = vld [vmem:[%s2 + $0x240] sm:$0xff]
        %v374 = vld [vmem:[%s2 + $0x248] sm:$0xff]
        %v375 = vld [vmem:[%s2 + $0x250] sm:$0xff]
        %v376 = vld [vmem:[%s2 + $0x258] sm:$0xff]
        %v377 = vld [vmem:[%s2 + $0x260] sm:$0xff]
        %v378 = vld [vmem:[%s2 + $0x268] sm:$0xff]
        %v379 = vld [vmem:[%s2 + $0x270] sm:$0xff]
        %v380 = vld [vmem:[%s2 + $0x278] sm:$0xff]
        %v381 = vld [vmem:[%s2 + $0x280] sm:$0xff]
        %v382 = vld [vmem:[%s2 + $0x288] sm:$0xff]
        %v383 = vld [vmem:[%s2 + $0x290] sm:$0xff]
        %v384 = vld [vmem:[%s2 + $0x298] sm:$0xff]
        %v385 = vld [vmem:[%s2 + $0x2a0] sm:$0xff]
        %v386 = vld [vmem:[%s2 + $0x2a8] sm:$0xff]
        %v387 = vld [vmem:[%s2 + $0x2b0] sm:$0xff]
        %v388 = vld [vmem:[%s2 + $0x2b8] sm:$0xff]
        %v389 = vld [vmem:[%s2 + $0x2c0] sm:$0xff]
        %v390 = vld [vmem:[%s2 + $0x2c8] sm:$0xff]
        %v391 = vld [vmem:[%s2 + $0x2d0] sm:$0xff]
        %v392 = vld [vmem:[%s2 + $0x2d8] sm:$0xff]
        %v393 = vld [vmem:[%s2 + $0x2e0] sm:$0xff]
        %v394 = vld [vmem:[%s2 + $0x2e8] sm:$0xff]
        %v395 = vld [vmem:[%s2 + $0x2f0] sm:$0xff]
        %v396 = vld [vmem:[%s2 + $0x2f8] sm:$0xff]
        %v397 = vld [vmem:[%s2 + $0x300] sm:$0xff]
        %v398 = vld [vmem:[%s2 + $0x308] sm:$0xff]
        %v399 = vld [vmem:[%s2 + $0x310] sm:$0xff]
        %v400 = vld [vmem:[%s2 + $0x318] sm:$0xff]
        %v401 = vld [vmem:[%s2 + $0x320] sm:$0xff]
        %v402 = vld [vmem:[%s2 + $0x328] sm:$0xff]
        %v403 = vld [vmem:[%s2 + $0x330] sm:$0xff]
        %v404 = vld [vmem:[%s2 + $0x338] sm:$0xff]
        %v405 = vld [vmem:[%s2 + $0x340] sm:$0xff]
        %v406 = vld [vmem:[%s2 + $0x348] sm:$0xff]
        %v407 = vld [vmem:[%s2 + $0x350] sm:$0xff]
        %v408 = vld [vmem:[%s2 + $0x358] sm:$0xff]
        %v409 = vld [vmem:[%s2 + $0x360] sm:$0xff]
        %v410 = vld [vmem:[%s2 + $0x368] sm:$0xff]
        %v411 = vld [vmem:[%s2 + $0x370] sm:$0xff]
        %v412 = vld [vmem:[%s2 + $0x378] sm:$0xff]
        %v413 = vld [vmem:[%s2 + $0x380] sm:$0xff]
        %v414 = vld [vmem:[%s2 + $0x388] sm:$0xff]
        %v415 = vld [vmem:[%s2 + $0x390] sm:$0xff]
        %v416 = vld [vmem:[%s2 + $0x398] sm:$0xff]
        %v417 = vld [vmem:[%s2 + $0x3a0] sm:$0xff]
        %v418 = vld [vmem:[%s2 + $0x3a8] sm:$0xff]
        %v419 = vld [vmem:[%s2 + $0x3b0] sm:$0xff]
        %v420 = vld [vmem:[%s2 + $0x3b8] sm:$0xff]
        %v421 = vld [vmem:[%s2 + $0x3c0] sm:$0xff]
        %v422 = vld [vmem:[%s2 + $0x3c8] sm:$0xff]
        %v423 = vld [vmem:[%s2 + $0x3d0] sm:$0xff]
        %v424 = vld [vmem:[%s2 + $0x3d8] sm:$0xff]
        %v425 = vld [vmem:[%s2 + $0x3e0] sm:$0xff]
        %v426 = vld [vmem:[%s2 + $0x3e8] sm:$0xff]
        %v427 = vld [vmem:[%s2 + $0x3f0] sm:$0xff]
        %v428 = vld [vmem:[%s2 + $0x3f8] sm:$0xff]
        %v429 = vld [vmem:[%s2 + $0x400] sm:$0xff]
        %v430 = vld [vmem:[%s2 + $0x408] sm:$0xff]
        %v431 = vld [vmem:[%s2 + $0x410] sm:$0xff]
        %v432 = vld [vmem:[%s2 + $0x418] sm:$0xff]
        %v433 = vld [vmem:[%s2 + $0x420] sm:$0xff]
        %v434 = vld [vmem:[%s2 + $0x428] sm:$0xff]
        %v435 = vld [vmem:[%s2 + $0x430] sm:$0xff]
        %v436 = vld [vmem:[%s2 + $0x438] sm:$0xff]
        %v437 = vld [vmem:[%s2 + $0x440] sm:$0xff]
        %v438 = vld [vmem:[%s2 + $0x448] sm:$0xff]
        %v439 = vld [vmem:[%s2 + $0x450] sm:$0xff]
        %v440 = vld [vmem:[%s2 + $0x458] sm:$0xff]
        %v441 = vld [vmem:[%s2 + $0x460] sm:$0xff]
        %v442 = vld [vmem:[%s2 + $0x468] sm:$0xff]
        %v443 = vld [vmem:[%s2 + $0x470] sm:$0xff]
        %v444 = vld [vmem:[%s2 + $0x478] sm:$0xff]
        %v445 = vld [vmem:[%s2 + $0x480] sm:$0xff]
        %v446 = vld [vmem:[%s2 + $0x488] sm:$0xff]
        %v447 = vld [vmem:[%s2 + $0x490] sm:$0xff]
        %v448 = vld [vmem:[%s2 + $0x498] sm:$0xff]
        %v449 = vld [vmem:[%s2 + $0x4a0] sm:$0xff]
        %v450 = vld [vmem:[%s2 + $0x4a8] sm:$0xff]
        %v451 = vld [vmem:[%s2 + $0x4b0] sm:$0xff]
        %v452 = vld [vmem:[%s2 + $0x4b8] sm:$0xff]
        %v453 = vld [vmem:[%s2 + $0x4c0] sm:$0xff]
        %v454 = vld [vmem:[%s2 + $0x4c8] sm:$0xff]
        %v455 = vld [vmem:[%s2 + $0x4d0] sm:$0xff]
        %v456 = vld [vmem:[%s2 + $0x4d8] sm:$0xff]
        %v457 = vld [vmem:[%s2 + $0x4e0] sm:$0xff]
        %v458 = vld [vmem:[%s2 + $0x4e8] sm:$0xff]
        %v459 = vld [vmem:[%s2 + $0x4f0] sm:$0xff]
        %v460 = vld [vmem:[%s2 + $0x4f8] sm:$0xff]
        %v461 = vld [vmem:[%s2 + $0x500] sm:$0xff]
        %v462 = vld [vmem:[%s2 + $0x508] sm:$0xff]
        %v463 = vld [vmem:[%s2 + $0x510] sm:$0xff]
        %v464 = vld [vmem:[%s2 + $0x518] sm:$0xff]
        %v465 = vld [vmem:[%s2 + $0x520] sm:$0xff]
        %v466 = vld [vmem:[%s2 + $0x528] sm:$0xff]
        %v467 = vld [vmem:[%s2 + $0x530] sm:$0xff]
        %v468 = vld [vmem:[%s2 + $0x538] sm:$0xff]
        %v469 = vld [vmem:[%s2 + $0x540] sm:$0xff]
        %v470 = vld [vmem:[%s2 + $0x548] sm:$0xff]
        %v471 = vld [vmem:[%s2 + $0x550] sm:$0xff]
        %v472 = vld [vmem:[%s2 + $0x558] sm:$0xff]
        %v473 = vld [vmem:[%s2 + $0x560] sm:$0xff]
        %v474 = vld [vmem:[%s2 + $0x568] sm:$0xff]
        %v475 = vld [vmem:[%s2 + $0x570] sm:$0xff]
        %v476 = vld [vmem:[%s2 + $0x578] sm:$0xff]
        %v477 = vld [vmem:[%s2 + $0x580] sm:$0xff]
        %v478 = vld [vmem:[%s2 + $0x588] sm:$0xff]
        %v479 = vld [vmem:[%s2 + $0x590] sm:$0xff]
        %v480 = vld [vmem:[%s2 + $0x598] sm:$0xff]
        %v481 = vld [vmem:[%s2 + $0x5a0] sm:$0xff]
        %v482 = vld [vmem:[%s2 + $0x5a8] sm:$0xff]
        %v483 = vld [vmem:[%s2 + $0x5b0] sm:$0xff]
        %v484 = vld [vmem:[%s2 + $0x5b8] sm:$0xff]
        %v485 = vld [vmem:[%s2 + $0x5c0] sm:$0xff]
        %v486 = vld [vmem:[%s2 + $0x5c8] sm:$0xff]
        %v487 = vld [vmem:[%s2 + $0x5d0] sm:$0xff]
        %v488 = vld [vmem:[%s2 + $0x5d8] sm:$0xff]
        %v489 = vld [vmem:[%s2 + $0x5e0] sm:$0xff]
        %v490 = vld [vmem:[%s2 + $0x5e8] sm:$0xff]
        %v491 = vld [vmem:[%s2 + $0x5f0] sm:$0xff]
        %v492 = vld [vmem:[%s2 + $0x5f8] sm:$0xff]
        %493 = vmatprep.subr.mxu0 0.0
        %494 = vmatpush1.msra.mxu0 %v301
        %495 = vmatprep.subr.mxu0 0.0
        %496 = vmatpush1.msra.mxu0 %v302
        %497 = vmatprep.subr.mxu0 0.0
        %498 = vmatpush1.msra.mxu0 %v303
        %499 = vmatprep.subr.mxu0 0.0
        %500 = vmatpush1.msra.mxu0 %v304
        %501 = vmatprep.subr.mxu0 0.0
        %502 = vmatpush1.msra.mxu0 %v305
        %503 = vmatprep.subr.mxu0 0.0
        %504 = vmatpush1.msra.mxu0 %v306
        %505 = vmatprep.subr.mxu0 0.0
        %506 = vmatpush1.msra.mxu0 %v307
        %507 = vmatprep.subr.mxu0 0.0
        %508 = vmatpush1.msra.mxu0 %v308
        %509 = vmatprep.subr.mxu0 0.0
        %510 = vmatpush1.msra.mxu0 %v309
        %511 = vmatprep.subr.mxu0 0.0
        %512 = vmatpush1.msra.mxu0 %v310
        %513 = vmatprep.subr.mxu0 0.0
        %514 = vmatpush1.msra.mxu0 %v311
        %515 = vmatprep.subr.mxu0 0.0
        %516 = vmatpush1.msra.mxu0 %v312
        %517 = vmatprep.subr.mxu0 0.0
        %518 = vmatpush1.msra.mxu0 %v313
        %519 = vmatprep.subr.mxu0 0.0
        %520 = vmatpush1.msra.mxu0 %v314
        %521 = vmatprep.subr.mxu0 0.0
        %522 = vmatpush1.msra.mxu0 %v315
        %523 = vmatprep.subr.mxu0 0.0
        %524 = vmatpush1.msra.mxu0 %v316
        %525 = vmatprep.subr.mxu0 0.0
        %526 = vmatpush1.msra.mxu0 0.0
        %527 = vmatprep.subr.mxu0 0.0
        %528 = vmatpush1.msra.mxu0 0.0
        %529 = vmatprep.subr.mxu0 0.0
        %530 = vmatpush1.msra.mxu0 0.0
        %531 = vmatprep.subr.mxu0 0.0
        %532 = vmatpush1.msra.mxu0 0.0
        %533 = vmatprep.subr.mxu0 0.0
        %534 = vmatpush1.msra.mxu0 0.0
        %535 = vmatprep.subr.mxu0 0.0
        %536 = vmatpush1.msra.mxu0 0.0
        %537 = vmatprep.subr.mxu0 0.0
        %538 = vmatpush1.msra.mxu0 0.0
        %539 = vmatprep.subr.mxu0 0.0
        %540 = vmatpush1.msra.mxu0 0.0
        %541 = vmatprep.subr.mxu0 0.0
        %542 = vmatpush1.msra.mxu0 0.0
        %543 = vmatprep.subr.mxu0 0.0
        %544 = vmatpush1.msra.mxu0 0.0
        %545 = vmatprep.subr.mxu0 0.0
        %546 = vmatpush1.msra.mxu0 0.0
        %547 = vmatprep.subr.mxu0 0.0
        %548 = vmatpush1.msra.mxu0 0.0
        %549 = vmatprep.subr.mxu0 0.0
        %550 = vmatpush1.msra.mxu0 0.0
        %551 = vmatprep.subr.mxu0 0.0
        %552 = vmatpush1.msra.mxu0 0.0
        %553 = vmatprep.subr.mxu0 0.0
        %554 = vmatpush1.msra.mxu0 0.0
        %555 = vmatprep.subr.mxu0 0.0
        %556 = vmatpush1.msra.mxu0 0.0
        %557 = vmatprep.mubr.f32.mxu0 0.0
        %558 = vmatmul.mubr.f32.gmra.mrb[0].mxu0 %v297
        %v559 = vpop.f32.mrb[0].mxu0
        %v560 = vadd.f32 0.0, %v559
        %v561 = vpop.f32.mrb[0].mxu0
        %562 = vmatprep.mubr.f32.mxu0 0.0
        %563 = vmatmul.mubr.f32.gmra.mrb[0].mxu0 %v298
        %v564 = vpop.f32.mrb[0].mxu0
        %v565 = vadd.f32 0.0, %v564
        %v566 = vpop.f32.mrb[0].mxu0
        %567 = vdwg.mxu0
        %568 = vmatprep.subr.mxu0 0.0
        %569 = vmatpush1.msra.mxu0 %v317
        %570 = vmatprep.subr.mxu0 0.0
        %571 = vmatpush1.msra.mxu0 %v318
        %572 = vmatprep.subr.mxu0 0.0
        %573 = vmatpush1.msra.mxu0 %v319
        %574 = vmatprep.subr.mxu0 0.0
        %575 = vmatpush1.msra.mxu0 %v320
        %576 = vmatprep.subr.mxu0 0.0
        %577 = vmatpush1.msra.mxu0 %v321
        %578 = vmatprep.subr.mxu0 0.0
        %579 = vmatpush1.msra.mxu0 %v322
        %580 = vmatprep.subr.mxu0 0.0
        %581 = vmatpush1.msra.mxu0 %v323
        %582 = vmatprep.subr.mxu0 0.0
        %583 = vmatpush1.msra.mxu0 %v324
        %584 = vmatprep.subr.mxu0 0.0
        %585 = vmatpush1.msra.mxu0 %v325
        %586 = vmatprep.subr.mxu0 0.0
        %587 = vmatpush1.msra.mxu0 %v326
        %588 = vmatprep.subr.mxu0 0.0
        %589 = vmatpush1.msra.mxu0 %v327
        %590 = vmatprep.subr.mxu0 0.0
        %591 = vmatpush1.msra.mxu0 %v328
        %592 = vmatprep.subr.mxu0 0.0
        %593 = vmatpush1.msra.mxu0 %v329
        %594 = vmatprep.subr.mxu0 0.0
        %595 = vmatpush1.msra.mxu0 %v330
        %596 = vmatprep.subr.mxu0 0.0
        %597 = vmatpush1.msra.mxu0 %v331
        %598 = vmatprep.subr.mxu0 0.0
        %599 = vmatpush1.msra.mxu0 %v332
        %600 = vmatprep.subr.mxu0 0.0
        %601 = vmatpush1.msra.mxu0 0.0
        %602 = vmatprep.subr.mxu0 0.0
        %603 = vmatpush1.msra.mxu0 0.0
        %604 = vmatprep.subr.mxu0 0.0
        %605 = vmatpush1.msra.mxu0 0.0
        %606 = vmatprep.subr.mxu0 0.0
        %607 = vmatpush1.msra.mxu0 0.0
        %608 = vmatprep.subr.mxu0 0.0
        %609 = vmatpush1.msra.mxu0 0.0
        %610 = vmatprep.subr.mxu0 0.0
        %611 = vmatpush1.msra.mxu0 0.0
        %612 = vmatprep.subr.mxu0 0.0
        %613 = vmatpush1.msra.mxu0 0.0
        %614 = vmatprep.subr.mxu0 0.0
        %615 = vmatpush1.msra.mxu0 0.0
        %616 = vmatprep.subr.mxu0 0.0
        %617 = vmatpush1.msra.mxu0 0.0
        %618 = vmatprep.subr.mxu0 0.0
        %619 = vmatpush1.msra.mxu0 0.0
        %620 = vmatprep.subr.mxu0 0.0
        %621 = vmatpush1.msra.mxu0 0.0
        %622 = vmatprep.subr.mxu0 0.0
        %623 = vmatpush1.msra.mxu0 0.0
        %624 = vmatprep.subr.mxu0 0.0
        %625 = vmatpush1.msra.mxu0 0.0
        %626 = vmatprep.subr.mxu0 0.0
        %627 = vmatpush1.msra.mxu0 0.0
        %628 = vmatprep.subr.mxu0 0.0
        %629 = vmatpush1.msra.mxu0 0.0
        %630 = vmatprep.subr.mxu0 0.0
        %631 = vmatpush1.msra.mxu0 0.0
        %632 = vmatprep.mubr.f32.mxu0 0.0
        %633 = vmatmul.mubr.f32.gmra.mrb[0].mxu0 %v297
        %v634 = vpop.f32.mrb[0].mxu0
        %v635 = vadd.f32 0.0, %v634
        %v636 = vpop.f32.mrb[0].mxu0
        %637 = vmatprep.mubr.f32.mxu0 0.0
        %638 = vmatmul.mubr.f32.gmra.mrb[0].mxu0 %v298
        %v639 = vpop.f32.mrb[0].mxu0
        %v640 = vadd.f32 0.0, %v639
        %v641 = vpop.f32.mrb[0].mxu0
        %642 = vdwg.mxu0
        %643 = vmatprep.subr.mxu0 0.0
        %644 = vmatpush1.msra.mxu0 %v333
        %645 = vmatprep.subr.mxu0 0.0
        %646 = vmatpush1.msra.mxu0 %v334
        %647 = vmatprep.subr.mxu0 0.0
        %648 = vmatpush1.msra.mxu0 %v335
        %649 = vmatprep.subr.mxu0 0.0
        %650 = vmatpush1.msra.mxu0 %v336
        %651 = vmatprep.subr.mxu0 0.0
        %652 = vmatpush1.msra.mxu0 %v337
        %653 = vmatprep.subr.mxu0 0.0
        %654 = vmatpush1.msra.mxu0 %v338
        %655 = vmatprep.subr.mxu0 0.0
        %656 = vmatpush1.msra.mxu0 %v339
        %657 = vmatprep.subr.mxu0 0.0
        %658 = vmatpush1.msra.mxu0 %v340
        %659 = vmatprep.subr.mxu0 0.0
        %660 = vmatpush1.msra.mxu0 %v341
        %661 = vmatprep.subr.mxu0 0.0
        %662 = vmatpush1.msra.mxu0 %v342
        %663 = vmatprep.subr.mxu0 0.0
        %664 = vmatpush1.msra.mxu0 %v343
        %665 = vmatprep.subr.mxu0 0.0
        %666 = vmatpush1.msra.mxu0 %v344
        %667 = vmatprep.subr.mxu0 0.0
        %668 = vmatpush1.msra.mxu0 %v345
        %669 = vmatprep.subr.mxu0 0.0
        %670 = vmatpush1.msra.mxu0 %v346
        %671 = vmatprep.subr.mxu0 0.0
        %672 = vmatpush1.msra.mxu0 %v347
        %673 = vmatprep.subr.mxu0 0.0
        %674 = vmatpush1.msra.mxu0 %v348
        %675 = vmatprep.subr.mxu0 0.0
        %676 = vmatpush1.msra.mxu0 0.0
        %677 = vmatprep.subr.mxu0 0.0
        %678 = vmatpush1.msra.mxu0 0.0
        %679 = vmatprep.subr.mxu0 0.0
        %680 = vmatpush1.msra.mxu0 0.0
        %681 = vmatprep.subr.mxu0 0.0
        %682 = vmatpush1.msra.mxu0 0.0
        %683 = vmatprep.subr.mxu0 0.0
        %684 = vmatpush1.msra.mxu0 0.0
        %685 = vmatprep.subr.mxu0 0.0
        %686 = vmatpush1.msra.mxu0 0.0
        %687 = vmatprep.subr.mxu0 0.0
        %688 = vmatpush1.msra.mxu0 0.0
        %689 = vmatprep.subr.mxu0 0.0
        %690 = vmatpush1.msra.mxu0 0.0
        %691 = vmatprep.subr.mxu0 0.0
        %692 = vmatpush1.msra.mxu0 0.0
        %693 = vmatprep.subr.mxu0 0.0
        %694 = vmatpush1.msra.mxu0 0.0
        %695 = vmatprep.subr.mxu0 0.0
        %696 = vmatpush1.msra.mxu0 0.0
        %697 = vmatprep.subr.mxu0 0.0
        %698 = vmatpush1.msra.mxu0 0.0
        %699 = vmatprep.subr.mxu0 0.0
        %700 = vmatpush1.msra.mxu0 0.0
        %701 = vmatprep.subr.mxu0 0.0
        %702 = vmatpush1.msra.mxu0 0.0
        %703 = vmatprep.subr.mxu0 0.0
        %704 = vmatpush1.msra.mxu0 0.0
        %705 = vmatprep.subr.mxu0 0.0
        %706 = vmatpush1.msra.mxu0 0.0
        %707 = vmatprep.mubr.f32.mxu0 0.0
        %708 = vmatmul.mubr.f32.gmra.mrb[0].mxu0 %v297
        %v709 = vpop.f32.mrb[0].mxu0
        %v710 = vadd.f32 0.0, %v709
        %v711 = vpop.f32.mrb[0].mxu0
        %712 = vmatprep.mubr.f32.mxu0 0.0
        %713 = vmatmul.mubr.f32.gmra.mrb[0].mxu0 %v298
        %v714 = vpop.f32.mrb[0].mxu0
        %v715 = vadd.f32 0.0, %v714
        %v716 = vpop.f32.mrb[0].mxu0
        %717 = vdwg.mxu0
        %718 = vmatprep.subr.mxu0 0.0
        %719 = vmatpush1.msra.mxu0 %v349
        %720 = vmatprep.subr.mxu0 0.0
        %721 = vmatpush1.msra.mxu0 %v350
        %722 = vmatprep.subr.mxu0 0.0
        %723 = vmatpush1.msra.mxu0 %v351
        %724 = vmatprep.subr.mxu0 0.0
        %725 = vmatpush1.msra.mxu0 %v352
        %726 = vmatprep.subr.mxu0 0.0
        %727 = vmatpush1.msra.mxu0 %v353
        %728 = vmatprep.subr.mxu0 0.0
        %729 = vmatpush1.msra.mxu0 %v354
        %730 = vmatprep.subr.mxu0 0.0
        %731 = vmatpush1.msra.mxu0 %v355
        %732 = vmatprep.subr.mxu0 0.0
        %733 = vmatpush1.msra.mxu0 %v356
        %734 = vmatprep.subr.mxu0 0.0
        %735 = vmatpush1.msra.mxu0 %v357
        %736 = vmatprep.subr.mxu0 0.0
        %737 = vmatpush1.msra.mxu0 %v358
        %738 = vmatprep.subr.mxu0 0.0
        %739 = vmatpush1.msra.mxu0 %v359
        %740 = vmatprep.subr.mxu0 0.0
        %741 = vmatpush1.msra.mxu0 %v360
        %742 = vmatprep.subr.mxu0 0.0
        %743 = vmatpush1.msra.mxu0 %v361
        %744 = vmatprep.subr.mxu0 0.0
        %745 = vmatpush1.msra.mxu0 %v362
        %746 = vmatprep.subr.mxu0 0.0
        %747 = vmatpush1.msra.mxu0 %v363
        %748 = vmatprep.subr.mxu0 0.0
        %749 = vmatpush1.msra.mxu0 %v364
        %750 = vmatprep.subr.mxu0 0.0
        %751 = vmatpush1.msra.mxu0 0.0
        %752 = vmatprep.subr.mxu0 0.0
        %753 = vmatpush1.msra.mxu0 0.0
        %754 = vmatprep.subr.mxu0 0.0
        %755 = vmatpush1.msra.mxu0 0.0
        %756 = vmatprep.subr.mxu0 0.0
        %757 = vmatpush1.msra.mxu0 0.0
        %758 = vmatprep.subr.mxu0 0.0
        %759 = vmatpush1.msra.mxu0 0.0
        %760 = vmatprep.subr.mxu0 0.0
        %761 = vmatpush1.msra.mxu0 0.0
        %762 = vmatprep.subr.mxu0 0.0
        %763 = vmatpush1.msra.mxu0 0.0
        %764 = vmatprep.subr.mxu0 0.0
        %765 = vmatpush1.msra.mxu0 0.0
        %766 = vmatprep.subr.mxu0 0.0
        %767 = vmatpush1.msra.mxu0 0.0
        %768 = vmatprep.subr.mxu0 0.0
        %769 = vmatpush1.msra.mxu0 0.0
        %770 = vmatprep.subr.mxu0 0.0
        %771 = vmatpush1.msra.mxu0 0.0
        %772 = vmatprep.subr.mxu0 0.0
        %773 = vmatpush1.msra.mxu0 0.0
        %774 = vmatprep.subr.mxu0 0.0
        %775 = vmatpush1.msra.mxu0 0.0
        %776 = vmatprep.subr.mxu0 0.0
        %777 = vmatpush1.msra.mxu0 0.0
        %778 = vmatprep.subr.mxu0 0.0
        %779 = vmatpush1.msra.mxu0 0.0
        %780 = vmatprep.subr.mxu0 0.0
        %781 = vmatpush1.msra.mxu0 0.0
        %782 = vmatprep.mubr.f32.mxu0 0.0
        %783 = vmatmul.mubr.f32.gmra.mrb[0].mxu0 %v297
        %v784 = vpop.f32.mrb[0].mxu0
        %v785 = vadd.f32 0.0, %v784
        %v786 = vpop.f32.mrb[0].mxu0
        %787 = vmatprep.mubr.f32.mxu0 0.0
        %788 = vmatmul.mubr.f32.gmra.mrb[0].mxu0 %v298
        %v789 = vpop.f32.mrb[0].mxu0
        %v790 = vadd.f32 0.0, %v789
        %v791 = vpop.f32.mrb[0].mxu0
        %792 = vdwg.mxu0
        %793 = vmatprep.subr.mxu0 0.0
        %794 = vmatpush1.msra.mxu0 %v365
        %795 = vmatprep.subr.mxu0 0.0
        %796 = vmatpush1.msra.mxu0 %v366
        %797 = vmatprep.subr.mxu0 0.0
        %798 = vmatpush1.msra.mxu0 %v367
        %799 = vmatprep.subr.mxu0 0.0
        %800 = vmatpush1.msra.mxu0 %v368
        %801 = vmatprep.subr.mxu0 0.0
        %802 = vmatpush1.msra.mxu0 %v369
        %803 = vmatprep.subr.mxu0 0.0
        %804 = vmatpush1.msra.mxu0 %v370
        %805 = vmatprep.subr.mxu0 0.0
        %806 = vmatpush1.msra.mxu0 %v371
        %807 = vmatprep.subr.mxu0 0.0
        %808 = vmatpush1.msra.mxu0 %v372
        %809 = vmatprep.subr.mxu0 0.0
        %810 = vmatpush1.msra.mxu0 %v373
        %811 = vmatprep.subr.mxu0 0.0
        %812 = vmatpush1.msra.mxu0 %v374
        %813 = vmatprep.subr.mxu0 0.0
        %814 = vmatpush1.msra.mxu0 %v375
        %815 = vmatprep.subr.mxu0 0.0
        %816 = vmatpush1.msra.mxu0 %v376
        %817 = vmatprep.subr.mxu0 0.0
        %818 = vmatpush1.msra.mxu0 %v377
        %819 = vmatprep.subr.mxu0 0.0
        %820 = vmatpush1.msra.mxu0 %v378
        %821 = vmatprep.subr.mxu0 0.0
        %822 = vmatpush1.msra.mxu0 %v379
        %823 = vmatprep.subr.mxu0 0.0
        %824 = vmatpush1.msra.mxu0 %v380
        %825 = vmatprep.subr.mxu0 0.0
        %826 = vmatpush1.msra.mxu0 0.0
        %827 = vmatprep.subr.mxu0 0.0
        %828 = vmatpush1.msra.mxu0 0.0
        %829 = vmatprep.subr.mxu0 0.0
        %830 = vmatpush1.msra.mxu0 0.0
        %831 = vmatprep.subr.mxu0 0.0
        %832 = vmatpush1.msra.mxu0 0.0
        %833 = vmatprep.subr.mxu0 0.0
        %834 = vmatpush1.msra.mxu0 0.0
        %835 = vmatprep.subr.mxu0 0.0
        %836 = vmatpush1.msra.mxu0 0.0
        %837 = vmatprep.subr.mxu0 0.0
        %838 = vmatpush1.msra.mxu0 0.0
        %839 = vmatprep.subr.mxu0 0.0
        %840 = vmatpush1.msra.mxu0 0.0
        %841 = vmatprep.subr.mxu0 0.0
        %842 = vmatpush1.msra.mxu0 0.0
        %843 = vmatprep.subr.mxu0 0.0
        %844 = vmatpush1.msra.mxu0 0.0
        %845 = vmatprep.subr.mxu0 0.0
        %846 = vmatpush1.msra.mxu0 0.0
        %847 = vmatprep.subr.mxu0 0.0
        %848 = vmatpush1.msra.mxu0 0.0
        %849 = vmatprep.subr.mxu0 0.0
        %850 = vmatpush1.msra.mxu0 0.0
        %851 = vmatprep.subr.mxu0 0.0
        %852 = vmatpush1.msra.mxu0 0.0
        %853 = vmatprep.subr.mxu0 0.0
        %854 = vmatpush1.msra.mxu0 0.0
        %855 = vmatprep.subr.mxu0 0.0
        %856 = vmatpush1.msra.mxu0 0.0
        %857 = vmatprep.mubr.f32.mxu0 0.0
        %858 = vmatmul.mubr.f32.gmra.mrb[0].mxu0 %v297
        %v859 = vpop.f32.mrb[0].mxu0
        %v860 = vadd.f32 0.0, %v859
        %v861 = vpop.f32.mrb[0].mxu0
        %862 = vmatprep.mubr.f32.mxu0 0.0
        %863 = vmatmul.mubr.f32.gmra.mrb[0].mxu0 %v298
        %v864 = vpop.f32.mrb[0].mxu0
        %v865 = vadd.f32 0.0, %v864
        %v866 = vpop.f32.mrb[0].mxu0
        %867 = vdwg.mxu0
        %868 = vmatprep.subr.mxu0 0.0
        %869 = vmatpush1.msra.mxu0 %v381
        %870 = vmatprep.subr.mxu0 0.0
        %871 = vmatpush1.msra.mxu0 %v382
        %872 = vmatprep.subr.mxu0 0.0
        %873 = vmatpush1.msra.mxu0 %v383
        %874 = vmatprep.subr.mxu0 0.0
        %875 = vmatpush1.msra.mxu0 %v384
        %876 = vmatprep.subr.mxu0 0.0
        %877 = vmatpush1.msra.mxu0 %v385
        %878 = vmatprep.subr.mxu0 0.0
        %879 = vmatpush1.msra.mxu0 %v386
        %880 = vmatprep.subr.mxu0 0.0
        %881 = vmatpush1.msra.mxu0 %v387
        %882 = vmatprep.subr.mxu0 0.0
        %883 = vmatpush1.msra.mxu0 %v388
        %884 = vmatprep.subr.mxu0 0.0
        %885 = vmatpush1.msra.mxu0 %v389
        %886 = vmatprep.subr.mxu0 0.0
        %887 = vmatpush1.msra.mxu0 %v390
        %888 = vmatprep.subr.mxu0 0.0
        %889 = vmatpush1.msra.mxu0 %v391
        %890 = vmatprep.subr.mxu0 0.0
        %891 = vmatpush1.msra.mxu0 %v392
        %892 = vmatprep.subr.mxu0 0.0
        %893 = vmatpush1.msra.mxu0 %v393
        %894 = vmatprep.subr.mxu0 0.0
        %895 = vmatpush1.msra.mxu0 %v394
        %896 = vmatprep.subr.mxu0 0.0
        %897 = vmatpush1.msra.mxu0 %v395
        %898 = vmatprep.subr.mxu0 0.0
        %899 = vmatpush1.msra.mxu0 %v396
        %900 = vmatprep.subr.mxu0 0.0
        %901 = vmatpush1.msra.mxu0 0.0
        %902 = vmatprep.subr.mxu0 0.0
        %903 = vmatpush1.msra.mxu0 0.0
        %904 = vmatprep.subr.mxu0 0.0
        %905 = vmatpush1.msra.mxu0 0.0
        %906 = vmatprep.subr.mxu0 0.0
        %907 = vmatpush1.msra.mxu0 0.0
        %908 = vmatprep.subr.mxu0 0.0
        %909 = vmatpush1.msra.mxu0 0.0
        %910 = vmatprep.subr.mxu0 0.0
        %911 = vmatpush1.msra.mxu0 0.0
        %912 = vmatprep.subr.mxu0 0.0
        %913 = vmatpush1.msra.mxu0 0.0
        %914 = vmatprep.subr.mxu0 0.0
        %915 = vmatpush1.msra.mxu0 0.0
        %916 = vmatprep.subr.mxu0 0.0
        %917 = vmatpush1.msra.mxu0 0.0
        %918 = vmatprep.subr.mxu0 0.0
        %919 = vmatpush1.msra.mxu0 0.0
        %920 = vmatprep.subr.mxu0 0.0
        %921 = vmatpush1.msra.mxu0 0.0
        %922 = vmatprep.subr.mxu0 0.0
        %923 = vmatpush1.msra.mxu0 0.0
        %924 = vmatprep.subr.mxu0 0.0
        %925 = vmatpush1.msra.mxu0 0.0
        %926 = vmatprep.subr.mxu0 0.0
        %927 = vmatpush1.msra.mxu0 0.0
        %928 = vmatprep.subr.mxu0 0.0
        %929 = vmatpush1.msra.mxu0 0.0
        %930 = vmatprep.subr.mxu0 0.0
        %931 = vmatpush1.msra.mxu0 0.0
        %932 = vmatprep.mubr.f32.mxu0 0.0
        %933 = vmatmul.mubr.f32.gmra.mrb[0].mxu0 %v297
        %v934 = vpop.f32.mrb[0].mxu0
        %v935 = vadd.f32 0.0, %v934
        %v936 = vpop.f32.mrb[0].mxu0
        %937 = vmatprep.mubr.f32.mxu0 0.0
        %938 = vmatmul.mubr.f32.gmra.mrb[0].mxu0 %v298
        %v939 = vpop.f32.mrb[0].mxu0
        %v940 = vadd.f32 0.0, %v939
        %v941 = vpop.f32.mrb[0].mxu0
        %942 = vdwg.mxu0
        %943 = vmatprep.subr.mxu0 0.0
        %944 = vmatpush1.msra.mxu0 %v397
        %945 = vmatprep.subr.mxu0 0.0
        %946 = vmatpush1.msra.mxu0 %v398
        %947 = vmatprep.subr.mxu0 0.0
        %948 = vmatpush1.msra.mxu0 %v399
        %949 = vmatprep.subr.mxu0 0.0
        %950 = vmatpush1.msra.mxu0 %v400
        %951 = vmatprep.subr.mxu0 0.0
        %952 = vmatpush1.msra.mxu0 %v401
        %953 = vmatprep.subr.mxu0 0.0
        %954 = vmatpush1.msra.mxu0 %v402
        %955 = vmatprep.subr.mxu0 0.0
        %956 = vmatpush1.msra.mxu0 %v403
        %957 = vmatprep.subr.mxu0 0.0
        %958 = vmatpush1.msra.mxu0 %v404
        %959 = vmatprep.subr.mxu0 0.0
        %960 = vmatpush1.msra.mxu0 %v405
        %961 = vmatprep.subr.mxu0 0.0
        %962 = vmatpush1.msra.mxu0 %v406
        %963 = vmatprep.subr.mxu0 0.0
        %964 = vmatpush1.msra.mxu0 %v407
        %965 = vmatprep.subr.mxu0 0.0
        %966 = vmatpush1.msra.mxu0 %v408
        %967 = vmatprep.subr.mxu0 0.0
        %968 = vmatpush1.msra.mxu0 %v409
        %969 = vmatprep.subr.mxu0 0.0
        %970 = vmatpush1.msra.mxu0 %v410
        %971 = vmatprep.subr.mxu0 0.0
        %972 = vmatpush1.msra.mxu0 %v411
        %973 = vmatprep.subr.mxu0 0.0
        %974 = vmatpush1.msra.mxu0 %v412
        %975 = vmatprep.subr.mxu0 0.0
        %976 = vmatpush1.msra.mxu0 0.0
        %977 = vmatprep.subr.mxu0 0.0
        %978 = vmatpush1.msra.mxu0 0.0
        %979 = vmatprep.subr.mxu0 0.0
        %980 = vmatpush1.msra.mxu0 0.0
        %981 = vmatprep.subr.mxu0 0.0
        %982 = vmatpush1.msra.mxu0 0.0
        %983 = vmatprep.subr.mxu0 0.0
        %984 = vmatpush1.msra.mxu0 0.0
        %985 = vmatprep.subr.mxu0 0.0
        %986 = vmatpush1.msra.mxu0 0.0
        %987 = vmatprep.subr.mxu0 0.0
        %988 = vmatpush1.msra.mxu0 0.0
        %989 = vmatprep.subr.mxu0 0.0
        %990 = vmatpush1.msra.mxu0 0.0
        %991 = vmatprep.subr.mxu0 0.0
        %992 = vmatpush1.msra.mxu0 0.0
        %993 = vmatprep.subr.mxu0 0.0
        %994 = vmatpush1.msra.mxu0 0.0
        %995 = vmatprep.subr.mxu0 0.0
        %996 = vmatpush1.msra.mxu0 0.0
        %997 = vmatprep.subr.mxu0 0.0
        %998 = vmatpush1.msra.mxu0 0.0
        %999 = vmatprep.subr.mxu0 0.0
        %1000 = vmatpush1.msra.mxu0 0.0
        %1001 = vmatprep.subr.mxu0 0.0
        %1002 = vmatpush1.msra.mxu0 0.0
        %1003 = vmatprep.subr.mxu0 0.0
        %1004 = vmatpush1.msra.mxu0 0.0
        %1005 = vmatprep.subr.mxu0 0.0
        %1006 = vmatpush1.msra.mxu0 0.0
        %1007 = vmatprep.mubr.f32.mxu0 0.0
        %1008 = vmatmul.mubr.f32.gmra.mrb[0].mxu0 %v297
        %v1009 = vpop.f32.mrb[0].mxu0
        %v1010 = vadd.f32 0.0, %v1009
        %v1011 = vpop.f32.mrb[0].mxu0
        %1012 = vmatprep.mubr.f32.mxu0 0.0
        %1013 = vmatmul.mubr.f32.gmra.mrb[0].mxu0 %v298
        %v1014 = vpop.f32.mrb[0].mxu0
        %v1015 = vadd.f32 0.0, %v1014
        %v1016 = vpop.f32.mrb[0].mxu0
        %1017 = vdwg.mxu0
        %1018 = vmatprep.subr.mxu0 0.0
        %1019 = vmatpush1.msra.mxu0 %v413
        %1020 = vmatprep.subr.mxu0 0.0
        %1021 = vmatpush1.msra.mxu0 %v414
        %1022 = vmatprep.subr.mxu0 0.0
        %1023 = vmatpush1.msra.mxu0 %v415
        %1024 = vmatprep.subr.mxu0 0.0
        %1025 = vmatpush1.msra.mxu0 %v416
        %1026 = vmatprep.subr.mxu0 0.0
        %1027 = vmatpush1.msra.mxu0 %v417
        %1028 = vmatprep.subr.mxu0 0.0
        %1029 = vmatpush1.msra.mxu0 %v418
        %1030 = vmatprep.subr.mxu0 0.0
        %1031 = vmatpush1.msra.mxu0 %v419
        %1032 = vmatprep.subr.mxu0 0.0
        %1033 = vmatpush1.msra.mxu0 %v420
        %1034 = vmatprep.subr.mxu0 0.0
        %1035 = vmatpush1.msra.mxu0 %v421
        %1036 = vmatprep.subr.mxu0 0.0
        %1037 = vmatpush1.msra.mxu0 %v422
        %1038 = vmatprep.subr.mxu0 0.0
        %1039 = vmatpush1.msra.mxu0 %v423
        %1040 = vmatprep.subr.mxu0 0.0
        %1041 = vmatpush1.msra.mxu0 %v424
        %1042 = vmatprep.subr.mxu0 0.0
        %1043 = vmatpush1.msra.mxu0 %v425
        %1044 = vmatprep.subr.mxu0 0.0
        %1045 = vmatpush1.msra.mxu0 %v426
        %1046 = vmatprep.subr.mxu0 0.0
        %1047 = vmatpush1.msra.mxu0 %v427
        %1048 = vmatprep.subr.mxu0 0.0
        %1049 = vmatpush1.msra.mxu0 %v428
        %1050 = vmatprep.subr.mxu0 0.0
        %1051 = vmatpush1.msra.mxu0 0.0
        %1052 = vmatprep.subr.mxu0 0.0
        %1053 = vmatpush1.msra.mxu0 0.0
        %1054 = vmatprep.subr.mxu0 0.0
        %1055 = vmatpush1.msra.mxu0 0.0
        %1056 = vmatprep.subr.mxu0 0.0
        %1057 = vmatpush1.msra.mxu0 0.0
        %1058 = vmatprep.subr.mxu0 0.0
        %1059 = vmatpush1.msra.mxu0 0.0
        %1060 = vmatprep.subr.mxu0 0.0
        %1061 = vmatpush1.msra.mxu0 0.0
        %1062 = vmatprep.subr.mxu0 0.0
        %1063 = vmatpush1.msra.mxu0 0.0
        %1064 = vmatprep.subr.mxu0 0.0
        %1065 = vmatpush1.msra.mxu0 0.0
        %1066 = vmatprep.subr.mxu0 0.0
        %1067 = vmatpush1.msra.mxu0 0.0
        %1068 = vmatprep.subr.mxu0 0.0
        %1069 = vmatpush1.msra.mxu0 0.0
        %1070 = vmatprep.subr.mxu0 0.0
        %1071 = vmatpush1.msra.mxu0 0.0
        %1072 = vmatprep.subr.mxu0 0.0
        %1073 = vmatpush1.msra.mxu0 0.0
        %1074 = vmatprep.subr.mxu0 0.0
        %1075 = vmatpush1.msra.mxu0 0.0
        %1076 = vmatprep.subr.mxu0 0.0
        %1077 = vmatpush1.msra.mxu0 0.0
        %1078 = vmatprep.subr.mxu0 0.0
        %1079 = vmatpush1.msra.mxu0 0.0
        %1080 = vmatprep.subr.mxu0 0.0
        %1081 = vmatpush1.msra.mxu0 0.0
        %1082 = vmatprep.mubr.f32.mxu0 0.0
        %1083 = vmatmul.mubr.f32.gmra.mrb[0].mxu0 %v297
        %v1084 = vpop.f32.mrb[0].mxu0
        %v1085 = vadd.f32 0.0, %v1084
        %v1086 = vpop.f32.mrb[0].mxu0
        %1087 = vmatprep.mubr.f32.mxu0 0.0
        %1088 = vmatmul.mubr.f32.gmra.mrb[0].mxu0 %v298
        %v1089 = vpop.f32.mrb[0].mxu0
        %v1090 = vadd.f32 0.0, %v1089
        %v1091 = vpop.f32.mrb[0].mxu0
        %1092 = vdwg.mxu0
        %1093 = vmatprep.subr.mxu0 0.0
        %1094 = vmatpush1.msra.mxu0 %v429
        %1095 = vmatprep.subr.mxu0 0.0
        %1096 = vmatpush1.msra.mxu0 %v430
        %1097 = vmatprep.subr.mxu0 0.0
        %1098 = vmatpush1.msra.mxu0 %v431
        %1099 = vmatprep.subr.mxu0 0.0
        %1100 = vmatpush1.msra.mxu0 %v432
        %1101 = vmatprep.subr.mxu0 0.0
        %1102 = vmatpush1.msra.mxu0 %v433
        %1103 = vmatprep.subr.mxu0 0.0
        %1104 = vmatpush1.msra.mxu0 %v434
        %1105 = vmatprep.subr.mxu0 0.0
        %1106 = vmatpush1.msra.mxu0 %v435
        %1107 = vmatprep.subr.mxu0 0.0
        %1108 = vmatpush1.msra.mxu0 %v436
        %1109 = vmatprep.subr.mxu0 0.0
        %1110 = vmatpush1.msra.mxu0 %v437
        %1111 = vmatprep.subr.mxu0 0.0
        %1112 = vmatpush1.msra.mxu0 %v438
        %1113 = vmatprep.subr.mxu0 0.0
        %1114 = vmatpush1.msra.mxu0 %v439
        %1115 = vmatprep.subr.mxu0 0.0
        %1116 = vmatpush1.msra.mxu0 %v440
        %1117 = vmatprep.subr.mxu0 0.0
        %1118 = vmatpush1.msra.mxu0 %v441
        %1119 = vmatprep.subr.mxu0 0.0
        %1120 = vmatpush1.msra.mxu0 %v442
        %1121 = vmatprep.subr.mxu0 0.0
        %1122 = vmatpush1.msra.mxu0 %v443
        %1123 = vmatprep.subr.mxu0 0.0
        %1124 = vmatpush1.msra.mxu0 %v444
        %1125 = vmatprep.subr.mxu0 0.0
        %1126 = vmatpush1.msra.mxu0 0.0
        %1127 = vmatprep.subr.mxu0 0.0
        %1128 = vmatpush1.msra.mxu0 0.0
        %1129 = vmatprep.subr.mxu0 0.0
        %1130 = vmatpush1.msra.mxu0 0.0
        %1131 = vmatprep.subr.mxu0 0.0
        %1132 = vmatpush1.msra.mxu0 0.0
        %1133 = vmatprep.subr.mxu0 0.0
        %1134 = vmatpush1.msra.mxu0 0.0
        %1135 = vmatprep.subr.mxu0 0.0
        %1136 = vmatpush1.msra.mxu0 0.0
        %1137 = vmatprep.subr.mxu0 0.0
        %1138 = vmatpush1.msra.mxu0 0.0
        %1139 = vmatprep.subr.mxu0 0.0
        %1140 = vmatpush1.msra.mxu0 0.0
        %1141 = vmatprep.subr.mxu0 0.0
        %1142 = vmatpush1.msra.mxu0 0.0
        %1143 = vmatprep.subr.mxu0 0.0
        %1144 = vmatpush1.msra.mxu0 0.0
        %1145 = vmatprep.subr.mxu0 0.0
        %1146 = vmatpush1.msra.mxu0 0.0
        %1147 = vmatprep.subr.mxu0 0.0
        %1148 = vmatpush1.msra.mxu0 0.0
        %1149 = vmatprep.subr.mxu0 0.0
        %1150 = vmatpush1.msra.mxu0 0.0
        %1151 = vmatprep.subr.mxu0 0.0
        %1152 = vmatpush1.msra.mxu0 0.0
        %1153 = vmatprep.subr.mxu0 0.0
        %1154 = vmatpush1.msra.mxu0 0.0
        %1155 = vmatprep.subr.mxu0 0.0
        %1156 = vmatpush1.msra.mxu0 0.0
        %1157 = vmatprep.mubr.f32.mxu0 0.0
        %1158 = vmatmul.mubr.f32.gmra.mrb[0].mxu0 %v297
        %v1159 = vpop.f32.mrb[0].mxu0
        %v1160 = vadd.f32 0.0, %v1159
        %v1161 = vpop.f32.mrb[0].mxu0
        %1162 = vmatprep.mubr.f32.mxu0 0.0
        %1163 = vmatmul.mubr.f32.gmra.mrb[0].mxu0 %v298
        %v1164 = vpop.f32.mrb[0].mxu0
        %v1165 = vadd.f32 0.0, %v1164
        %v1166 = vpop.f32.mrb[0].mxu0
        %1167 = vdwg.mxu0
        %1168 = vmatprep.subr.mxu0 0.0
        %1169 = vmatpush1.msra.mxu0 %v445
        %1170 = vmatprep.subr.mxu0 0.0
        %1171 = vmatpush1.msra.mxu0 %v446
        %1172 = vmatprep.subr.mxu0 0.0
        %1173 = vmatpush1.msra.mxu0 %v447
        %1174 = vmatprep.subr.mxu0 0.0
        %1175 = vmatpush1.msra.mxu0 %v448
        %1176 = vmatprep.subr.mxu0 0.0
        %1177 = vmatpush1.msra.mxu0 %v449
        %1178 = vmatprep.subr.mxu0 0.0
        %1179 = vmatpush1.msra.mxu0 %v450
        %1180 = vmatprep.subr.mxu0 0.0
        %1181 = vmatpush1.msra.mxu0 %v451
        %1182 = vmatprep.subr.mxu0 0.0
        %1183 = vmatpush1.msra.mxu0 %v452
        %1184 = vmatprep.subr.mxu0 0.0
        %1185 = vmatpush1.msra.mxu0 %v453
        %1186 = vmatprep.subr.mxu0 0.0
        %1187 = vmatpush1.msra.mxu0 %v454
        %1188 = vmatprep.subr.mxu0 0.0
        %1189 = vmatpush1.msra.mxu0 %v455
        %1190 = vmatprep.subr.mxu0 0.0
        %1191 = vmatpush1.msra.mxu0 %v456
        %1192 = vmatprep.subr.mxu0 0.0
        %1193 = vmatpush1.msra.mxu0 %v457
        %1194 = vmatprep.subr.mxu0 0.0
        %1195 = vmatpush1.msra.mxu0 %v458
        %1196 = vmatprep.subr.mxu0 0.0
        %1197 = vmatpush1.msra.mxu0 %v459
        %1198 = vmatprep.subr.mxu0 0.0
        %1199 = vmatpush1.msra.mxu0 %v460
        %1200 = vmatprep.subr.mxu0 0.0
        %1201 = vmatpush1.msra.mxu0 0.0
        %1202 = vmatprep.subr.mxu0 0.0
        %1203 = vmatpush1.msra.mxu0 0.0
        %1204 = vmatprep.subr.mxu0 0.0
        %1205 = vmatpush1.msra.mxu0 0.0
        %1206 = vmatprep.subr.mxu0 0.0
        %1207 = vmatpush1.msra.mxu0 0.0
        %1208 = vmatprep.subr.mxu0 0.0
        %1209 = vmatpush1.msra.mxu0 0.0
        %1210 = vmatprep.subr.mxu0 0.0
        %1211 = vmatpush1.msra.mxu0 0.0
        %1212 = vmatprep.subr.mxu0 0.0
        %1213 = vmatpush1.msra.mxu0 0.0
        %1214 = vmatprep.subr.mxu0 0.0
        %1215 = vmatpush1.msra.mxu0 0.0
        %1216 = vmatprep.subr.mxu0 0.0
        %1217 = vmatpush1.msra.mxu0 0.0
        %1218 = vmatprep.subr.mxu0 0.0
        %1219 = vmatpush1.msra.mxu0 0.0
        %1220 = vmatprep.subr.mxu0 0.0
        %1221 = vmatpush1.msra.mxu0 0.0
        %1222 = vmatprep.subr.mxu0 0.0
        %1223 = vmatpush1.msra.mxu0 0.0
        %1224 = vmatprep.subr.mxu0 0.0
        %1225 = vmatpush1.msra.mxu0 0.0
        %1226 = vmatprep.subr.mxu0 0.0
        %1227 = vmatpush1.msra.mxu0 0.0
        %1228 = vmatprep.subr.mxu0 0.0
        %1229 = vmatpush1.msra.mxu0 0.0
        %1230 = vmatprep.subr.mxu0 0.0
        %1231 = vmatpush1.msra.mxu0 0.0
        %1232 = vmatprep.mubr.f32.mxu0 0.0
        %1233 = vmatmul.mubr.f32.gmra.mrb[0].mxu0 %v297
        %v1234 = vpop.f32.mrb[0].mxu0
        %v1235 = vadd.f32 0.0, %v1234
        %v1236 = vpop.f32.mrb[0].mxu0
        %1237 = vmatprep.mubr.f32.mxu0 0.0
        %1238 = vmatmul.mubr.f32.gmra.mrb[0].mxu0 %v298
        %v1239 = vpop.f32.mrb[0].mxu0
        %v1240 = vadd.f32 0.0, %v1239
        %v1241 = vpop.f32.mrb[0].mxu0
        %1242 = vdwg.mxu0
        %1243 = vmatprep.subr.mxu0 0.0
        %1244 = vmatpush1.msra.mxu0 %v461
        %1245 = vmatprep.subr.mxu0 0.0
        %1246 = vmatpush1.msra.mxu0 %v462
        %1247 = vmatprep.subr.mxu0 0.0
        %1248 = vmatpush1.msra.mxu0 %v463
        %1249 = vmatprep.subr.mxu0 0.0
        %1250 = vmatpush1.msra.mxu0 %v464
        %1251 = vmatprep.subr.mxu0 0.0
        %1252 = vmatpush1.msra.mxu0 %v465
        %1253 = vmatprep.subr.mxu0 0.0
        %1254 = vmatpush1.msra.mxu0 %v466
        %1255 = vmatprep.subr.mxu0 0.0
        %1256 = vmatpush1.msra.mxu0 %v467
        %1257 = vmatprep.subr.mxu0 0.0
        %1258 = vmatpush1.msra.mxu0 %v468
        %1259 = vmatprep.subr.mxu0 0.0
        %1260 = vmatpush1.msra.mxu0 %v469
        %1261 = vmatprep.subr.mxu0 0.0
        %1262 = vmatpush1.msra.mxu0 %v470
        %1263 = vmatprep.subr.mxu0 0.0
        %1264 = vmatpush1.msra.mxu0 %v471
        %1265 = vmatprep.subr.mxu0 0.0
        %1266 = vmatpush1.msra.mxu0 %v472
        %1267 = vmatprep.subr.mxu0 0.0
        %1268 = vmatpush1.msra.mxu0 %v473
        %1269 = vmatprep.subr.mxu0 0.0
        %1270 = vmatpush1.msra.mxu0 %v474
        %1271 = vmatprep.subr.mxu0 0.0
        %1272 = vmatpush1.msra.mxu0 %v475
        %1273 = vmatprep.subr.mxu0 0.0
        %1274 = vmatpush1.msra.mxu0 %v476
        %1275 = vmatprep.subr.mxu0 0.0
        %1276 = vmatpush1.msra.mxu0 0.0
        %1277 = vmatprep.subr.mxu0 0.0
        %1278 = vmatpush1.msra.mxu0 0.0
        %1279 = vmatprep.subr.mxu0 0.0
        %1280 = vmatpush1.msra.mxu0 0.0
        %1281 = vmatprep.subr.mxu0 0.0
        %1282 = vmatpush1.msra.mxu0 0.0
        %1283 = vmatprep.subr.mxu0 0.0
        %1284 = vmatpush1.msra.mxu0 0.0
        %1285 = vmatprep.subr.mxu0 0.0
        %1286 = vmatpush1.msra.mxu0 0.0
        %1287 = vmatprep.subr.mxu0 0.0
        %1288 = vmatpush1.msra.mxu0 0.0
        %1289 = vmatprep.subr.mxu0 0.0
        %1290 = vmatpush1.msra.mxu0 0.0
        %1291 = vmatprep.subr.mxu0 0.0
        %1292 = vmatpush1.msra.mxu0 0.0
        %1293 = vmatprep.subr.mxu0 0.0
        %1294 = vmatpush1.msra.mxu0 0.0
        %1295 = vmatprep.subr.mxu0 0.0
        %1296 = vmatpush1.msra.mxu0 0.0
        %1297 = vmatprep.subr.mxu0 0.0
        %1298 = vmatpush1.msra.mxu0 0.0
        %1299 = vmatprep.subr.mxu0 0.0
        %1300 = vmatpush1.msra.mxu0 0.0
        %1301 = vmatprep.subr.mxu0 0.0
        %1302 = vmatpush1.msra.mxu0 0.0
        %1303 = vmatprep.subr.mxu0 0.0
        %1304 = vmatpush1.msra.mxu0 0.0
        %1305 = vmatprep.subr.mxu0 0.0
        %1306 = vmatpush1.msra.mxu0 0.0
        %1307 = vmatprep.mubr.f32.mxu0 0.0
        %1308 = vmatmul.mubr.f32.gmra.mrb[0].mxu0 %v297
        %v1309 = vpop.f32.mrb[0].mxu0
        %v1310 = vadd.f32 0.0, %v1309
        %v1311 = vpop.f32.mrb[0].mxu0
        %1312 = vmatprep.mubr.f32.mxu0 0.0
        %1313 = vmatmul.mubr.f32.gmra.mrb[0].mxu0 %v298
        %v1314 = vpop.f32.mrb[0].mxu0
        %v1315 = vadd.f32 0.0, %v1314
        %v1316 = vpop.f32.mrb[0].mxu0
        %1317 = vdwg.mxu0
        %1318 = vmatprep.subr.mxu0 0.0
        %1319 = vmatpush1.msra.mxu0 %v477
        %1320 = vmatprep.subr.mxu0 0.0
        %1321 = vmatpush1.msra.mxu0 %v478
        %1322 = vmatprep.subr.mxu0 0.0
        %1323 = vmatpush1.msra.mxu0 %v479
        %1324 = vmatprep.subr.mxu0 0.0
        %1325 = vmatpush1.msra.mxu0 %v480
        %1326 = vmatprep.subr.mxu0 0.0
        %1327 = vmatpush1.msra.mxu0 %v481
        %1328 = vmatprep.subr.mxu0 0.0
        %1329 = vmatpush1.msra.mxu0 %v482
        %1330 = vmatprep.subr.mxu0 0.0
        %1331 = vmatpush1.msra.mxu0 %v483
        %1332 = vmatprep.subr.mxu0 0.0
        %1333 = vmatpush1.msra.mxu0 %v484
        %1334 = vmatprep.subr.mxu0 0.0
        %1335 = vmatpush1.msra.mxu0 %v485
        %1336 = vmatprep.subr.mxu0 0.0
        %1337 = vmatpush1.msra.mxu0 %v486
        %1338 = vmatprep.subr.mxu0 0.0
        %1339 = vmatpush1.msra.mxu0 %v487
        %1340 = vmatprep.subr.mxu0 0.0
        %1341 = vmatpush1.msra.mxu0 %v488
        %1342 = vmatprep.subr.mxu0 0.0
        %1343 = vmatpush1.msra.mxu0 %v489
        %1344 = vmatprep.subr.mxu0 0.0
        %1345 = vmatpush1.msra.mxu0 %v490
        %1346 = vmatprep.subr.mxu0 0.0
        %1347 = vmatpush1.msra.mxu0 %v491
        %1348 = vmatprep.subr.mxu0 0.0
        %1349 = vmatpush1.msra.mxu0 %v492
        %1350 = vmatprep.subr.mxu0 0.0
        %1351 = vmatpush1.msra.mxu0 0.0
        %1352 = vmatprep.subr.mxu0 0.0
        %1353 = vmatpush1.msra.mxu0 0.0
        %1354 = vmatprep.subr.mxu0 0.0
        %1355 = vmatpush1.msra.mxu0 0.0
        %1356 = vmatprep.subr.mxu0 0.0
        %1357 = vmatpush1.msra.mxu0 0.0
        %1358 = vmatprep.subr.mxu0 0.0
        %1359 = vmatpush1.msra.mxu0 0.0
        %1360 = vmatprep.subr.mxu0 0.0
        %1361 = vmatpush1.msra.mxu0 0.0
        %1362 = vmatprep.subr.mxu0 0.0
        %1363 = vmatpush1.msra.mxu0 0.0
        %1364 = vmatprep.subr.mxu0 0.0
        %1365 = vmatpush1.msra.mxu0 0.0
        %1366 = vmatprep.subr.mxu0 0.0
        %1367 = vmatpush1.msra.mxu0 0.0
        %1368 = vmatprep.subr.mxu0 0.0
        %1369 = vmatpush1.msra.mxu0 0.0
        %1370 = vmatprep.subr.mxu0 0.0
        %1371 = vmatpush1.msra.mxu0 0.0
        %1372 = vmatprep.subr.mxu0 0.0
        %1373 = vmatpush1.msra.mxu0 0.0
        %1374 = vmatprep.subr.mxu0 0.0
        %1375 = vmatpush1.msra.mxu0 0.0
        %1376 = vmatprep.subr.mxu0 0.0
        %1377 = vmatpush1.msra.mxu0 0.0
        %1378 = vmatprep.subr.mxu0 0.0
        %1379 = vmatpush1.msra.mxu0 0.0
        %1380 = vmatprep.subr.mxu0 0.0
        %1381 = vmatpush1.msra.mxu0 0.0
        %1382 = vmatprep.mubr.f32.mxu0 0.0
        %1383 = vmatmul.mubr.f32.gmra.mrb[0].mxu0 %v297
        %v1384 = vpop.f32.mrb[0].mxu0
        %v1385 = vadd.f32 0.0, %v1384
        %v1386 = vpop.f32.mrb[0].mxu0
        %1387 = vmatprep.mubr.f32.mxu0 0.0
        %1388 = vmatmul.mubr.f32.gmra.mrb[0].mxu0 %v298
        %v1389 = vpop.f32.mrb[0].mxu0
        %v1390 = vadd.f32 0.0, %v1389
        %v1391 = vpop.f32.mrb[0].mxu0
        %1392 = vdwg.mxu0
        %vm1393 = vcmask 261120
        %v1395 = vsel %vm1393, %v560, 0
        %v1398 = vsel %vm1393, %v565, 0
        %v1401 = vsel %vm1393, %v860, 0
        %v1404 = vsel %vm1393, %v865, 0
        %1406 = vmatprep.subr.mxu0 0.0
        %1407 = vmatpush1.xpose.msra.mxu0 %v1401
        %1408 = vmatprep.subr.mxu0 0.0
        %1409 = vmatpush1.xpose.msra.mxu0 %v1404
        %1410 = vmatprep.subr.mxu0 0.0
        %1411 = vmatpush1.xpose.msra.mxu0 0.0
        %1412 = vmatprep.subr.mxu0 0.0
        %1413 = vmatpush1.xpose.msra.mxu0 0.0
        %1414 = vmatprep.subr.mxu0 0.0
        %1415 = vmatpush1.xpose.msra.mxu0 0.0
        %1416 = vmatprep.subr.mxu0 0.0
        %1417 = vmatpush1.xpose.msra.mxu0 0.0
        %1418 = vmatprep.subr.mxu0 0.0
        %1419 = vmatpush1.xpose.msra.mxu0 0.0
        %1420 = vmatprep.subr.mxu0 0.0
        %1421 = vmatpush1.xpose.msra.mxu0 0.0
        %1422 = vmatprep.subr.mxu0 0.0
        %1423 = vmatpush1.xpose.msra.mxu0 0.0
        %1424 = vmatprep.subr.mxu0 0.0
        %1425 = vmatpush1.xpose.msra.mxu0 0.0
        %1426 = vmatprep.subr.mxu0 0.0
        %1427 = vmatpush1.xpose.msra.mxu0 0.0
        %1428 = vmatprep.subr.mxu0 0.0
        %1429 = vmatpush1.xpose.msra.mxu0 0.0
        %1430 = vmatprep.subr.mxu0 0.0
        %1431 = vmatpush1.xpose.msra.mxu0 0.0
        %1432 = vmatprep.subr.mxu0 0.0
        %1433 = vmatpush1.xpose.msra.mxu0 0.0
        %1434 = vmatprep.subr.mxu0 0.0
        %1435 = vmatpush1.xpose.msra.mxu0 0.0
        %1436 = vmatprep.subr.mxu0 0.0
        %1437 = vmatpush1.xpose.msra.mxu0 0.0
        %1438 = vmatprep.subr.mxu0 0.0
        %1439 = vmatpush1.xpose.msra.mxu0 0.0
        %1440 = vmatprep.subr.mxu0 0.0
        %1441 = vmatpush1.xpose.msra.mxu0 0.0
        %1442 = vmatprep.subr.mxu0 0.0
        %1443 = vmatpush1.xpose.msra.mxu0 0.0
        %1444 = vmatprep.subr.mxu0 0.0
        %1445 = vmatpush1.xpose.msra.mxu0 0.0
        %1446 = vmatprep.subr.mxu0 0.0
        %1447 = vmatpush1.xpose.msra.mxu0 0.0
        %1448 = vmatprep.subr.mxu0 0.0
        %1449 = vmatpush1.xpose.msra.mxu0 0.0
        %1450 = vmatprep.subr.mxu0 0.0
        %1451 = vmatpush1.xpose.msra.mxu0 0.0
        %1452 = vmatprep.subr.mxu0 0.0
        %1453 = vmatpush1.xpose.msra.mxu0 0.0
        %1454 = vmatprep.subr.mxu0 0.0
        %1455 = vmatpush1.xpose.msra.mxu0 0.0
        %1456 = vmatprep.subr.mxu0 0.0
        %1457 = vmatpush1.xpose.msra.mxu0 0.0
        %1458 = vmatprep.subr.mxu0 0.0
        %1459 = vmatpush1.xpose.msra.mxu0 0.0
        %1460 = vmatprep.subr.mxu0 0.0
        %1461 = vmatpush1.xpose.msra.mxu0 0.0
        %1462 = vmatprep.subr.mxu0 0.0
        %1463 = vmatpush1.xpose.msra.mxu0 0.0
        %1464 = vmatprep.subr.mxu0 0.0
        %1465 = vmatpush1.xpose.msra.mxu0 0.0
        %1466 = vmatprep.subr.mxu0 0.0
        %1467 = vmatpush1.xpose.msra.mxu0 0.0
        %1468 = vmatprep.subr.mxu0 0.0
        %1469 = vmatpush1.xpose.msra.mxu0 0.0
        %1470 = vmatprep.mubr.f32.mxu0 0.0
        %1471 = vmatmul.mubr.f32.gmra.mrb[0].mxu0 %v1395
        %v1472 = vpop.f32.mrb[0].mxu0
        %v1473 = vadd.f32 0.0, %v1472
        %v1474 = vpop.f32.mrb[0].mxu0
        %1475 = vmatprep.mubr.f32.mxu0 0.0
        %1476 = vmatmul.mubr.f32.gmra.mrb[0].mxu0 %v1398
        %v1477 = vpop.f32.mrb[0].mxu0
        %v1478 = vadd.f32 0.0, %v1477
        %v1479 = vpop.f32.mrb[0].mxu0
        %1480 = vdwg.mxu0
        %v1482 = vsel %vm1393, %v635, 0
        %v1485 = vsel %vm1393, %v640, 0
        %v1488 = vsel %vm1393, %v935, 0
        %v1491 = vsel %vm1393, %v940, 0
        %1493 = vmatprep.subr.mxu0 0.0
        %1494 = vmatpush1.xpose.msra.mxu0 %v1488
        %1495 = vmatprep.subr.mxu0 0.0
        %1496 = vmatpush1.xpose.msra.mxu0 %v1491
        %1497 = vmatprep.subr.mxu0 0.0
        %1498 = vmatpush1.xpose.msra.mxu0 0.0
        %1499 = vmatprep.subr.mxu0 0.0
        %1500 = vmatpush1.xpose.msra.mxu0 0.0
        %1501 = vmatprep.subr.mxu0 0.0
        %1502 = vmatpush1.xpose.msra.mxu0 0.0
        %1503 = vmatprep.subr.mxu0 0.0
        %1504 = vmatpush1.xpose.msra.mxu0 0.0
        %1505 = vmatprep.subr.mxu0 0.0
        %1506 = vmatpush1.xpose.msra.mxu0 0.0
        %1507 = vmatprep.subr.mxu0 0.0
        %1508 = vmatpush1.xpose.msra.mxu0 0.0
        %1509 = vmatprep.subr.mxu0 0.0
        %1510 = vmatpush1.xpose.msra.mxu0 0.0
        %1511 = vmatprep.subr.mxu0 0.0
        %1512 = vmatpush1.xpose.msra.mxu0 0.0
        %1513 = vmatprep.subr.mxu0 0.0
        %1514 = vmatpush1.xpose.msra.mxu0 0.0
        %1515 = vmatprep.subr.mxu0 0.0
        %1516 = vmatpush1.xpose.msra.mxu0 0.0
        %1517 = vmatprep.subr.mxu0 0.0
        %1518 = vmatpush1.xpose.msra.mxu0 0.0
        %1519 = vmatprep.subr.mxu0 0.0
        %1520 = vmatpush1.xpose.msra.mxu0 0.0
        %1521 = vmatprep.subr.mxu0 0.0
        %1522 = vmatpush1.xpose.msra.mxu0 0.0
        %1523 = vmatprep.subr.mxu0 0.0
        %1524 = vmatpush1.xpose.msra.mxu0 0.0
        %1525 = vmatprep.subr.mxu0 0.0
        %1526 = vmatpush1.xpose.msra.mxu0 0.0
        %1527 = vmatprep.subr.mxu0 0.0
        %1528 = vmatpush1.xpose.msra.mxu0 0.0
        %1529 = vmatprep.subr.mxu0 0.0
        %1530 = vmatpush1.xpose.msra.mxu0 0.0
        %1531 = vmatprep.subr.mxu0 0.0
        %1532 = vmatpush1.xpose.msra.mxu0 0.0
        %1533 = vmatprep.subr.mxu0 0.0
        %1534 = vmatpush1.xpose.msra.mxu0 0.0
        %1535 = vmatprep.subr.mxu0 0.0
        %1536 = vmatpush1.xpose.msra.mxu0 0.0
        %1537 = vmatprep.subr.mxu0 0.0
        %1538 = vmatpush1.xpose.msra.mxu0 0.0
        %1539 = vmatprep.subr.mxu0 0.0
        %1540 = vmatpush1.xpose.msra.mxu0 0.0
        %1541 = vmatprep.subr.mxu0 0.0
        %1542 = vmatpush1.xpose.msra.mxu0 0.0
        %1543 = vmatprep.subr.mxu0 0.0
        %1544 = vmatpush1.xpose.msra.mxu0 0.0
        %1545 = vmatprep.subr.mxu0 0.0
        %1546 = vmatpush1.xpose.msra.mxu0 0.0
        %1547 = vmatprep.subr.mxu0 0.0
        %1548 = vmatpush1.xpose.msra.mxu0 0.0
        %1549 = vmatprep.subr.mxu0 0.0
        %1550 = vmatpush1.xpose.msra.mxu0 0.0
        %1551 = vmatprep.subr.mxu0 0.0
        %1552 = vmatpush1.xpose.msra.mxu0 0.0
        %1553 = vmatprep.subr.mxu0 0.0
        %1554 = vmatpush1.xpose.msra.mxu0 0.0
        %1555 = vmatprep.subr.mxu0 0.0
        %1556 = vmatpush1.xpose.msra.mxu0 0.0
        %1557 = vmatprep.mubr.f32.mxu0 0.0
        %1558 = vmatmul.mubr.f32.gmra.mrb[0].mxu0 %v1482
        %v1559 = vpop.f32.mrb[0].mxu0
        %v1560 = vadd.f32 0.0, %v1559
        %v1561 = vpop.f32.mrb[0].mxu0
        %1562 = vmatprep.mubr.f32.mxu0 0.0
        %1563 = vmatmul.mubr.f32.gmra.mrb[0].mxu0 %v1485
        %v1564 = vpop.f32.mrb[0].mxu0
        %v1565 = vadd.f32 0.0, %v1564
        %v1566 = vpop.f32.mrb[0].mxu0
        %1567 = vdwg.mxu0
        %v1569 = vsel %vm1393, %v710, 0
        %v1572 = vsel %vm1393, %v715, 0
        %v1575 = vsel %vm1393, %v1010, 0
        %v1578 = vsel %vm1393, %v1015, 0
        %1580 = vmatprep.subr.mxu0 0.0
        %1581 = vmatpush1.xpose.msra.mxu0 %v1575
        %1582 = vmatprep.subr.mxu0 0.0
        %1583 = vmatpush1.xpose.msra.mxu0 %v1578
        %1584 = vmatprep.subr.mxu0 0.0
        %1585 = vmatpush1.xpose.msra.mxu0 0.0
        %1586 = vmatprep.subr.mxu0 0.0
        %1587 = vmatpush1.xpose.msra.mxu0 0.0
        %1588 = vmatprep.subr.mxu0 0.0
        %1589 = vmatpush1.xpose.msra.mxu0 0.0
        %1590 = vmatprep.subr.mxu0 0.0
        %1591 = vmatpush1.xpose.msra.mxu0 0.0
        %1592 = vmatprep.subr.mxu0 0.0
        %1593 = vmatpush1.xpose.msra.mxu0 0.0
        %1594 = vmatprep.subr.mxu0 0.0
        %1595 = vmatpush1.xpose.msra.mxu0 0.0
        %1596 = vmatprep.subr.mxu0 0.0
        %1597 = vmatpush1.xpose.msra.mxu0 0.0
        %1598 = vmatprep.subr.mxu0 0.0
        %1599 = vmatpush1.xpose.msra.mxu0 0.0
        %1600 = vmatprep.subr.mxu0 0.0
        %1601 = vmatpush1.xpose.msra.mxu0 0.0
        %1602 = vmatprep.subr.mxu0 0.0
        %1603 = vmatpush1.xpose.msra.mxu0 0.0
        %1604 = vmatprep.subr.mxu0 0.0
        %1605 = vmatpush1.xpose.msra.mxu0 0.0
        %1606 = vmatprep.subr.mxu0 0.0
        %1607 = vmatpush1.xpose.msra.mxu0 0.0
        %1608 = vmatprep.subr.mxu0 0.0
        %1609 = vmatpush1.xpose.msra.mxu0 0.0
        %1610 = vmatprep.subr.mxu0 0.0
        %1611 = vmatpush1.xpose.msra.mxu0 0.0
        %1612 = vmatprep.subr.mxu0 0.0
        %1613 = vmatpush1.xpose.msra.mxu0 0.0
        %1614 = vmatprep.subr.mxu0 0.0
        %1615 = vmatpush1.xpose.msra.mxu0 0.0
        %1616 = vmatprep.subr.mxu0 0.0
        %1617 = vmatpush1.xpose.msra.mxu0 0.0
        %1618 = vmatprep.subr.mxu0 0.0
        %1619 = vmatpush1.xpose.msra.mxu0 0.0
        %1620 = vmatprep.subr.mxu0 0.0
        %1621 = vmatpush1.xpose.msra.mxu0 0.0
        %1622 = vmatprep.subr.mxu0 0.0
        %1623 = vmatpush1.xpose.msra.mxu0 0.0
        %1624 = vmatprep.subr.mxu0 0.0
        %1625 = vmatpush1.xpose.msra.mxu0 0.0
        %1626 = vmatprep.subr.mxu0 0.0
        %1627 = vmatpush1.xpose.msra.mxu0 0.0
        %1628 = vmatprep.subr.mxu0 0.0
        %1629 = vmatpush1.xpose.msra.mxu0 0.0
        %1630 = vmatprep.subr.mxu0 0.0
        %1631 = vmatpush1.xpose.msra.mxu0 0.0
        %1632 = vmatprep.subr.mxu0 0.0
        %1633 = vmatpush1.xpose.msra.mxu0 0.0
        %1634 = vmatprep.subr.mxu0 0.0
        %1635 = vmatpush1.xpose.msra.mxu0 0.0
        %1636 = vmatprep.subr.mxu0 0.0
        %1637 = vmatpush1.xpose.msra.mxu0 0.0
        %1638 = vmatprep.subr.mxu0 0.0
        %1639 = vmatpush1.xpose.msra.mxu0 0.0
        %1640 = vmatprep.subr.mxu0 0.0
        %1641 = vmatpush1.xpose.msra.mxu0 0.0
        %1642 = vmatprep.subr.mxu0 0.0
        %1643 = vmatpush1.xpose.msra.mxu0 0.0
        %1644 = vmatprep.mubr.f32.mxu0 0.0
        %1645 = vmatmul.mubr.f32.gmra.mrb[0].mxu0 %v1569
        %v1646 = vpop.f32.mrb[0].mxu0
        %v1647 = vadd.f32 0.0, %v1646
        %v1648 = vpop.f32.mrb[0].mxu0
        %1649 = vmatprep.mubr.f32.mxu0 0.0
        %1650 = vmatmul.mubr.f32.gmra.mrb[0].mxu0 %v1572
        %v1651 = vpop.f32.mrb[0].mxu0
        %v1652 = vadd.f32 0.0, %v1651
        %v1653 = vpop.f32.mrb[0].mxu0
        %1654 = vdwg.mxu0
        %v1656 = vsel %vm1393, %v785, 0
        %v1659 = vsel %vm1393, %v790, 0
        %v1662 = vsel %vm1393, %v1085, 0
        %v1665 = vsel %vm1393, %v1090, 0
        %1667 = vmatprep.subr.mxu0 0.0
        %1668 = vmatpush1.xpose.msra.mxu0 %v1662
        %1669 = vmatprep.subr.mxu0 0.0
        %1670 = vmatpush1.xpose.msra.mxu0 %v1665
        %1671 = vmatprep.subr.mxu0 0.0
        %1672 = vmatpush1.xpose.msra.mxu0 0.0
        %1673 = vmatprep.subr.mxu0 0.0
        %1674 = vmatpush1.xpose.msra.mxu0 0.0
        %1675 = vmatprep.subr.mxu0 0.0
        %1676 = vmatpush1.xpose.msra.mxu0 0.0
        %1677 = vmatprep.subr.mxu0 0.0
        %1678 = vmatpush1.xpose.msra.mxu0 0.0
        %1679 = vmatprep.subr.mxu0 0.0
        %1680 = vmatpush1.xpose.msra.mxu0 0.0
        %1681 = vmatprep.subr.mxu0 0.0
        %1682 = vmatpush1.xpose.msra.mxu0 0.0
        %1683 = vmatprep.subr.mxu0 0.0
        %1684 = vmatpush1.xpose.msra.mxu0 0.0
        %1685 = vmatprep.subr.mxu0 0.0
        %1686 = vmatpush1.xpose.msra.mxu0 0.0
        %1687 = vmatprep.subr.mxu0 0.0
        %1688 = vmatpush1.xpose.msra.mxu0 0.0
        %1689 = vmatprep.subr.mxu0 0.0
        %1690 = vmatpush1.xpose.msra.mxu0 0.0
        %1691 = vmatprep.subr.mxu0 0.0
        %1692 = vmatpush1.xpose.msra.mxu0 0.0
        %1693 = vmatprep.subr.mxu0 0.0
        %1694 = vmatpush1.xpose.msra.mxu0 0.0
        %1695 = vmatprep.subr.mxu0 0.0
        %1696 = vmatpush1.xpose.msra.mxu0 0.0
        %1697 = vmatprep.subr.mxu0 0.0
        %1698 = vmatpush1.xpose.msra.mxu0 0.0
        %1699 = vmatprep.subr.mxu0 0.0
        %1700 = vmatpush1.xpose.msra.mxu0 0.0
        %1701 = vmatprep.subr.mxu0 0.0
        %1702 = vmatpush1.xpose.msra.mxu0 0.0
        %1703 = vmatprep.subr.mxu0 0.0
        %1704 = vmatpush1.xpose.msra.mxu0 0.0
        %1705 = vmatprep.subr.mxu0 0.0
        %1706 = vmatpush1.xpose.msra.mxu0 0.0
        %1707 = vmatprep.subr.mxu0 0.0
        %1708 = vmatpush1.xpose.msra.mxu0 0.0
        %1709 = vmatprep.subr.mxu0 0.0
        %1710 = vmatpush1.xpose.msra.mxu0 0.0
        %1711 = vmatprep.subr.mxu0 0.0
        %1712 = vmatpush1.xpose.msra.mxu0 0.0
        %1713 = vmatprep.subr.mxu0 0.0
        %1714 = vmatpush1.xpose.msra.mxu0 0.0
        %1715 = vmatprep.subr.mxu0 0.0
        %1716 = vmatpush1.xpose.msra.mxu0 0.0
        %1717 = vmatprep.subr.mxu0 0.0
        %1718 = vmatpush1.xpose.msra.mxu0 0.0
        %1719 = vmatprep.subr.mxu0 0.0
        %1720 = vmatpush1.xpose.msra.mxu0 0.0
        %1721 = vmatprep.subr.mxu0 0.0
        %1722 = vmatpush1.xpose.msra.mxu0 0.0
        %1723 = vmatprep.subr.mxu0 0.0
        %1724 = vmatpush1.xpose.msra.mxu0 0.0
        %1725 = vmatprep.subr.mxu0 0.0
        %1726 = vmatpush1.xpose.msra.mxu0 0.0
        %1727 = vmatprep.subr.mxu0 0.0
        %1728 = vmatpush1.xpose.msra.mxu0 0.0
        %1729 = vmatprep.subr.mxu0 0.0
        %1730 = vmatpush1.xpose.msra.mxu0 0.0
        %1731 = vmatprep.mubr.f32.mxu0 0.0
        %1732 = vmatmul.mubr.f32.gmra.mrb[0].mxu0 %v1656
        %v1733 = vpop.f32.mrb[0].mxu0
        %v1734 = vadd.f32 0.0, %v1733
        %v1735 = vpop.f32.mrb[0].mxu0
        %1736 = vmatprep.mubr.f32.mxu0 0.0
        %1737 = vmatmul.mubr.f32.gmra.mrb[0].mxu0 %v1659
        %v1738 = vpop.f32.mrb[0].mxu0
        %v1739 = vadd.f32 0.0, %v1738
        %v1740 = vpop.f32.mrb[0].mxu0
        %1741 = vdwg.mxu0
        %v1742 = vmul.f32 %v1473, 0.17677669
        %v1743 = vmul.f32 %v1478, 0.17677669
        %v1744 = vmul.f32 %v1560, 0.17677669
        %v1745 = vmul.f32 %v1565, 0.17677669
        %v1746 = vmul.f32 %v1647, 0.17677669
        %v1747 = vmul.f32 %v1652, 0.17677669
        %v1748 = vmul.f32 %v1734, 0.17677669
        %v1749 = vmul.f32 %v1739, 0.17677669
        %v1750 = vsub.f32 %v299, 1.0
        %v1751 = vsub.f32 %v300, 1.0
        %v1752 = vmul.f32 %v1750, 1e+30
        %v1753 = vmul.f32 %v1751, 1e+30
        %v1754 = vadd.f32 %v1742, %v1752
        %v1755 = vadd.f32 %v1743, %v1753
        %v1756 = vadd.f32 %v1744, %v1752
        %v1757 = vadd.f32 %v1745, %v1753
        %v1758 = vadd.f32 %v1746, %v1752
        %v1759 = vadd.f32 %v1747, %v1753
        %v1760 = vadd.f32 %v1748, %v1752
        %v1761 = vadd.f32 %v1749, %v1753
        %vm1762 = vcmask 130048
        %v1763 = vsel %vm1762, %v1754, -inf
        %1764 = vmax.xlane.f32.xlu0 %v1763
        %v1765 = vpop.xlane.xlu0 %1764
        %v1766 = vsel %vm1762, %v1755, -inf
        %1767 = vmax.xlane.f32.xlu0 %v1766
        %v1768 = vpop.xlane.xlu0 %1767
        %v1769 = vsel %vm1762, %v1756, -inf
        %1770 = vmax.xlane.f32.xlu0 %v1769
        %v1771 = vpop.xlane.xlu0 %1770
        %v1772 = vsel %vm1762, %v1757, -inf
        %1773 = vmax.xlane.f32.xlu0 %v1772
        %v1774 = vpop.xlane.xlu0 %1773
        %v1775 = vsel %vm1762, %v1758, -inf
        %1776 = vmax.xlane.f32.xlu0 %v1775
        %v1777 = vpop.xlane.xlu0 %1776
        %v1778 = vsel %vm1762, %v1759, -inf
        %1779 = vmax.xlane.f32.xlu0 %v1778
        %v1780 = vpop.xlane.xlu0 %1779
        %v1781 = vsel %vm1762, %v1760, -inf
        %1782 = vmax.xlane.f32.xlu0 %v1781
        %v1783 = vpop.xlane.xlu0 %1782
        %v1784 = vsel %vm1762, %v1761, -inf
        %1785 = vmax.xlane.f32.xlu0 %v1784
        %v1786 = vpop.xlane.xlu0 %1785
        %v1787 = vsub.f32 %v1754, %v1765
        %v1788 = vsub.f32 %v1755, %v1768
        %v1789 = vsub.f32 %v1756, %v1771
        %v1790 = vsub.f32 %v1757, %v1774
        %v1791 = vsub.f32 %v1758, %v1777
        %v1792 = vsub.f32 %v1759, %v1780
        %v1793 = vsub.f32 %v1760, %v1783
        %v1794 = vsub.f32 %v1761, %v1786
        %v1795 = vmul.f32 %v1787, 1.442695
        %v1796 = vpow.pop %v1795
        %v1797 = vmul.f32 %v1788, 1.442695
        %v1798 = vpow.pop %v1797
        %v1799 = vmul.f32 %v1789, 1.442695
        %v1800 = vpow.pop %v1799
        %v1801 = vmul.f32 %v1790, 1.442695
        %v1802 = vpow.pop %v1801
        %v1803 = vmul.f32 %v1791, 1.442695
        %v1804 = vpow.pop %v1803
        %v1805 = vmul.f32 %v1792, 1.442695
        %v1806 = vpow.pop %v1805
        %v1807 = vmul.f32 %v1793, 1.442695
        %v1808 = vpow.pop %v1807
        %v1809 = vmul.f32 %v1794, 1.442695
        %v1810 = vpow.pop %v1809
        %v1811 = vmul.f32 %v1796, %v299
        %v1812 = vmul.f32 %v1798, %v300
        %v1813 = vmul.f32 %v1800, %v299
        %v1814 = vmul.f32 %v1802, %v300
        %v1815 = vmul.f32 %v1804, %v299
        %v1816 = vmul.f32 %v1806, %v300
        %v1817 = vmul.f32 %v1808, %v299
        %v1818 = vmul.f32 %v1810, %v300
        %v1819 = vsel %vm1762, %v1811, 0.0
        %1820 = vadd.xlane.f32.xlu0 %v1819
        %v1821 = vpop.xlane.xlu0 %1820
        %v1822 = vsel %vm1762, %v1812, 0.0
        %1823 = vadd.xlane.f32.xlu0 %v1822
        %v1824 = vpop.xlane.xlu0 %1823
        %v1825 = vsel %vm1762, %v1813, 0.0
        %1826 = vadd.xlane.f32.xlu0 %v1825
        %v1827 = vpop.xlane.xlu0 %1826
        %v1828 = vsel %vm1762, %v1814, 0.0
        %1829 = vadd.xlane.f32.xlu0 %v1828
        %v1830 = vpop.xlane.xlu0 %1829
        %v1831 = vsel %vm1762, %v1815, 0.0
        %1832 = vadd.xlane.f32.xlu0 %v1831
        %v1833 = vpop.xlane.xlu0 %1832
        %v1834 = vsel %vm1762, %v1816, 0.0
        %1835 = vadd.xlane.f32.xlu0 %v1834
        %v1836 = vpop.xlane.xlu0 %1835
        %v1837 = vsel %vm1762, %v1817, 0.0
        %1838 = vadd.xlane.f32.xlu0 %v1837
        %v1839 = vpop.xlane.xlu0 %1838
        %v1840 = vsel %vm1762, %v1818, 0.0
        %1841 = vadd.xlane.f32.xlu0 %v1840
        %v1842 = vpop.xlane.xlu0 %1841
        %vm1843 = vcmp.gt.f32.partialorder %v1821, 0.0
        %vm1844 = vcmp.gt.f32.partialorder %v1824, 0.0
        %vm1845 = vcmp.gt.f32.partialorder %v1827, 0.0
        %vm1846 = vcmp.gt.f32.partialorder %v1830, 0.0
        %vm1847 = vcmp.gt.f32.partialorder %v1833, 0.0
        %vm1848 = vcmp.gt.f32.partialorder %v1836, 0.0
        %vm1849 = vcmp.gt.f32.partialorder %v1839, 0.0
        %vm1850 = vcmp.gt.f32.partialorder %v1842, 0.0
        %v1851 = vsel %vm1843, %v1821, 1.0
        %v1852 = vsel %vm1844, %v1824, 1.0
        %v1853 = vsel %vm1845, %v1827, 1.0
        %v1854 = vsel %vm1846, %v1830, 1.0
        %v1855 = vsel %vm1847, %v1833, 1.0
        %v1856 = vsel %vm1848, %v1836, 1.0
        %v1857 = vsel %vm1849, %v1839, 1.0
        %v1858 = vsel %vm1850, %v1842, 1.0
        %v1859 = vrcp.pop %v1851
        %v1860 = vrcp.pop %v1852
        %v1861 = vrcp.pop %v1853
        %v1862 = vrcp.pop %v1854
        %v1863 = vrcp.pop %v1855
        %v1864 = vrcp.pop %v1856
        %v1865 = vrcp.pop %v1857
        %v1866 = vrcp.pop %v1858
        %v1867 = vmul.f32 %v1811, %v1859
        %v1868 = vmul.f32 %v1812, %v1860
        %v1869 = vmul.f32 %v1813, %v1861
        %v1870 = vmul.f32 %v1814, %v1862
        %v1871 = vmul.f32 %v1815, %v1863
        %v1872 = vmul.f32 %v1816, %v1864
        %v1873 = vmul.f32 %v1817, %v1865
        %v1874 = vmul.f32 %v1818, %v1866
        %v1876 = vsel %vm1762, %v1867, 0
        %v1879 = vsel %vm1762, %v1868, 0
        %1881 = vmatprep.subr.mxu0 0.0
        %1882 = vmatpush1.msra.mxu0 %v1160
        %1883 = vmatprep.subr.mxu0 0.0
        %1884 = vmatpush1.msra.mxu0 %v1165
        %1885 = vmatprep.subr.mxu0 0.0
        %1886 = vmatpush1.msra.mxu0 0.0
        %1887 = vmatprep.subr.mxu0 0.0
        %1888 = vmatpush1.msra.mxu0 0.0
        %1889 = vmatprep.subr.mxu0 0.0
        %1890 = vmatpush1.msra.mxu0 0.0
        %1891 = vmatprep.subr.mxu0 0.0
        %1892 = vmatpush1.msra.mxu0 0.0
        %1893 = vmatprep.subr.mxu0 0.0
        %1894 = vmatpush1.msra.mxu0 0.0
        %1895 = vmatprep.subr.mxu0 0.0
        %1896 = vmatpush1.msra.mxu0 0.0
        %1897 = vmatprep.subr.mxu0 0.0
        %1898 = vmatpush1.msra.mxu0 0.0
        %1899 = vmatprep.subr.mxu0 0.0
        %1900 = vmatpush1.msra.mxu0 0.0
        %1901 = vmatprep.subr.mxu0 0.0
        %1902 = vmatpush1.msra.mxu0 0.0
        %1903 = vmatprep.subr.mxu0 0.0
        %1904 = vmatpush1.msra.mxu0 0.0
        %1905 = vmatprep.subr.mxu0 0.0
        %1906 = vmatpush1.msra.mxu0 0.0
        %1907 = vmatprep.subr.mxu0 0.0
        %1908 = vmatpush1.msra.mxu0 0.0
        %1909 = vmatprep.subr.mxu0 0.0
        %1910 = vmatpush1.msra.mxu0 0.0
        %1911 = vmatprep.subr.mxu0 0.0
        %1912 = vmatpush1.msra.mxu0 0.0
        %1913 = vmatprep.subr.mxu0 0.0
        %1914 = vmatpush1.msra.mxu0 0.0
        %1915 = vmatprep.subr.mxu0 0.0
        %1916 = vmatpush1.msra.mxu0 0.0
        %1917 = vmatprep.subr.mxu0 0.0
        %1918 = vmatpush1.msra.mxu0 0.0
        %1919 = vmatprep.subr.mxu0 0.0
        %1920 = vmatpush1.msra.mxu0 0.0
        %1921 = vmatprep.subr.mxu0 0.0
        %1922 = vmatpush1.msra.mxu0 0.0
        %1923 = vmatprep.subr.mxu0 0.0
        %1924 = vmatpush1.msra.mxu0 0.0
        %1925 = vmatprep.subr.mxu0 0.0
        %1926 = vmatpush1.msra.mxu0 0.0
        %1927 = vmatprep.subr.mxu0 0.0
        %1928 = vmatpush1.msra.mxu0 0.0
        %1929 = vmatprep.subr.mxu0 0.0
        %1930 = vmatpush1.msra.mxu0 0.0
        %1931 = vmatprep.subr.mxu0 0.0
        %1932 = vmatpush1.msra.mxu0 0.0
        %1933 = vmatprep.subr.mxu0 0.0
        %1934 = vmatpush1.msra.mxu0 0.0
        %1935 = vmatprep.subr.mxu0 0.0
        %1936 = vmatpush1.msra.mxu0 0.0
        %1937 = vmatprep.subr.mxu0 0.0
        %1938 = vmatpush1.msra.mxu0 0.0
        %1939 = vmatprep.subr.mxu0 0.0
        %1940 = vmatpush1.msra.mxu0 0.0
        %1941 = vmatprep.subr.mxu0 0.0
        %1942 = vmatpush1.msra.mxu0 0.0
        %1943 = vmatprep.subr.mxu0 0.0
        %1944 = vmatpush1.msra.mxu0 0.0
        %1945 = vmatprep.mubr.f32.mxu0 0.0
        %1946 = vmatmul.mubr.f32.gmra.mrb[0].mxu0 %v1876
        %v1947 = vpop.f32.mrb[0].mxu0
        %v1948 = vadd.f32 0.0, %v1947
        %v1949 = vpop.f32.mrb[0].mxu0
        %1950 = vmatprep.mubr.f32.mxu0 0.0
        %1951 = vmatmul.mubr.f32.gmra.mrb[0].mxu0 %v1879
        %v1952 = vpop.f32.mrb[0].mxu0
        %v1953 = vadd.f32 0.0, %v1952
        %v1954 = vpop.f32.mrb[0].mxu0
        %1955 = vdwg.mxu0
        %v1957 = vsel %vm1762, %v1869, 0
        %v1960 = vsel %vm1762, %v1870, 0
        %1962 = vmatprep.subr.mxu0 0.0
        %1963 = vmatpush1.msra.mxu0 %v1235
        %1964 = vmatprep.subr.mxu0 0.0
        %1965 = vmatpush1.msra.mxu0 %v1240
        %1966 = vmatprep.subr.mxu0 0.0
        %1967 = vmatpush1.msra.mxu0 0.0
        %1968 = vmatprep.subr.mxu0 0.0
        %1969 = vmatpush1.msra.mxu0 0.0
        %1970 = vmatprep.subr.mxu0 0.0
        %1971 = vmatpush1.msra.mxu0 0.0
        %1972 = vmatprep.subr.mxu0 0.0
        %1973 = vmatpush1.msra.mxu0 0.0
        %1974 = vmatprep.subr.mxu0 0.0
        %1975 = vmatpush1.msra.mxu0 0.0
        %1976 = vmatprep.subr.mxu0 0.0
        %1977 = vmatpush1.msra.mxu0 0.0
        %1978 = vmatprep.subr.mxu0 0.0
        %1979 = vmatpush1.msra.mxu0 0.0
        %1980 = vmatprep.subr.mxu0 0.0
        %1981 = vmatpush1.msra.mxu0 0.0
        %1982 = vmatprep.subr.mxu0 0.0
        %1983 = vmatpush1.msra.mxu0 0.0
        %1984 = vmatprep.subr.mxu0 0.0
        %1985 = vmatpush1.msra.mxu0 0.0
        %1986 = vmatprep.subr.mxu0 0.0
        %1987 = vmatpush1.msra.mxu0 0.0
        %1988 = vmatprep.subr.mxu0 0.0
        %1989 = vmatpush1.msra.mxu0 0.0
        %1990 = vmatprep.subr.mxu0 0.0
        %1991 = vmatpush1.msra.mxu0 0.0
        %1992 = vmatprep.subr.mxu0 0.0
        %1993 = vmatpush1.msra.mxu0 0.0
        %1994 = vmatprep.subr.mxu0 0.0
        %1995 = vmatpush1.msra.mxu0 0.0
        %1996 = vmatprep.subr.mxu0 0.0
        %1997 = vmatpush1.msra.mxu0 0.0
        %1998 = vmatprep.subr.mxu0 0.0
        %1999 = vmatpush1.msra.mxu0 0.0
        %2000 = vmatprep.subr.mxu0 0.0
        %2001 = vmatpush1.msra.mxu0 0.0
        %2002 = vmatprep.subr.mxu0 0.0
        %2003 = vmatpush1.msra.mxu0 0.0
        %2004 = vmatprep.subr.mxu0 0.0
        %2005 = vmatpush1.msra.mxu0 0.0
        %2006 = vmatprep.subr.mxu0 0.0
        %2007 = vmatpush1.msra.mxu0 0.0
        %2008 = vmatprep.subr.mxu0 0.0
        %2009 = vmatpush1.msra.mxu0 0.0
        %2010 = vmatprep.subr.mxu0 0.0
        %2011 = vmatpush1.msra.mxu0 0.0
        %2012 = vmatprep.subr.mxu0 0.0
        %2013 = vmatpush1.msra.mxu0 0.0
        %2014 = vmatprep.subr.mxu0 0.0
        %2015 = vmatpush1.msra.mxu0 0.0
        %2016 = vmatprep.subr.mxu0 0.0
        %2017 = vmatpush1.msra.mxu0 0.0
        %2018 = vmatprep.subr.mxu0 0.0
        %2019 = vmatpush1.msra.mxu0 0.0
        %2020 = vmatprep.subr.mxu0 0.0
        %2021 = vmatpush1.msra.mxu0 0.0
        %2022 = vmatprep.subr.mxu0 0.0
        %2023 = vmatpush1.msra.mxu0 0.0
        %2024 = vmatprep.subr.mxu0 0.0
        %2025 = vmatpush1.msra.mxu0 0.0
        %2026 = vmatprep.mubr.f32.mxu0 0.0
        %2027 = vmatmul.mubr.f32.gmra.mrb[0].mxu0 %v1957
        %v2028 = vpop.f32.mrb[0].mxu0
        %v2029 = vadd.f32 0.0, %v2028
        %v2030 = vpop.f32.mrb[0].mxu0
        %2031 = vmatprep.mubr.f32.mxu0 0.0
        %2032 = vmatmul.mubr.f32.gmra.mrb[0].mxu0 %v1960
        %v2033 = vpop.f32.mrb[0].mxu0
        %v2034 = vadd.f32 0.0, %v2033
        %v2035 = vpop.f32.mrb[0].mxu0
        %2036 = vdwg.mxu0
        %v2038 = vsel %vm1762, %v1871, 0
        %v2041 = vsel %vm1762, %v1872, 0
        %2043 = vmatprep.subr.mxu0 0.0
        %2044 = vmatpush1.msra.mxu0 %v1310
        %2045 = vmatprep.subr.mxu0 0.0
        %2046 = vmatpush1.msra.mxu0 %v1315
        %2047 = vmatprep.subr.mxu0 0.0
        %2048 = vmatpush1.msra.mxu0 0.0
        %2049 = vmatprep.subr.mxu0 0.0
        %2050 = vmatpush1.msra.mxu0 0.0
        %2051 = vmatprep.subr.mxu0 0.0
        %2052 = vmatpush1.msra.mxu0 0.0
        %2053 = vmatprep.subr.mxu0 0.0
        %2054 = vmatpush1.msra.mxu0 0.0
        %2055 = vmatprep.subr.mxu0 0.0
        %2056 = vmatpush1.msra.mxu0 0.0
        %2057 = vmatprep.subr.mxu0 0.0
        %2058 = vmatpush1.msra.mxu0 0.0
        %2059 = vmatprep.subr.mxu0 0.0
        %2060 = vmatpush1.msra.mxu0 0.0
        %2061 = vmatprep.subr.mxu0 0.0
        %2062 = vmatpush1.msra.mxu0 0.0
        %2063 = vmatprep.subr.mxu0 0.0
        %2064 = vmatpush1.msra.mxu0 0.0
        %2065 = vmatprep.subr.mxu0 0.0
        %2066 = vmatpush1.msra.mxu0 0.0
        %2067 = vmatprep.subr.mxu0 0.0
        %2068 = vmatpush1.msra.mxu0 0.0
        %2069 = vmatprep.subr.mxu0 0.0
        %2070 = vmatpush1.msra.mxu0 0.0
        %2071 = vmatprep.subr.mxu0 0.0
        %2072 = vmatpush1.msra.mxu0 0.0
        %2073 = vmatprep.subr.mxu0 0.0
        %2074 = vmatpush1.msra.mxu0 0.0
        %2075 = vmatprep.subr.mxu0 0.0
        %2076 = vmatpush1.msra.mxu0 0.0
        %2077 = vmatprep.subr.mxu0 0.0
        %2078 = vmatpush1.msra.mxu0 0.0
        %2079 = vmatprep.subr.mxu0 0.0
        %2080 = vmatpush1.msra.mxu0 0.0
        %2081 = vmatprep.subr.mxu0 0.0
        %2082 = vmatpush1.msra.mxu0 0.0
        %2083 = vmatprep.subr.mxu0 0.0
        %2084 = vmatpush1.msra.mxu0 0.0
        %2085 = vmatprep.subr.mxu0 0.0
        %2086 = vmatpush1.msra.mxu0 0.0
        %2087 = vmatprep.subr.mxu0 0.0
        %2088 = vmatpush1.msra.mxu0 0.0
        %2089 = vmatprep.subr.mxu0 0.0
        %2090 = vmatpush1.msra.mxu0 0.0
        %2091 = vmatprep.subr.mxu0 0.0
        %2092 = vmatpush1.msra.mxu0 0.0
        %2093 = vmatprep.subr.mxu0 0.0
        %2094 = vmatpush1.msra.mxu0 0.0
        %2095 = vmatprep.subr.mxu0 0.0
        %2096 = vmatpush1.msra.mxu0 0.0
        %2097 = vmatprep.subr.mxu0 0.0
        %2098 = vmatpush1.msra.mxu0 0.0
        %2099 = vmatprep.subr.mxu0 0.0
        %2100 = vmatpush1.msra.mxu0 0.0
        %2101 = vmatprep.subr.mxu0 0.0
        %2102 = vmatpush1.msra.mxu0 0.0
        %2103 = vmatprep.subr.mxu0 0.0
        %2104 = vmatpush1.msra.mxu0 0.0
        %2105 = vmatprep.subr.mxu0 0.0
        %2106 = vmatpush1.msra.mxu0 0.0
        %2107 = vmatprep.mubr.f32.mxu0 0.0
        %2108 = vmatmul.mubr.f32.gmra.mrb[0].mxu0 %v2038
        %v2109 = vpop.f32.mrb[0].mxu0
        %v2110 = vadd.f32 0.0, %v2109
        %v2111 = vpop.f32.mrb[0].mxu0
        %2112 = vmatprep.mubr.f32.mxu0 0.0
        %2113 = vmatmul.mubr.f32.gmra.mrb[0].mxu0 %v2041
        %v2114 = vpop.f32.mrb[0].mxu0
        %v2115 = vadd.f32 0.0, %v2114
        %v2116 = vpop.f32.mrb[0].mxu0
        %2117 = vdwg.mxu0
        %v2119 = vsel %vm1762, %v1873, 0
        %v2122 = vsel %vm1762, %v1874, 0
        %2124 = vmatprep.subr.mxu0 0.0
        %2125 = vmatpush1.msra.mxu0 %v1385
        %2126 = vmatprep.subr.mxu0 0.0
        %2127 = vmatpush1.msra.mxu0 %v1390
        %2128 = vmatprep.subr.mxu0 0.0
        %2129 = vmatpush1.msra.mxu0 0.0
        %2130 = vmatprep.subr.mxu0 0.0
        %2131 = vmatpush1.msra.mxu0 0.0
        %2132 = vmatprep.subr.mxu0 0.0
        %2133 = vmatpush1.msra.mxu0 0.0
        %2134 = vmatprep.subr.mxu0 0.0
        %2135 = vmatpush1.msra.mxu0 0.0
        %2136 = vmatprep.subr.mxu0 0.0
        %2137 = vmatpush1.msra.mxu0 0.0
        %2138 = vmatprep.subr.mxu0 0.0
        %2139 = vmatpush1.msra.mxu0 0.0
        %2140 = vmatprep.subr.mxu0 0.0
        %2141 = vmatpush1.msra.mxu0 0.0
        %2142 = vmatprep.subr.mxu0 0.0
        %2143 = vmatpush1.msra.mxu0 0.0
        %2144 = vmatprep.subr.mxu0 0.0
        %2145 = vmatpush1.msra.mxu0 0.0
        %2146 = vmatprep.subr.mxu0 0.0
        %2147 = vmatpush1.msra.mxu0 0.0
        %2148 = vmatprep.subr.mxu0 0.0
        %2149 = vmatpush1.msra.mxu0 0.0
        %2150 = vmatprep.subr.mxu0 0.0
        %2151 = vmatpush1.msra.mxu0 0.0
        %2152 = vmatprep.subr.mxu0 0.0
        %2153 = vmatpush1.msra.mxu0 0.0
        %2154 = vmatprep.subr.mxu0 0.0
        %2155 = vmatpush1.msra.mxu0 0.0
        %2156 = vmatprep.subr.mxu0 0.0
        %2157 = vmatpush1.msra.mxu0 0.0
        %2158 = vmatprep.subr.mxu0 0.0
        %2159 = vmatpush1.msra.mxu0 0.0
        %2160 = vmatprep.subr.mxu0 0.0
        %2161 = vmatpush1.msra.mxu0 0.0
        %2162 = vmatprep.subr.mxu0 0.0
        %2163 = vmatpush1.msra.mxu0 0.0
        %2164 = vmatprep.subr.mxu0 0.0
        %2165 = vmatpush1.msra.mxu0 0.0
        %2166 = vmatprep.subr.mxu0 0.0
        %2167 = vmatpush1.msra.mxu0 0.0
        %2168 = vmatprep.subr.mxu0 0.0
        %2169 = vmatpush1.msra.mxu0 0.0
        %2170 = vmatprep.subr.mxu0 0.0
        %2171 = vmatpush1.msra.mxu0 0.0
        %2172 = vmatprep.subr.mxu0 0.0
        %2173 = vmatpush1.msra.mxu0 0.0
        %2174 = vmatprep.subr.mxu0 0.0
        %2175 = vmatpush1.msra.mxu0 0.0
        %2176 = vmatprep.subr.mxu0 0.0
        %2177 = vmatpush1.msra.mxu0 0.0
        %2178 = vmatprep.subr.mxu0 0.0
        %2179 = vmatpush1.msra.mxu0 0.0
        %2180 = vmatprep.subr.mxu0 0.0
        %2181 = vmatpush1.msra.mxu0 0.0
        %2182 = vmatprep.subr.mxu0 0.0
        %2183 = vmatpush1.msra.mxu0 0.0
        %2184 = vmatprep.subr.mxu0 0.0
        %2185 = vmatpush1.msra.mxu0 0.0
        %2186 = vmatprep.subr.mxu0 0.0
        %2187 = vmatpush1.msra.mxu0 0.0
        %2188 = vmatprep.mubr.f32.mxu0 0.0
        %2189 = vmatmul.mubr.f32.gmra.mrb[0].mxu0 %v2119
        %v2190 = vpop.f32.mrb[0].mxu0
        %v2191 = vadd.f32 0.0, %v2190
        %v2192 = vpop.f32.mrb[0].mxu0
        %2193 = vmatprep.mubr.f32.mxu0 0.0
        %2194 = vmatmul.mubr.f32.gmra.mrb[0].mxu0 %v2122
        %v2195 = vpop.f32.mrb[0].mxu0
        %v2196 = vadd.f32 0.0, %v2195
        %v2197 = vpop.f32.mrb[0].mxu0
        %2198 = vdwg.mxu0
        %v2199 = vsel %vm1762, %v299, 0.0
        %2200 = vadd.xlane.f32.xlu0 %v2199
        %v2201 = vpop.xlane.xlu0 %2200
        %v2202 = vsel %vm1762, %v300, 0.0
        %2203 = vadd.xlane.f32.xlu0 %v2202
        %v2204 = vpop.xlane.xlu0 %2203
        %vm2205 = vcmp.gt.f32.partialorder %v2201, 0.0
        %vm2206 = vcmp.gt.f32.partialorder %v2204, 0.0
        %v2207 = vsel %vm2205, 1, 0
        %v2208 = vsel %vm2206, 1, 0
        %vm2209 = vcmp.eq.s32.totalorder %v2207, 1
        %vm2210 = vcmp.eq.s32.totalorder %v2208, 1
        %v2211 = vsel %vm2209, %v1948, %v1160
        %v2212 = vsel %vm2210, %v1953, %v1165
        %v2213 = vsel %vm2209, %v2029, %v1235
        %v2214 = vsel %vm2210, %v2034, %v1240
        %v2215 = vsel %vm2209, %v2110, %v1310
        %v2216 = vsel %vm2210, %v2115, %v1315
        %v2217 = vsel %vm2209, %v2191, %v1385
        %v2218 = vsel %vm2210, %v2196, %v1390
        %v2219 = vld [vmem:[%s3] sm:$0xff]
        %v2220 = vld [vmem:[%s3 + $0x8] sm:$0xff]
        %v2221 = vld [vmem:[%s3 + $0x10] sm:$0xff]
        %v2222 = vld [vmem:[%s3 + $0x18] sm:$0xff]
        %v2223 = vld [vmem:[%s3 + $0x20] sm:$0xff]
        %v2224 = vld [vmem:[%s3 + $0x28] sm:$0xff]
        %v2225 = vld [vmem:[%s3 + $0x30] sm:$0xff]
        %v2226 = vld [vmem:[%s3 + $0x38] sm:$0xff]
        %v2227 = vld [vmem:[%s3 + $0x40] sm:$0xff]
        %v2228 = vld [vmem:[%s3 + $0x48] sm:$0xff]
        %v2229 = vld [vmem:[%s3 + $0x50] sm:$0xff]
        %v2230 = vld [vmem:[%s3 + $0x58] sm:$0xff]
        %v2231 = vld [vmem:[%s3 + $0x60] sm:$0xff]
        %v2232 = vld [vmem:[%s3 + $0x68] sm:$0xff]
        %v2233 = vld [vmem:[%s3 + $0x70] sm:$0xff]
        %v2234 = vld [vmem:[%s3 + $0x78] sm:$0xff]
        %v2236 = vsel %vm1393, %v2211, 0
        %v2239 = vsel %vm1393, %v2212, 0
        %2241 = vmatprep.subr.mxu0 0.0
        %2242 = vmatpush1.msra.mxu0 %v2219
        %2243 = vmatprep.subr.mxu0 0.0
        %2244 = vmatpush1.msra.mxu0 %v2220
        %2245 = vmatprep.subr.mxu0 0.0
        %2246 = vmatpush1.msra.mxu0 %v2221
        %2247 = vmatprep.subr.mxu0 0.0
        %2248 = vmatpush1.msra.mxu0 %v2222
        %2249 = vmatprep.subr.mxu0 0.0
        %2250 = vmatpush1.msra.mxu0 0.0
        %2251 = vmatprep.subr.mxu0 0.0
        %2252 = vmatpush1.msra.mxu0 0.0
        %2253 = vmatprep.subr.mxu0 0.0
        %2254 = vmatpush1.msra.mxu0 0.0
        %2255 = vmatprep.subr.mxu0 0.0
        %2256 = vmatpush1.msra.mxu0 0.0
        %2257 = vmatprep.subr.mxu0 0.0
        %2258 = vmatpush1.msra.mxu0 0.0
        %2259 = vmatprep.subr.mxu0 0.0
        %2260 = vmatpush1.msra.mxu0 0.0
        %2261 = vmatprep.subr.mxu0 0.0
        %2262 = vmatpush1.msra.mxu0 0.0
        %2263 = vmatprep.subr.mxu0 0.0
        %2264 = vmatpush1.msra.mxu0 0.0
        %2265 = vmatprep.subr.mxu0 0.0
        %2266 = vmatpush1.msra.mxu0 0.0
        %2267 = vmatprep.subr.mxu0 0.0
        %2268 = vmatpush1.msra.mxu0 0.0
        %2269 = vmatprep.subr.mxu0 0.0
        %2270 = vmatpush1.msra.mxu0 0.0
        %2271 = vmatprep.subr.mxu0 0.0
        %2272 = vmatpush1.msra.mxu0 0.0
        %2273 = vmatprep.subr.mxu0 0.0
        %2274 = vmatpush1.msra.mxu0 0.0
        %2275 = vmatprep.subr.mxu0 0.0
        %2276 = vmatpush1.msra.mxu0 0.0
        %2277 = vmatprep.subr.mxu0 0.0
        %2278 = vmatpush1.msra.mxu0 0.0
        %2279 = vmatprep.subr.mxu0 0.0
        %2280 = vmatpush1.msra.mxu0 0.0
        %2281 = vmatprep.subr.mxu0 0.0
        %2282 = vmatpush1.msra.mxu0 0.0
        %2283 = vmatprep.subr.mxu0 0.0
        %2284 = vmatpush1.msra.mxu0 0.0
        %2285 = vmatprep.subr.mxu0 0.0
        %2286 = vmatpush1.msra.mxu0 0.0
        %2287 = vmatprep.subr.mxu0 0.0
        %2288 = vmatpush1.msra.mxu0 0.0
        %2289 = vmatprep.subr.mxu0 0.0
        %2290 = vmatpush1.msra.mxu0 0.0
        %2291 = vmatprep.subr.mxu0 0.0
        %2292 = vmatpush1.msra.mxu0 0.0
        %2293 = vmatprep.subr.mxu0 0.0
        %2294 = vmatpush1.msra.mxu0 0.0
        %2295 = vmatprep.subr.mxu0 0.0
        %2296 = vmatpush1.msra.mxu0 0.0
        %2297 = vmatprep.subr.mxu0 0.0
        %2298 = vmatpush1.msra.mxu0 0.0
        %2299 = vmatprep.subr.mxu0 0.0
        %2300 = vmatpush1.msra.mxu0 0.0
        %2301 = vmatprep.subr.mxu0 0.0
        %2302 = vmatpush1.msra.mxu0 0.0
        %2303 = vmatprep.subr.mxu0 0.0
        %2304 = vmatpush1.msra.mxu0 0.0
        %2305 = vmatprep.mubr.f32.mxu0 0.0
        %2306 = vmatmul.mubr.f32.gmra.mrb[0].mxu0 %v2236
        %v2307 = vpop.f32.mrb[0].mxu0
        %v2308 = vadd.f32 0.0, %v2307
        %v2309 = vpop.f32.mrb[0].mxu0
        %2310 = vmatprep.mubr.f32.mxu0 0.0
        %2311 = vmatmul.mubr.f32.gmra.mrb[0].mxu0 %v2239
        %v2312 = vpop.f32.mrb[0].mxu0
        %v2313 = vadd.f32 0.0, %v2312
        %v2314 = vpop.f32.mrb[0].mxu0
        %2315 = vdwg.mxu0
        %v2317 = vsel %vm1393, %v2213, 0
        %v2320 = vsel %vm1393, %v2214, 0
        %2322 = vmatprep.subr.mxu0 0.0
        %2323 = vmatpush1.msra.mxu0 %v2223
        %2324 = vmatprep.subr.mxu0 0.0
        %2325 = vmatpush1.msra.mxu0 %v2224
        %2326 = vmatprep.subr.mxu0 0.0
        %2327 = vmatpush1.msra.mxu0 %v2225
        %2328 = vmatprep.subr.mxu0 0.0
        %2329 = vmatpush1.msra.mxu0 %v2226
        %2330 = vmatprep.subr.mxu0 0.0
        %2331 = vmatpush1.msra.mxu0 0.0
        %2332 = vmatprep.subr.mxu0 0.0
        %2333 = vmatpush1.msra.mxu0 0.0
        %2334 = vmatprep.subr.mxu0 0.0
        %2335 = vmatpush1.msra.mxu0 0.0
        %2336 = vmatprep.subr.mxu0 0.0
        %2337 = vmatpush1.msra.mxu0 0.0
        %2338 = vmatprep.subr.mxu0 0.0
        %2339 = vmatpush1.msra.mxu0 0.0
        %2340 = vmatprep.subr.mxu0 0.0
        %2341 = vmatpush1.msra.mxu0 0.0
        %2342 = vmatprep.subr.mxu0 0.0
        %2343 = vmatpush1.msra.mxu0 0.0
        %2344 = vmatprep.subr.mxu0 0.0
        %2345 = vmatpush1.msra.mxu0 0.0
        %2346 = vmatprep.subr.mxu0 0.0
        %2347 = vmatpush1.msra.mxu0 0.0
        %2348 = vmatprep.subr.mxu0 0.0
        %2349 = vmatpush1.msra.mxu0 0.0
        %2350 = vmatprep.subr.mxu0 0.0
        %2351 = vmatpush1.msra.mxu0 0.0
        %2352 = vmatprep.subr.mxu0 0.0
        %2353 = vmatpush1.msra.mxu0 0.0
        %2354 = vmatprep.subr.mxu0 0.0
        %2355 = vmatpush1.msra.mxu0 0.0
        %2356 = vmatprep.subr.mxu0 0.0
        %2357 = vmatpush1.msra.mxu0 0.0
        %2358 = vmatprep.subr.mxu0 0.0
        %2359 = vmatpush1.msra.mxu0 0.0
        %2360 = vmatprep.subr.mxu0 0.0
        %2361 = vmatpush1.msra.mxu0 0.0
        %2362 = vmatprep.subr.mxu0 0.0
        %2363 = vmatpush1.msra.mxu0 0.0
        %2364 = vmatprep.subr.mxu0 0.0
        %2365 = vmatpush1.msra.mxu0 0.0
        %2366 = vmatprep.subr.mxu0 0.0
        %2367 = vmatpush1.msra.mxu0 0.0
        %2368 = vmatprep.subr.mxu0 0.0
        %2369 = vmatpush1.msra.mxu0 0.0
        %2370 = vmatprep.subr.mxu0 0.0
        %2371 = vmatpush1.msra.mxu0 0.0
        %2372 = vmatprep.subr.mxu0 0.0
        %2373 = vmatpush1.msra.mxu0 0.0
        %2374 = vmatprep.subr.mxu0 0.0
        %2375 = vmatpush1.msra.mxu0 0.0
        %2376 = vmatprep.subr.mxu0 0.0
        %2377 = vmatpush1.msra.mxu0 0.0
        %2378 = vmatprep.subr.mxu0 0.0
        %2379 = vmatpush1.msra.mxu0 0.0
        %2380 = vmatprep.subr.mxu0 0.0
        %2381 = vmatpush1.msra.mxu0 0.0
        %2382 = vmatprep.subr.mxu0 0.0
        %2383 = vmatpush1.msra.mxu0 0.0
        %2384 = vmatprep.subr.mxu0 0.0
        %2385 = vmatpush1.msra.mxu0 0.0
        %2386 = vmatprep.mubr.f32.mxu0 0.0
        %2387 = vmatmul.mubr.f32.gmra.mrb[0].mxu0 %v2317
        %v2388 = vpop.f32.mrb[0].mxu0
        %v2389 = vadd.f32 0.0, %v2388
        %v2390 = vpop.f32.mrb[0].mxu0
        %2391 = vmatprep.mubr.f32.mxu0 0.0
        %2392 = vmatmul.mubr.f32.gmra.mrb[0].mxu0 %v2320
        %v2393 = vpop.f32.mrb[0].mxu0
        %v2394 = vadd.f32 0.0, %v2393
        %v2395 = vpop.f32.mrb[0].mxu0
        %2396 = vdwg.mxu0
        %v2398 = vsel %vm1393, %v2215, 0
        %v2401 = vsel %vm1393, %v2216, 0
        %2403 = vmatprep.subr.mxu0 0.0
        %2404 = vmatpush1.msra.mxu0 %v2227
        %2405 = vmatprep.subr.mxu0 0.0
        %2406 = vmatpush1.msra.mxu0 %v2228
        %2407 = vmatprep.subr.mxu0 0.0
        %2408 = vmatpush1.msra.mxu0 %v2229
        %2409 = vmatprep.subr.mxu0 0.0
        %2410 = vmatpush1.msra.mxu0 %v2230
        %2411 = vmatprep.subr.mxu0 0.0
        %2412 = vmatpush1.msra.mxu0 0.0
        %2413 = vmatprep.subr.mxu0 0.0
        %2414 = vmatpush1.msra.mxu0 0.0
        %2415 = vmatprep.subr.mxu0 0.0
        %2416 = vmatpush1.msra.mxu0 0.0
        %2417 = vmatprep.subr.mxu0 0.0
        %2418 = vmatpush1.msra.mxu0 0.0
        %2419 = vmatprep.subr.mxu0 0.0
        %2420 = vmatpush1.msra.mxu0 0.0
        %2421 = vmatprep.subr.mxu0 0.0
        %2422 = vmatpush1.msra.mxu0 0.0
        %2423 = vmatprep.subr.mxu0 0.0
        %2424 = vmatpush1.msra.mxu0 0.0
        %2425 = vmatprep.subr.mxu0 0.0
        %2426 = vmatpush1.msra.mxu0 0.0
        %2427 = vmatprep.subr.mxu0 0.0
        %2428 = vmatpush1.msra.mxu0 0.0
        %2429 = vmatprep.subr.mxu0 0.0
        %2430 = vmatpush1.msra.mxu0 0.0
        %2431 = vmatprep.subr.mxu0 0.0
        %2432 = vmatpush1.msra.mxu0 0.0
        %2433 = vmatprep.subr.mxu0 0.0
        %2434 = vmatpush1.msra.mxu0 0.0
        %2435 = vmatprep.subr.mxu0 0.0
        %2436 = vmatpush1.msra.mxu0 0.0
        %2437 = vmatprep.subr.mxu0 0.0
        %2438 = vmatpush1.msra.mxu0 0.0
        %2439 = vmatprep.subr.mxu0 0.0
        %2440 = vmatpush1.msra.mxu0 0.0
        %2441 = vmatprep.subr.mxu0 0.0
        %2442 = vmatpush1.msra.mxu0 0.0
        %2443 = vmatprep.subr.mxu0 0.0
        %2444 = vmatpush1.msra.mxu0 0.0
        %2445 = vmatprep.subr.mxu0 0.0
        %2446 = vmatpush1.msra.mxu0 0.0
        %2447 = vmatprep.subr.mxu0 0.0
        %2448 = vmatpush1.msra.mxu0 0.0
        %2449 = vmatprep.subr.mxu0 0.0
        %2450 = vmatpush1.msra.mxu0 0.0
        %2451 = vmatprep.subr.mxu0 0.0
        %2452 = vmatpush1.msra.mxu0 0.0
        %2453 = vmatprep.subr.mxu0 0.0
        %2454 = vmatpush1.msra.mxu0 0.0
        %2455 = vmatprep.subr.mxu0 0.0
        %2456 = vmatpush1.msra.mxu0 0.0
        %2457 = vmatprep.subr.mxu0 0.0
        %2458 = vmatpush1.msra.mxu0 0.0
        %2459 = vmatprep.subr.mxu0 0.0
        %2460 = vmatpush1.msra.mxu0 0.0
        %2461 = vmatprep.subr.mxu0 0.0
        %2462 = vmatpush1.msra.mxu0 0.0
        %2463 = vmatprep.subr.mxu0 0.0
        %2464 = vmatpush1.msra.mxu0 0.0
        %2465 = vmatprep.subr.mxu0 0.0
        %2466 = vmatpush1.msra.mxu0 0.0
        %2467 = vmatprep.mubr.f32.mxu0 0.0
        %2468 = vmatmul.mubr.f32.gmra.mrb[0].mxu0 %v2398
        %v2469 = vpop.f32.mrb[0].mxu0
        %v2470 = vadd.f32 0.0, %v2469
        %v2471 = vpop.f32.mrb[0].mxu0
        %2472 = vmatprep.mubr.f32.mxu0 0.0
        %2473 = vmatmul.mubr.f32.gmra.mrb[0].mxu0 %v2401
        %v2474 = vpop.f32.mrb[0].mxu0
        %v2475 = vadd.f32 0.0, %v2474
        %v2476 = vpop.f32.mrb[0].mxu0
        %2477 = vdwg.mxu0
        %v2479 = vsel %vm1393, %v2217, 0
        %v2482 = vsel %vm1393, %v2218, 0
        %2484 = vmatprep.subr.mxu0 0.0
        %2485 = vmatpush1.msra.mxu0 %v2231
        %2486 = vmatprep.subr.mxu0 0.0
        %2487 = vmatpush1.msra.mxu0 %v2232
        %2488 = vmatprep.subr.mxu0 0.0
        %2489 = vmatpush1.msra.mxu0 %v2233
        %2490 = vmatprep.subr.mxu0 0.0
        %2491 = vmatpush1.msra.mxu0 %v2234
        %2492 = vmatprep.subr.mxu0 0.0
        %2493 = vmatpush1.msra.mxu0 0.0
        %2494 = vmatprep.subr.mxu0 0.0
        %2495 = vmatpush1.msra.mxu0 0.0
        %2496 = vmatprep.subr.mxu0 0.0
        %2497 = vmatpush1.msra.mxu0 0.0
        %2498 = vmatprep.subr.mxu0 0.0
        %2499 = vmatpush1.msra.mxu0 0.0
        %2500 = vmatprep.subr.mxu0 0.0
        %2501 = vmatpush1.msra.mxu0 0.0
        %2502 = vmatprep.subr.mxu0 0.0
        %2503 = vmatpush1.msra.mxu0 0.0
        %2504 = vmatprep.subr.mxu0 0.0
        %2505 = vmatpush1.msra.mxu0 0.0
        %2506 = vmatprep.subr.mxu0 0.0
        %2507 = vmatpush1.msra.mxu0 0.0
        %2508 = vmatprep.subr.mxu0 0.0
        %2509 = vmatpush1.msra.mxu0 0.0
        %2510 = vmatprep.subr.mxu0 0.0
        %2511 = vmatpush1.msra.mxu0 0.0
        %2512 = vmatprep.subr.mxu0 0.0
        %2513 = vmatpush1.msra.mxu0 0.0
        %2514 = vmatprep.subr.mxu0 0.0
        %2515 = vmatpush1.msra.mxu0 0.0
        %2516 = vmatprep.subr.mxu0 0.0
        %2517 = vmatpush1.msra.mxu0 0.0
        %2518 = vmatprep.subr.mxu0 0.0
        %2519 = vmatpush1.msra.mxu0 0.0
        %2520 = vmatprep.subr.mxu0 0.0
        %2521 = vmatpush1.msra.mxu0 0.0
        %2522 = vmatprep.subr.mxu0 0.0
        %2523 = vmatpush1.msra.mxu0 0.0
        %2524 = vmatprep.subr.mxu0 0.0
        %2525 = vmatpush1.msra.mxu0 0.0
        %2526 = vmatprep.subr.mxu0 0.0
        %2527 = vmatpush1.msra.mxu0 0.0
        %2528 = vmatprep.subr.mxu0 0.0
        %2529 = vmatpush1.msra.mxu0 0.0
        %2530 = vmatprep.subr.mxu0 0.0
        %2531 = vmatpush1.msra.mxu0 0.0
        %2532 = vmatprep.subr.mxu0 0.0
        %2533 = vmatpush1.msra.mxu0 0.0
        %2534 = vmatprep.subr.mxu0 0.0
        %2535 = vmatpush1.msra.mxu0 0.0
        %2536 = vmatprep.subr.mxu0 0.0
        %2537 = vmatpush1.msra.mxu0 0.0
        %2538 = vmatprep.subr.mxu0 0.0
        %2539 = vmatpush1.msra.mxu0 0.0
        %2540 = vmatprep.subr.mxu0 0.0
        %2541 = vmatpush1.msra.mxu0 0.0
        %2542 = vmatprep.subr.mxu0 0.0
        %2543 = vmatpush1.msra.mxu0 0.0
        %2544 = vmatprep.subr.mxu0 0.0
        %2545 = vmatpush1.msra.mxu0 0.0
        %2546 = vmatprep.subr.mxu0 0.0
        %2547 = vmatpush1.msra.mxu0 0.0
        %2548 = vmatprep.mubr.f32.mxu0 0.0
        %2549 = vmatmul.mubr.f32.gmra.mrb[0].mxu0 %v2479
        %v2550 = vpop.f32.mrb[0].mxu0
        %v2551 = vadd.f32 0.0, %v2550
        %v2552 = vpop.f32.mrb[0].mxu0
        %2553 = vmatprep.mubr.f32.mxu0 0.0
        %2554 = vmatmul.mubr.f32.gmra.mrb[0].mxu0 %v2482
        %v2555 = vpop.f32.mrb[0].mxu0
        %v2556 = vadd.f32 0.0, %v2555
        %v2557 = vpop.f32.mrb[0].mxu0
        %2558 = vdwg.mxu0
        %v2559 = vadd.f32 %v2308, %v2389
        %v2560 = vadd.f32 %v2559, %v2470
        %v2561 = vadd.f32 %v2560, %v2551
        %v2562 = vadd.f32 %v2313, %v2394
        %v2563 = vadd.f32 %v2562, %v2475
        %v2564 = vadd.f32 %v2563, %v2556
        %v2565 = vld [vmem:[%s6] sm:$0xff]
        %v2566 = vld [vmem:[%s6 + $0x8] sm:$0xff]
        %v2567 = vadd.f32 %v2561, %v297
        %v2568 = vadd.f32 %v2564, %v298
        %2569 = vadd.xlane.f32.xlu0 %v2567
        %v2570 = vpop.xlane.xlu0 %2569
        %2571 = vadd.xlane.f32.xlu0 %v2568
        %v2572 = vpop.xlane.xlu0 %2571
        %v2573 = vrcp.pop 128.0
        %v2574 = vmul.f32 %v2570, %v2573
        %v2575 = vmul.f32 %v2572, %v2573
        %v2576 = vsub.f32 %v2567, %v2574
        %v2577 = vsub.f32 %v2568, %v2575
        %v2578 = vmul.f32 %v2576, %v2576
        %v2579 = vmul.f32 %v2577, %v2577
        %2580 = vadd.xlane.f32.xlu0 %v2578
        %v2581 = vpop.xlane.xlu0 %2580
        %2582 = vadd.xlane.f32.xlu0 %v2579
        %v2583 = vpop.xlane.xlu0 %2582
        %v2584 = vmul.f32 %v2581, %v2573
        %v2585 = vmul.f32 %v2583, %v2573
        %v2586 = vadd.f32 %v2584, 1e-05
        %v2587 = vadd.f32 %v2585, 1e-05
        %v2588 = vrsqrt.pop %v2586
        %v2589 = vrsqrt.pop %v2587
        %v2590 = vmul.f32 %v2576, %v2588
        %v2591 = vmul.f32 %v2577, %v2589
        %v2592 = vlaneseq
        %v2593 = vshrl.u32 %v2592, 7
        %v2594 = vsub.s32 0, %v2593
        %v2595 = vrot.slane %v2565, %v2594
        %v2596 = vmul.f32 %v2590, %v2595
        %v2597 = vmul.f32 %v2591, %v2595
        %v2598 = vlaneseq
        %v2599 = vshrl.u32 %v2598, 7
        %v2600 = vsub.s32 1, %v2599
        %v2601 = vrot.slane %v2565, %v2600
        %v2602 = vadd.f32 %v2596, %v2601
        %v2603 = vadd.f32 %v2597, %v2601
        %v2604 = vld [vmem:[%s4] sm:$0xff]
        %v2605 = vld [vmem:[%s4 + $0x8] sm:$0xff]
        %v2606 = vld [vmem:[%s4 + $0x10] sm:$0xff]
        %v2607 = vld [vmem:[%s4 + $0x18] sm:$0xff]
        %v2608 = vld [vmem:[%s4 + $0x20] sm:$0xff]
        %v2609 = vld [vmem:[%s4 + $0x28] sm:$0xff]
        %v2610 = vld [vmem:[%s4 + $0x30] sm:$0xff]
        %v2611 = vld [vmem:[%s4 + $0x38] sm:$0xff]
        %v2612 = vld [vmem:[%s4 + $0x40] sm:$0xff]
        %v2613 = vld [vmem:[%s4 + $0x48] sm:$0xff]
        %v2614 = vld [vmem:[%s4 + $0x50] sm:$0xff]
        %v2615 = vld [vmem:[%s4 + $0x58] sm:$0xff]
        %v2616 = vld [vmem:[%s4 + $0x60] sm:$0xff]
        %v2617 = vld [vmem:[%s4 + $0x68] sm:$0xff]
        %v2618 = vld [vmem:[%s4 + $0x70] sm:$0xff]
        %v2619 = vld [vmem:[%s4 + $0x78] sm:$0xff]
        %v2620 = vld [vmem:[%s4 + $0x80] sm:$0xff]
        %v2621 = vld [vmem:[%s4 + $0x88] sm:$0xff]
        %v2622 = vld [vmem:[%s4 + $0x90] sm:$0xff]
        %v2623 = vld [vmem:[%s4 + $0x98] sm:$0xff]
        %v2624 = vld [vmem:[%s4 + $0xa0] sm:$0xff]
        %v2625 = vld [vmem:[%s4 + $0xa8] sm:$0xff]
        %v2626 = vld [vmem:[%s4 + $0xb0] sm:$0xff]
        %v2627 = vld [vmem:[%s4 + $0xb8] sm:$0xff]
        %v2628 = vld [vmem:[%s4 + $0xc0] sm:$0xff]
        %v2629 = vld [vmem:[%s4 + $0xc8] sm:$0xff]
        %v2630 = vld [vmem:[%s4 + $0xd0] sm:$0xff]
        %v2631 = vld [vmem:[%s4 + $0xd8] sm:$0xff]
        %v2632 = vld [vmem:[%s4 + $0xe0] sm:$0xff]
        %v2633 = vld [vmem:[%s4 + $0xe8] sm:$0xff]
        %v2634 = vld [vmem:[%s4 + $0xf0] sm:$0xff]
        %v2635 = vld [vmem:[%s4 + $0xf8] sm:$0xff]
        %v2636 = vlaneseq
        %v2637 = vshrl.u32 %v2636, 7
        %v2638 = vsub.s32 5, %v2637
        %v2639 = vrot.slane %v2565, %v2638
        %v2640 = vlaneseq
        %v2641 = vshrl.u32 %v2640, 7
        %v2642 = vsub.s32 5, %v2641
        %v2643 = vrot.slane %v2566, %v2642
        %2644 = vmatprep.subr.mxu0 %v2605
        %2645 = vmatpush1.msra.mxu0 %v2604
        %2646 = vmatprep.subr.mxu0 %v2607
        %2647 = vmatpush1.msra.mxu0 %v2606
        %2648 = vmatprep.subr.mxu0 %v2609
        %2649 = vmatpush1.msra.mxu0 %v2608
        %2650 = vmatprep.subr.mxu0 %v2611
        %2651 = vmatpush1.msra.mxu0 %v2610
        %2652 = vmatprep.subr.mxu0 %v2613
        %2653 = vmatpush1.msra.mxu0 %v2612
        %2654 = vmatprep.subr.mxu0 %v2615
        %2655 = vmatpush1.msra.mxu0 %v2614
        %2656 = vmatprep.subr.mxu0 %v2617
        %2657 = vmatpush1.msra.mxu0 %v2616
        %2658 = vmatprep.subr.mxu0 %v2619
        %2659 = vmatpush1.msra.mxu0 %v2618
        %2660 = vmatprep.subr.mxu0 %v2621
        %2661 = vmatpush1.msra.mxu0 %v2620
        %2662 = vmatprep.subr.mxu0 %v2623
        %2663 = vmatpush1.msra.mxu0 %v2622
        %2664 = vmatprep.subr.mxu0 %v2625
        %2665 = vmatpush1.msra.mxu0 %v2624
        %2666 = vmatprep.subr.mxu0 %v2627
        %2667 = vmatpush1.msra.mxu0 %v2626
        %2668 = vmatprep.subr.mxu0 %v2629
        %2669 = vmatpush1.msra.mxu0 %v2628
        %2670 = vmatprep.subr.mxu0 %v2631
        %2671 = vmatpush1.msra.mxu0 %v2630
        %2672 = vmatprep.subr.mxu0 %v2633
        %2673 = vmatpush1.msra.mxu0 %v2632
        %2674 = vmatprep.subr.mxu0 %v2635
        %2675 = vmatpush1.msra.mxu0 %v2634
        %2676 = vmatprep.subr.mxu0 0.0
        %2677 = vmatpush1.msra.mxu0 0.0
        %2678 = vmatprep.subr.mxu0 0.0
        %2679 = vmatpush1.msra.mxu0 0.0
        %2680 = vmatprep.subr.mxu0 0.0
        %2681 = vmatpush1.msra.mxu0 0.0
        %2682 = vmatprep.subr.mxu0 0.0
        %2683 = vmatpush1.msra.mxu0 0.0
        %2684 = vmatprep.subr.mxu0 0.0
        %2685 = vmatpush1.msra.mxu0 0.0
        %2686 = vmatprep.subr.mxu0 0.0
        %2687 = vmatpush1.msra.mxu0 0.0
        %2688 = vmatprep.subr.mxu0 0.0
        %2689 = vmatpush1.msra.mxu0 0.0
        %2690 = vmatprep.subr.mxu0 0.0
        %2691 = vmatpush1.msra.mxu0 0.0
        %2692 = vmatprep.subr.mxu0 0.0
        %2693 = vmatpush1.msra.mxu0 0.0
        %2694 = vmatprep.subr.mxu0 0.0
        %2695 = vmatpush1.msra.mxu0 0.0
        %2696 = vmatprep.subr.mxu0 0.0
        %2697 = vmatpush1.msra.mxu0 0.0
        %2698 = vmatprep.subr.mxu0 0.0
        %2699 = vmatpush1.msra.mxu0 0.0
        %2700 = vmatprep.subr.mxu0 0.0
        %2701 = vmatpush1.msra.mxu0 0.0
        %2702 = vmatprep.subr.mxu0 0.0
        %2703 = vmatpush1.msra.mxu0 0.0
        %2704 = vmatprep.subr.mxu0 0.0
        %2705 = vmatpush1.msra.mxu0 0.0
        %2706 = vmatprep.subr.mxu0 0.0
        %2707 = vmatpush1.msra.mxu0 0.0
        %2708 = vmatprep.mubr.f32.mxu0 0.0
        %2709 = vmatmul.mubr.f32.gmra.mrb[0].mxu0 %v2602
        %v2710 = vpop.f32.mrb[0].mxu0
        %v2711 = vadd.f32 %v2639, %v2710
        %v2712 = vpop.f32.mrb[0].mxu0
        %v2713 = vadd.f32 %v2643, %v2712
        %2714 = vmatprep.mubr.f32.mxu0 0.0
        %2715 = vmatmul.mubr.f32.gmra.mrb[0].mxu0 %v2603
        %v2716 = vpop.f32.mrb[0].mxu0
        %v2717 = vadd.f32 %v2639, %v2716
        %v2718 = vpop.f32.mrb[0].mxu0
        %v2719 = vadd.f32 %v2643, %v2718
        %2720 = vdwg.mxu0
        %v2721 = vmul.f32 %v2711, 0.5
        %v2722 = vmul.f32 %v2713, 0.5
        %v2723 = vmul.f32 %v2717, 0.5
        %v2724 = vmul.f32 %v2719, 0.5
        %v2725 = vmul.f32 %v2711, 0.044715
        %v2726 = vmul.f32 %v2713, 0.044715
        %v2727 = vmul.f32 %v2717, 0.044715
        %v2728 = vmul.f32 %v2719, 0.044715
        %v2729 = vmul.f32 %v2725, %v2711
        %v2730 = vmul.f32 %v2726, %v2713
        %v2731 = vmul.f32 %v2727, %v2717
        %v2732 = vmul.f32 %v2728, %v2719
        %v2733 = vmul.f32 %v2729, %v2711
        %v2734 = vmul.f32 %v2730, %v2713
        %v2735 = vmul.f32 %v2731, %v2717
        %v2736 = vmul.f32 %v2732, %v2719
        %v2737 = vadd.f32 %v2711, %v2733
        %v2738 = vadd.f32 %v2713, %v2734
        %v2739 = vadd.f32 %v2717, %v2735
        %v2740 = vadd.f32 %v2719, %v2736
        %v2741 = vmul.f32 %v2737, 0.7978846
        %v2742 = vmul.f32 %v2738, 0.7978846
        %v2743 = vmul.f32 %v2739, 0.7978846
        %v2744 = vmul.f32 %v2740, 0.7978846
        %v2745 = vtanh.pop %v2741
        %v2746 = vtanh.pop %v2742
        %v2747 = vtanh.pop %v2743
        %v2748 = vtanh.pop %v2744
        %v2749 = vadd.f32 %v2745, 1.0
        %v2750 = vadd.f32 %v2746, 1.0
        %v2751 = vadd.f32 %v2747, 1.0
        %v2752 = vadd.f32 %v2748, 1.0
        %v2753 = vmul.f32 %v2721, %v2749
        %v2754 = vmul.f32 %v2722, %v2750
        %v2755 = vmul.f32 %v2723, %v2751
        %v2756 = vmul.f32 %v2724, %v2752
        %v2757 = vld [vmem:[%s5] sm:$0xff]
        %v2758 = vld [vmem:[%s5 + $0x8] sm:$0xff]
        %v2759 = vld [vmem:[%s5 + $0x10] sm:$0xff]
        %v2760 = vld [vmem:[%s5 + $0x18] sm:$0xff]
        %v2761 = vld [vmem:[%s5 + $0x20] sm:$0xff]
        %v2762 = vld [vmem:[%s5 + $0x28] sm:$0xff]
        %v2763 = vld [vmem:[%s5 + $0x30] sm:$0xff]
        %v2764 = vld [vmem:[%s5 + $0x38] sm:$0xff]
        %v2765 = vld [vmem:[%s5 + $0x40] sm:$0xff]
        %v2766 = vld [vmem:[%s5 + $0x48] sm:$0xff]
        %v2767 = vld [vmem:[%s5 + $0x50] sm:$0xff]
        %v2768 = vld [vmem:[%s5 + $0x58] sm:$0xff]
        %v2769 = vld [vmem:[%s5 + $0x60] sm:$0xff]
        %v2770 = vld [vmem:[%s5 + $0x68] sm:$0xff]
        %v2771 = vld [vmem:[%s5 + $0x70] sm:$0xff]
        %v2772 = vld [vmem:[%s5 + $0x78] sm:$0xff]
        %v2773 = vld [vmem:[%s5 + $0x80] sm:$0xff]
        %v2774 = vld [vmem:[%s5 + $0x88] sm:$0xff]
        %v2775 = vld [vmem:[%s5 + $0x90] sm:$0xff]
        %v2776 = vld [vmem:[%s5 + $0x98] sm:$0xff]
        %v2777 = vld [vmem:[%s5 + $0xa0] sm:$0xff]
        %v2778 = vld [vmem:[%s5 + $0xa8] sm:$0xff]
        %v2779 = vld [vmem:[%s5 + $0xb0] sm:$0xff]
        %v2780 = vld [vmem:[%s5 + $0xb8] sm:$0xff]
        %v2781 = vld [vmem:[%s5 + $0xc0] sm:$0xff]
        %v2782 = vld [vmem:[%s5 + $0xc8] sm:$0xff]
        %v2783 = vld [vmem:[%s5 + $0xd0] sm:$0xff]
        %v2784 = vld [vmem:[%s5 + $0xd8] sm:$0xff]
        %v2785 = vld [vmem:[%s5 + $0xe0] sm:$0xff]
        %v2786 = vld [vmem:[%s5 + $0xe8] sm:$0xff]
        %v2787 = vld [vmem:[%s5 + $0xf0] sm:$0xff]
        %v2788 = vld [vmem:[%s5 + $0xf8] sm:$0xff]
        %v2789 = vlaneseq
        %v2790 = vshrl.u32 %v2789, 7
        %v2791 = vsub.s32 4, %v2790
        %v2792 = vrot.slane %v2565, %v2791
        %2793 = vmatprep.subr.mxu0 0.0
        %2794 = vmatpush1.msra.mxu0 %v2757
        %2795 = vmatprep.subr.mxu0 0.0
        %2796 = vmatpush1.msra.mxu0 %v2758
        %2797 = vmatprep.subr.mxu0 0.0
        %2798 = vmatpush1.msra.mxu0 %v2759
        %2799 = vmatprep.subr.mxu0 0.0
        %2800 = vmatpush1.msra.mxu0 %v2760
        %2801 = vmatprep.subr.mxu0 0.0
        %2802 = vmatpush1.msra.mxu0 %v2761
        %2803 = vmatprep.subr.mxu0 0.0
        %2804 = vmatpush1.msra.mxu0 %v2762
        %2805 = vmatprep.subr.mxu0 0.0
        %2806 = vmatpush1.msra.mxu0 %v2763
        %2807 = vmatprep.subr.mxu0 0.0
        %2808 = vmatpush1.msra.mxu0 %v2764
        %2809 = vmatprep.subr.mxu0 0.0
        %2810 = vmatpush1.msra.mxu0 %v2765
        %2811 = vmatprep.subr.mxu0 0.0
        %2812 = vmatpush1.msra.mxu0 %v2766
        %2813 = vmatprep.subr.mxu0 0.0
        %2814 = vmatpush1.msra.mxu0 %v2767
        %2815 = vmatprep.subr.mxu0 0.0
        %2816 = vmatpush1.msra.mxu0 %v2768
        %2817 = vmatprep.subr.mxu0 0.0
        %2818 = vmatpush1.msra.mxu0 %v2769
        %2819 = vmatprep.subr.mxu0 0.0
        %2820 = vmatpush1.msra.mxu0 %v2770
        %2821 = vmatprep.subr.mxu0 0.0
        %2822 = vmatpush1.msra.mxu0 %v2771
        %2823 = vmatprep.subr.mxu0 0.0
        %2824 = vmatpush1.msra.mxu0 %v2772
        %2825 = vmatprep.subr.mxu0 0.0
        %2826 = vmatpush1.msra.mxu0 %v2773
        %2827 = vmatprep.subr.mxu0 0.0
        %2828 = vmatpush1.msra.mxu0 %v2774
        %2829 = vmatprep.subr.mxu0 0.0
        %2830 = vmatpush1.msra.mxu0 %v2775
        %2831 = vmatprep.subr.mxu0 0.0
        %2832 = vmatpush1.msra.mxu0 %v2776
        %2833 = vmatprep.subr.mxu0 0.0
        %2834 = vmatpush1.msra.mxu0 %v2777
        %2835 = vmatprep.subr.mxu0 0.0
        %2836 = vmatpush1.msra.mxu0 %v2778
        %2837 = vmatprep.subr.mxu0 0.0
        %2838 = vmatpush1.msra.mxu0 %v2779
        %2839 = vmatprep.subr.mxu0 0.0
        %2840 = vmatpush1.msra.mxu0 %v2780
        %2841 = vmatprep.subr.mxu0 0.0
        %2842 = vmatpush1.msra.mxu0 %v2781
        %2843 = vmatprep.subr.mxu0 0.0
        %2844 = vmatpush1.msra.mxu0 %v2782
        %2845 = vmatprep.subr.mxu0 0.0
        %2846 = vmatpush1.msra.mxu0 %v2783
        %2847 = vmatprep.subr.mxu0 0.0
        %2848 = vmatpush1.msra.mxu0 %v2784
        %2849 = vmatprep.subr.mxu0 0.0
        %2850 = vmatpush1.msra.mxu0 %v2785
        %2851 = vmatprep.subr.mxu0 0.0
        %2852 = vmatpush1.msra.mxu0 %v2786
        %2853 = vmatprep.subr.mxu0 0.0
        %2854 = vmatpush1.msra.mxu0 %v2787
        %2855 = vmatprep.subr.mxu0 0.0
        %2856 = vmatpush1.msra.mxu0 %v2788
        %2857 = vmatprep.mubr.f32.mxu0 %v2754
        %2858 = vmatmul.mubr.f32.gmra.mrb[0].mxu0 %v2753
        %v2859 = vpop.f32.mrb[0].mxu0
        %v2860 = vadd.f32 %v2792, %v2859
        %v2861 = vpop.f32.mrb[0].mxu0
        %2862 = vmatprep.mubr.f32.mxu0 %v2756
        %2863 = vmatmul.mubr.f32.gmra.mrb[0].mxu0 %v2755
        %v2864 = vpop.f32.mrb[0].mxu0
        %v2865 = vadd.f32 %v2792, %v2864
        %v2866 = vpop.f32.mrb[0].mxu0
        %2867 = vdwg.mxu0
        %v2868 = vadd.f32 %v2860, %v2602
        %v2869 = vadd.f32 %v2865, %v2603
        %2870 = vadd.xlane.f32.xlu0 %v2868
        %v2871 = vpop.xlane.xlu0 %2870
        %2872 = vadd.xlane.f32.xlu0 %v2869
        %v2873 = vpop.xlane.xlu0 %2872
        %v2874 = vmul.f32 %v2871, %v2573
        %v2875 = vmul.f32 %v2873, %v2573
        %v2876 = vsub.f32 %v2868, %v2874
        %v2877 = vsub.f32 %v2869, %v2875
        %v2878 = vmul.f32 %v2876, %v2876
        %v2879 = vmul.f32 %v2877, %v2877
        %2880 = vadd.xlane.f32.xlu0 %v2878
        %v2881 = vpop.xlane.xlu0 %2880
        %2882 = vadd.xlane.f32.xlu0 %v2879
        %v2883 = vpop.xlane.xlu0 %2882
        %v2884 = vmul.f32 %v2881, %v2573
        %v2885 = vmul.f32 %v2883, %v2573
        %v2886 = vadd.f32 %v2884, 1e-05
        %v2887 = vadd.f32 %v2885, 1e-05
        %v2888 = vrsqrt.pop %v2886
        %v2889 = vrsqrt.pop %v2887
        %v2890 = vmul.f32 %v2876, %v2888
        %v2891 = vmul.f32 %v2877, %v2889
        %v2892 = vlaneseq
        %v2893 = vshrl.u32 %v2892, 7
        %v2894 = vsub.s32 2, %v2893
        %v2895 = vrot.slane %v2565, %v2894
        %v2896 = vmul.f32 %v2890, %v2895
        %v2897 = vmul.f32 %v2891, %v2895
        %v2898 = vlaneseq
        %v2899 = vshrl.u32 %v2898, 7
        %v2900 = vsub.s32 3, %v2899
        %v2901 = vrot.slane %v2565, %v2900
        %v2902 = vadd.f32 %v2896, %v2901
        %v2903 = vadd.f32 %v2897, %v2901
        %2904 = vst [vmem:[%s286] sm:$0xff] %v2902
        %2905 = vst [vmem:[%s286 + $0x8] sm:$0xff] %v2903
        %s2906 = sand.u32 %s186, 1
        %s2907 = scalar_lea.sflag [#allocation3], %s2906
        %s2908 = sand.u32 %s186, 1
        %s2909 = smul.addr %s2908, 16
        %s2910 = scalar_lea.vmem [#allocation2], %s2909
        // Predicated region
        $region49: #{tpu_custom_call.1} parent=47 // pred_check
          %p2911 = pneg %p196
        $region50: #{tpu_custom_call.1} parent=47 // pred_check_branch
          %2913 = sbr.rel (%p2911) target = $region52
        $region51: #{tpu_custom_call.1} parent=47 // pred_region
          %s2915 = ssub.s32 256, 256
          %2916 = vsyncadd %s2907, %s2915
          %s2917 = smul.addr %s21, 2
          %s2918 = smul.addr %s2917, 128
          %s2919 = scalar_lea.hbm %s7, %s2918
          %s2920 = sshll.u32 %s2910, 4
          %s2921 = int_to_ptr.vmem [resolvable:$true] %s2920
          %2926 = dma.vmem_to_hbm [thread:$0]  %s2921, 256, %s2919, %s2907, 128, 128, 8
        $region52: #{tpu_custom_call.1} parent=47 // pred_fallthru
          _
      $region48: #{tpu_custom_call.1} parent=5 // pred_fallthru
        _
      %p2927 = scmp.le.s32.totalorder 2, %s16
      // Predicated region
      $region53: #{tpu_custom_call.1} parent=5 // pred_check
        %p2928 = pneg %p2927
      $region54: #{tpu_custom_call.1} parent=5 // pred_check_branch
        %2930 = sbr.rel (%p2928) target = $region56
      $region55: #{tpu_custom_call.1} parent=5 // pred_region
        %s2931 = ssub.s32 %s16, 2
        // Predicated region
        $region57: #{tpu_custom_call.1} parent=55 // pred_check
          %p2932 = pneg %p202
        $region58: #{tpu_custom_call.1} parent=55 // pred_check_branch
          %2934 = sbr.rel (%p2932) target = $region60
        $region59: #{tpu_custom_call.1} parent=55 // pred_region
          %s2935 = sand.u32 %s187, 1
          %s2936 = scalar_lea.sflag [#allocation3], %s2935
          %s2937 = sand.u32 %s187, 1
          %s2938 = smul.addr %s2937, 16
          %s2939 = scalar_lea.vmem [#allocation2], %s2938
          %2940 = dma.done %s2936, 256
        $region60: #{tpu_custom_call.1} parent=55 // pred_fallthru
          _
      $region56: #{tpu_custom_call.1} parent=5 // pred_fallthru
        _
    $region6: #{tpu_custom_call.1} parent=1 // loop_footer
      %s20 = sadd.s32 1, %s16
    $region7: #{tpu_custom_call.1} parent=1 // loop_footer_branch
      %15 = sbr.rel target = $region3
    $region8: #{tpu_custom_call.1} parent=1 // loop_exit
      _
    %2941 = vsyncpa [#allocation3], 1
    %s2942 = scalar_lea.sflag [#allocation3], 1
    %2943 = vsyncpa %s2942, 1

</llo_original>
